<compile_context>
chip_gen: v6e
topology: v6e:2x2x1
jax: 0.10.0
libtpu: 0.0.40
codegen_flags: <defaults>
</compile_context>

<pallas_src>
import jax
import jax.numpy as jnp
from jax import lax
from jax.experimental import pallas as pl
from jax.experimental.pallas import tpu as pltpu

# ----------------------------- config ---------------------------------------
INPUT_SIZE = 16
HIDDEN = 32
NUM_LAYERS = 2
NUM_DIRS = 2                    # bidirectional=True
SEQ = 8
BATCH = 2
OUT_SIZE = INPUT_SIZE           # notes_num defaults to input_size, nan_class=False
BN_EPS = 1e-5

H = HIDDEN
H2 = 2 * HIDDEN                 # 64  (stacked fwd|rev hidden)
G = 6 * HIDDEN                  # 192 (packed gates: r_f, r_r, z_f, z_r, n_f, n_r)
F = INPUT_SIZE
T = SEQ
B = BATCH

# Row offsets of the single packed weight blob (rows x 192 lanes, all 8-aligned).
_R_W1F = 0                      # (F, G)   layer-1 input weights, fwd gate columns
_R_W1R = _R_W1F + F             # (F, G)   layer-1 input weights, rev gate columns
_R_WHH1 = _R_W1R + F            # (2H, G)  layer-1 hidden weights, block-diag over dir
_R_WIH2 = _R_WHH1 + H2          # (4H, G)  layer-2 input weights (routes [h1[s]|h1[T-1-s]])
_R_WHH2 = _R_WIH2 + 4 * H       # (2H, G)  layer-2 hidden weights
_R_WHEAD = _R_WHH2 + H2         # (2H, G)  BN-folded Linear head (cols 0:OUT used)
_R_BIAS = _R_WHEAD + H2         # (8, G)   bias rows
BLOB_ROWS = _R_BIAS + 8         # 360

VMEM = pl.BlockSpec(memory_space=pltpu.MemorySpace.VMEM)
_TRANS_LHS = (((0,), (0,)), ((), ()))   # dot_general dims: contract dim 0 of both (= lhs.T @ rhs)


# ----------------------------- fused Pallas kernel ----------------------------
def fused_rnn_kernel(x_ref, w_ref, out_ref):
    """Whole SimpleMidiRNN forward in one kernel.

    x_ref:   (B, F, T)        input in its native (free-reshape) layout
    w_ref:   (BLOB_ROWS, G)   single packed weight/bias blob
    out_ref: (B, OUT_SIZE)
    """
    # ---- carve the packed blob with static slices (one DMA brought it all in) ----
    w1f = w_ref[_R_W1F:_R_W1R, :]                       # (F, G)
    w1r = w_ref[_R_W1R:_R_WHH1, :]                      # (F, G)
    whh1 = w_ref[_R_WHH1:_R_WIH2, :]                    # (2H, G)
    wih2 = w_ref[_R_WIH2:_R_WHH2, :]                    # (4H, G)
    whh2 = w_ref[_R_WHH2:_R_WHEAD, :]                   # (2H, G)
    whead = w_ref[_R_WHEAD:_R_BIAS, 0:OUT_SIZE]         # (2H, OUT)
    b1 = w_ref[_R_BIAS + 0:_R_BIAS + 1, :]              # (1, G)  b_ih1 (+ b_hh1 r/z folded)
    bhn1 = w_ref[_R_BIAS + 1:_R_BIAS + 2, 0:H2]         # (1, 2H) b_hh1 n-gate bias
    b2 = w_ref[_R_BIAS + 2:_R_BIAS + 3, :]              # (1, G)  b_ih2 (+ b_hh2 r/z folded)
    bhn2 = w_ref[_R_BIAS + 3:_R_BIAS + 4, 0:H2]         # (1, 2H)
    bhead = w_ref[_R_BIAS + 4:_R_BIAS + 5, 0:OUT_SIZE]  # (1, OUT)

    def run_layer(gi_steps, whh, bhn):
        """Packed bidirectional GRU recurrence: state (B, 2H) = [fwd | rev].

        gi_steps[s]: (B, G) input-side gate pre-activations for step s (fwd dir
        at time s, rev dir at time T-1-s), already including b_ih and the folded
        r/z parts of b_hh.  Only the n-gate hidden bias `bhn` stays per-step,
        inside r * (W_hn h + b_hn), per PyTorch GRU semantics.
        """
        states = []
        h = None
        for s in range(T):
            gi = gi_steps[s]
            if s == 0:
                # h0 == 0: skip the recurrent matmul entirely (shorter serial chain).
                rz = jax.nn.sigmoid(gi[:, :4 * H])                     # (B, 128)
                r, z = rz[:, :H2], rz[:, H2:]
                n = jnp.tanh(gi[:, 4 * H:] + r * bhn)                  # (B, 2H)
                h = (1.0 - z) * n
            else:
                gh = jnp.dot(h, whh, preferred_element_type=jnp.float32)   # (B, G)
                rz = jax.nn.sigmoid(gi[:, :4 * H] + gh[:, :4 * H])     # one 128-lane slab
                r, z = rz[:, :H2], rz[:, H2:]
                n = jnp.tanh(gi[:, 4 * H:] + r * (gh[:, 4 * H:] + bhn))
                h = (1.0 - z) * n + z * h
            states.append(h)
        return states

    # ---- layer 1: hoisted input matmuls, both directions, no host transpose -----
    # x_ref[b] is (F, T); a transposed-LHS dot contracts F and puts time on rows,
    # so the time-major rearrangement happens inside the MXU op itself.
    gif = []   # gif[b]: (T, G) fwd-direction gate inputs for batch b (+ biases)
    gir = []   # gir[b]: (T, G) rev-direction gate inputs for batch b
    for b in range(B):
        xb = x_ref[b]                                                  # (F, T)
        gif.append(lax.dot_general(xb, w1f, _TRANS_LHS,
                                   preferred_element_type=jnp.float32) + b1)
        gir.append(lax.dot_general(xb, w1r, _TRANS_LHS,
                                   preferred_element_type=jnp.float32))
    gi1_steps = []
    for s in range(T):
        # fwd columns come from time s, rev columns from time T-1-s: a plain add
        # of two rows per batch (no gate-mask selects).
        rows = [gif[b][s:s + 1, :] + gir[b][T - 1 - s:T - s, :] for b in range(B)]
        gi1_steps.append(jnp.concatenate(rows, axis=0))                # (B, G)

    h1 = run_layer(gi1_steps, whh1, bhn1)

    # ---- layer 2: per-step input is the pure lane-concat [h1[s] | h1[T-1-s]] -----
    # wih2 is host-repacked so this (B, 4H) value routes the four H-blocks to the
    # correct fwd/rev gate columns; these dots depend only on h1, so the scheduler
    # can issue them in the MXU idle cycles of the layer-2 recurrence.
    gi2_steps = []
    for s in range(T):
        z2 = jnp.concatenate([h1[s], h1[T - 1 - s]], axis=1)           # (B, 4H)
        gi2_steps.append(jnp.dot(z2, wih2, preferred_element_type=jnp.float32) + b2)

    h2 = run_layer(gi2_steps, whh2, bhn2)

    # output[:, -1, :] = [fwd hidden after T steps | rev hidden after 1 rev step]
    last = jnp.concatenate([h2[T - 1][:, :H], h2[0][:, H:]], axis=1)   # (B, 2H)

    # BN(eval)-folded Linear head.
    out_ref[...] = jnp.dot(last, whead, preferred_element_type=jnp.float32) + bhead


# ----------------------------- host wrapper -----------------------------------
@jax.jit
def simple_midi_rnn_forward(x, wblob):
    """x: (B, 1, INPUT_SIZE, SEQ) -> (B, OUT_SIZE)."""
    # (B, 1, F, T) -> (B, F, T): a pure reshape of a contiguous array, i.e. no
    # standalone XLA transpose/copy op in front of the kernel.
    xb = x.reshape(BATCH, INPUT_SIZE, SEQ).astype(jnp.float32)
    return pl.pallas_call(
        fused_rnn_kernel,
        out_shape=jax.ShapeDtypeStruct((BATCH, OUT_SIZE), jnp.float32),
        in_specs=[VMEM, VMEM],
        out_specs=VMEM,
    )(xb, wblob)


# ----------------------------- weight packing (done once) ----------------------
def _pack_gate_cols(m_f, m_r):
    """Interleave the (r,z,n) gate blocks of the two directions along the last
    axis into the packed column layout [r_f, r_r, z_f, z_r, n_f, n_r]."""
    return jnp.concatenate([m_f[..., 0:H], m_r[..., 0:H],
                            m_f[..., H:2 * H], m_r[..., H:2 * H],
                            m_f[..., 2 * H:3 * H], m_r[..., 2 * H:3 * H]], axis=-1)


def pack_params(p):
    """PyTorch-layout params -> one packed (BLOB_ROWS, G) f32 blob."""
    blob = jnp.zeros((BLOB_ROWS, G), jnp.float32)

    wih1_f, whh1_f, bih1_f, bhh1_f = p["gru"][(0, 0)]
    wih1_r, whh1_r, bih1_r, bhh1_r = p["gru"][(0, 1)]
    wih2_f, whh2_f, bih2_f, bhh2_f = p["gru"][(1, 0)]
    wih2_r, whh2_r, bih2_r, bhh2_r = p["gru"][(1, 1)]

    # Layer-1 input weights: separate fwd / rev column blocks -> per-step combine
    # inside the kernel is a plain add instead of a masked select.
    z_ih1 = jnp.zeros_like(wih1_f.T)                                   # (F, 3H)
    blob = blob.at[_R_W1F:_R_W1R].set(_pack_gate_cols(wih1_f.T, z_ih1))
    blob = blob.at[_R_W1R:_R_WHH1].set(_pack_gate_cols(z_ih1, wih1_r.T))

    # Hidden->gate weights, block-diagonal over direction (fwd rows -> fwd cols).
    z_hh = jnp.zeros_like(whh1_f.T)                                    # (H, 3H)
    blob = blob.at[_R_WHH1:_R_WIH2].set(
        jnp.concatenate([_pack_gate_cols(whh1_f.T, z_hh),
                         _pack_gate_cols(z_hh, whh1_r.T)], axis=0))
    blob = blob.at[_R_WHH2:_R_WHEAD].set(
        jnp.concatenate([_pack_gate_cols(whh2_f.T, z_hh),
                         _pack_gate_cols(z_hh, whh2_r.T)], axis=0))

    # Layer-2 input weights, repacked for the per-step input [h1[s] | h1[T-1-s]]
    #   = [fwd_out[s] | rev_out[T-1-s] | fwd_out[T-1-s] | rev_out[s]].
    wf = wih2_f.T                                                      # (2H, 3H)
    wr = wih2_r.T
    z_blk = jnp.zeros((H, 3 * H), jnp.float32)
    wih2_p = jnp.concatenate([
        _pack_gate_cols(wf[0:H], z_blk),        # rows 0:H   <- fwd_out[s]      -> fwd gates
        _pack_gate_cols(z_blk, wr[H:2 * H]),    # rows H:2H  <- rev_out[T-1-s]  -> rev gates
        _pack_gate_cols(z_blk, wr[0:H]),        # rows 2H:3H <- fwd_out[T-1-s]  -> rev gates
        _pack_gate_cols(wf[H:2 * H], z_blk),    # rows 3H:4H <- rev_out[s]      -> fwd gates
    ], axis=0)                                                          # (4H, G)
    blob = blob.at[_R_WIH2:_R_WHH2].set(wih2_p)

    # Fold eval-mode BatchNorm1d into the Linear head.
    scale = p["bn_gamma"] / jnp.sqrt(p["bn_var"] + BN_EPS)             # (2H,)
    w_head = p["lin_w"].T * scale[:, None]                             # (2H, OUT)
    b_head = (p["bn_beta"] - p["bn_mean"] * scale) @ p["lin_w"].T + p["lin_b"]
    blob = blob.at[_R_WHEAD:_R_BIAS, 0:OUT_SIZE].set(w_head)

    # Biases: fold b_hh's r/z parts into b_ih; keep only the n-gate hidden bias
    # separate (it must stay inside r * (W_hn h + b_hn)).
    def bias_rows(bih_f, bih_r, bhh_f, bhh_r):
        bih_p = _pack_gate_cols(bih_f.reshape(1, -1), bih_r.reshape(1, -1))   # (1, G)
        bhh_p = _pack_gate_cols(bhh_f.reshape(1, -1), bhh_r.reshape(1, -1))   # (1, G)
        b_main = bih_p.at[:, :4 * H].add(bhh_p[:, :4 * H])
        return b_main, bhh_p[:, 4 * H:]                                       # (1, 2H)

    b1_main, b1_hn = bias_rows(bih1_f, bih1_r, bhh1_f, bhh1_r)
    b2_main, b2_hn = bias_rows(bih2_f, bih2_r, bhh2_f, bhh2_r)
    blob = blob.at[_R_BIAS + 0].set(b1_main[0])
    blob = blob.at[_R_BIAS + 1, 0:H2].set(b1_hn[0])
    blob = blob.at[_R_BIAS + 2].set(b2_main[0])
    blob = blob.at[_R_BIAS + 3, 0:H2].set(b2_hn[0])
    blob = blob.at[_R_BIAS + 4, 0:OUT_SIZE].set(b_head)
    return blob


# ----------------------------- pure-JAX reference -----------------------------
# TODO(synk): train-mode dropout (GRU inter-layer p=0.1 and fc Dropout) is omitted;
# this implements the module's eval-mode forward (dropout == identity).
def gru_layer_dir_ref(x_tbf, w_ih, w_hh, b_ih, b_hh):
    Hh = w_hh.shape[1]

    def step(h, x_t):
        gi = x_t @ w_ih.T + b_ih
        gh = h @ w_hh.T + b_hh
        r = jax.nn.sigmoid(gi[:, :Hh] + gh[:, :Hh])
        z = jax.nn.sigmoid(gi[:, Hh:2 * Hh] + gh[:, Hh:2 * Hh])
        n = jnp.tanh(gi[:, 2 * Hh:] + r * gh[:, 2 * Hh:])
        h_new = (1.0 - z) * n + z * h
        return h_new, h_new

    h0 = jnp.zeros((x_tbf.shape[1], Hh), jnp.float32)
    _, outs = jax.lax.scan(step, h0, x_tbf)
    return outs


def forward_ref(x, params):
    x = jnp.squeeze(x, axis=1)
    x = jnp.transpose(x, (0, 2, 1))
    seq = jnp.transpose(x, (1, 0, 2)).astype(jnp.float32)      # (T, B, F)
    for layer in range(NUM_LAYERS):
        outs = []
        for d in range(NUM_DIRS):
            w_ih, w_hh, b_ih, b_hh = params["gru"][(layer, d)]
            inp = seq if d == 0 else jnp.flip(seq, axis=0)
            out = gru_layer_dir_ref(inp, w_ih, w_hh, b_ih, b_hh)
            if d == 1:
                out = jnp.flip(out, axis=0)
            outs.append(out)
        seq = jnp.concatenate(outs, axis=-1)
    last = seq[-1]
    xn = (last - params["bn_mean"]) / jnp.sqrt(params["bn_var"] + BN_EPS)
    xn = xn * params["bn_gamma"] + params["bn_beta"]
    return xn @ params["lin_w"].T + params["lin_b"]


# ----------------------------- params ----------------------------------------
def init_params(key):
    params = {"gru": {}}
    k = 1.0 / jnp.sqrt(HIDDEN)
    feat_dim = HIDDEN * NUM_DIRS
    for layer in range(NUM_LAYERS):
        in_feat = INPUT_SIZE if layer == 0 else feat_dim
        for d in range(NUM_DIRS):
            key, k1, k2, k3, k4 = jax.random.split(key, 5)
            w_ih = jax.random.uniform(k1, (3 * HIDDEN, in_feat), jnp.float32, -k, k)
            w_hh = jax.random.uniform(k2, (3 * HIDDEN, HIDDEN), jnp.float32, -k, k)
            b_ih = jax.random.uniform(k3, (3 * HIDDEN,), jnp.float32, -k, k)
            b_hh = jax.random.uniform(k4, (3 * HIDDEN,), jnp.float32, -k, k)
            params["gru"][(layer, d)] = (w_ih, w_hh, b_ih, b_hh)
    # BatchNorm1d(feat_dim) at PyTorch init (eval mode uses these running stats)
    params["bn_gamma"] = jnp.ones((feat_dim,), jnp.float32)
    params["bn_beta"] = jnp.zeros((feat_dim,), jnp.float32)
    params["bn_mean"] = jnp.zeros((feat_dim,), jnp.float32)
    params["bn_var"] = jnp.ones((feat_dim,), jnp.float32)
    # Linear(feat_dim, OUT_SIZE)
    key, k1, k2 = jax.random.split(key, 3)
    kl = 1.0 / jnp.sqrt(feat_dim)
    params["lin_w"] = jax.random.uniform(k1, (OUT_SIZE, feat_dim), jnp.float32, -kl, kl)
    params["lin_b"] = jax.random.uniform(k2, (OUT_SIZE,), jnp.float32, -kl, kl)
    return params


# ----------------------------- main -------------------------------------------
if __name__ == "__main__":
    key = jax.random.PRNGKey(0)
    key_x, key_p = jax.random.split(key)

    # Input matches the PyTorch module: (B, 1, input_size, seq)
    x = jax.random.normal(key_x, (BATCH, 1, INPUT_SIZE, SEQ), jnp.float32)
    params = init_params(key_p)
    wblob = jax.block_until_ready(pack_params(params))   # packed once on the host

    out = simple_midi_rnn_forward(x, wblob)
    out = jax.block_until_ready(out)
    assert out.shape == (BATCH, OUT_SIZE), out.shape

    ref = jax.block_until_ready(forward_ref(x, params))
    err = float(jnp.max(jnp.abs(out - ref)))
    assert jnp.allclose(out, ref, rtol=1e-4, atol=1e-4), err

    print("KERNEL_OK")
</pallas_src>

<mosaic_0001>
module attributes {stable_mosaic.version = 11 : i64} {
  func.func @fused_rnn_kernel(%arg0: memref<2x16x8xf32, #tpu.memory_space<vmem>>, %arg1: memref<360x192xf32, #tpu.memory_space<vmem>>, %arg2: memref<2x16xf32, #tpu.memory_space<vmem>>) attributes {dimension_semantics = [], scalar_prefetch = 0 : i64, scratch_operands = 0 : i64, tpu.core_type = #tpu.core_type<tc>} {
    %c0 = arith.constant 0 : index
    %c0_0 = arith.constant 0 : index
    %0 = vector.load %arg1[%c0, %c0_0] : memref<360x192xf32, #tpu.memory_space<vmem>>, vector<16x192xf32>
    %c16 = arith.constant 16 : index
    %c0_1 = arith.constant 0 : index
    %1 = vector.load %arg1[%c16, %c0_1] : memref<360x192xf32, #tpu.memory_space<vmem>>, vector<16x192xf32>
    %c32 = arith.constant 32 : index
    %c0_2 = arith.constant 0 : index
    %2 = vector.load %arg1[%c32, %c0_2] : memref<360x192xf32, #tpu.memory_space<vmem>>, vector<64x192xf32>
    %c96 = arith.constant 96 : index
    %c0_3 = arith.constant 0 : index
    %3 = vector.load %arg1[%c96, %c0_3] : memref<360x192xf32, #tpu.memory_space<vmem>>, vector<128x192xf32>
    %c224 = arith.constant 224 : index
    %c0_4 = arith.constant 0 : index
    %4 = vector.load %arg1[%c224, %c0_4] : memref<360x192xf32, #tpu.memory_space<vmem>>, vector<64x192xf32>
    %c288 = arith.constant 288 : index
    %c0_5 = arith.constant 0 : index
    %5 = vector.load %arg1[%c288, %c0_5] : memref<360x192xf32, #tpu.memory_space<vmem>>, vector<64x16xf32>
    %c352 = arith.constant 352 : index
    %c0_6 = arith.constant 0 : index
    %6 = vector.load %arg1[%c352, %c0_6] : memref<360x192xf32, #tpu.memory_space<vmem>>, vector<1x192xf32>
    %c353 = arith.constant 353 : index
    %c0_7 = arith.constant 0 : index
    %7 = vector.load %arg1[%c353, %c0_7] : memref<360x192xf32, #tpu.memory_space<vmem>>, vector<1x64xf32>
    %c354 = arith.constant 354 : index
    %c0_8 = arith.constant 0 : index
    %8 = vector.load %arg1[%c354, %c0_8] : memref<360x192xf32, #tpu.memory_space<vmem>>, vector<1x192xf32>
    %c355 = arith.constant 355 : index
    %c0_9 = arith.constant 0 : index
    %9 = vector.load %arg1[%c355, %c0_9] : memref<360x192xf32, #tpu.memory_space<vmem>>, vector<1x64xf32>
    %c356 = arith.constant 356 : index
    %c0_10 = arith.constant 0 : index
    %10 = vector.load %arg1[%c356, %c0_10] : memref<360x192xf32, #tpu.memory_space<vmem>>, vector<1x16xf32>
    %c0_11 = arith.constant 0 : index
    %c0_12 = arith.constant 0 : index
    %c0_13 = arith.constant 0 : index
    %11 = vector.load %arg0[%c0_11, %c0_12, %c0_13] : memref<2x16x8xf32, #tpu.memory_space<vmem>>, vector<1x16x8xf32>
    %12 = vector.shape_cast %11 : vector<1x16x8xf32> to vector<16x8xf32>
    %cst = arith.constant dense<0.000000e+00> : vector<8x192xf32>
    %13 = tpu.matmul %12, %0, %cst {dimension_numbers = #tpu.dot_dimension_numbers<[0], [0], [1], [1], [0, 1, 1, 1], [], []>} : vector<16x8xf32>, vector<16x192xf32>, vector<8x192xf32> -> vector<8x192xf32>
    %14 = vector.broadcast %6 : vector<1x192xf32> to vector<8x192xf32>
    %15 = arith.addf %13, %14 : vector<8x192xf32>
    %cst_14 = arith.constant dense<0.000000e+00> : vector<8x192xf32>
    %16 = tpu.matmul %12, %1, %cst_14 {dimension_numbers = #tpu.dot_dimension_numbers<[0], [0], [1], [1], [0, 1, 1, 1], [], []>} : vector<16x8xf32>, vector<16x192xf32>, vector<8x192xf32> -> vector<8x192xf32>
    %c1 = arith.constant 1 : index
    %c0_15 = arith.constant 0 : index
    %c0_16 = arith.constant 0 : index
    %17 = vector.load %arg0[%c1, %c0_15, %c0_16] : memref<2x16x8xf32, #tpu.memory_space<vmem>>, vector<1x16x8xf32>
    %18 = vector.shape_cast %17 : vector<1x16x8xf32> to vector<16x8xf32>
    %cst_17 = arith.constant dense<0.000000e+00> : vector<8x192xf32>
    %19 = tpu.matmul %18, %0, %cst_17 {dimension_numbers = #tpu.dot_dimension_numbers<[0], [0], [1], [1], [0, 1, 1, 1], [], []>} : vector<16x8xf32>, vector<16x192xf32>, vector<8x192xf32> -> vector<8x192xf32>
    %20 = vector.broadcast %6 : vector<1x192xf32> to vector<8x192xf32>
    %21 = arith.addf %19, %20 : vector<8x192xf32>
    %cst_18 = arith.constant dense<0.000000e+00> : vector<8x192xf32>
    %22 = tpu.matmul %18, %1, %cst_18 {dimension_numbers = #tpu.dot_dimension_numbers<[0], [0], [1], [1], [0, 1, 1, 1], [], []>} : vector<16x8xf32>, vector<16x192xf32>, vector<8x192xf32> -> vector<8x192xf32>
    %23 = vector.extract_strided_slice %15 {offsets = [0, 0], sizes = [1, 192], strides = [1, 1]} : vector<8x192xf32> to vector<1x192xf32>
    %24 = vector.extract_strided_slice %16 {offsets = [7, 0], sizes = [1, 192], strides = [1, 1]} : vector<8x192xf32> to vector<1x192xf32>
    %25 = arith.addf %23, %24 : vector<1x192xf32>
    %26 = vector.extract_strided_slice %21 {offsets = [0, 0], sizes = [1, 192], strides = [1, 1]} : vector<8x192xf32> to vector<1x192xf32>
    %27 = vector.extract_strided_slice %22 {offsets = [7, 0], sizes = [1, 192], strides = [1, 1]} : vector<8x192xf32> to vector<1x192xf32>
    %28 = arith.addf %26, %27 : vector<1x192xf32>
    %29 = tpu.concatenate %25, %28 in 0 : vector<1x192xf32>, vector<1x192xf32> -> vector<2x192xf32>
    %30 = vector.extract_strided_slice %15 {offsets = [1, 0], sizes = [1, 192], strides = [1, 1]} : vector<8x192xf32> to vector<1x192xf32>
    %31 = vector.extract_strided_slice %16 {offsets = [6, 0], sizes = [1, 192], strides = [1, 1]} : vector<8x192xf32> to vector<1x192xf32>
    %32 = arith.addf %30, %31 : vector<1x192xf32>
    %33 = vector.extract_strided_slice %21 {offsets = [1, 0], sizes = [1, 192], strides = [1, 1]} : vector<8x192xf32> to vector<1x192xf32>
    %34 = vector.extract_strided_slice %22 {offsets = [6, 0], sizes = [1, 192], strides = [1, 1]} : vector<8x192xf32> to vector<1x192xf32>
    %35 = arith.addf %33, %34 : vector<1x192xf32>
    %36 = tpu.concatenate %32, %35 in 0 : vector<1x192xf32>, vector<1x192xf32> -> vector<2x192xf32>
    %37 = vector.extract_strided_slice %15 {offsets = [2, 0], sizes = [1, 192], strides = [1, 1]} : vector<8x192xf32> to vector<1x192xf32>
    %38 = vector.extract_strided_slice %16 {offsets = [5, 0], sizes = [1, 192], strides = [1, 1]} : vector<8x192xf32> to vector<1x192xf32>
    %39 = arith.addf %37, %38 : vector<1x192xf32>
    %40 = vector.extract_strided_slice %21 {offsets = [2, 0], sizes = [1, 192], strides = [1, 1]} : vector<8x192xf32> to vector<1x192xf32>
    %41 = vector.extract_strided_slice %22 {offsets = [5, 0], sizes = [1, 192], strides = [1, 1]} : vector<8x192xf32> to vector<1x192xf32>
    %42 = arith.addf %40, %41 : vector<1x192xf32>
    %43 = tpu.concatenate %39, %42 in 0 : vector<1x192xf32>, vector<1x192xf32> -> vector<2x192xf32>
    %44 = vector.extract_strided_slice %15 {offsets = [3, 0], sizes = [1, 192], strides = [1, 1]} : vector<8x192xf32> to vector<1x192xf32>
    %45 = vector.extract_strided_slice %16 {offsets = [4, 0], sizes = [1, 192], strides = [1, 1]} : vector<8x192xf32> to vector<1x192xf32>
    %46 = arith.addf %44, %45 : vector<1x192xf32>
    %47 = vector.extract_strided_slice %21 {offsets = [3, 0], sizes = [1, 192], strides = [1, 1]} : vector<8x192xf32> to vector<1x192xf32>
    %48 = vector.extract_strided_slice %22 {offsets = [4, 0], sizes = [1, 192], strides = [1, 1]} : vector<8x192xf32> to vector<1x192xf32>
    %49 = arith.addf %47, %48 : vector<1x192xf32>
    %50 = tpu.concatenate %46, %49 in 0 : vector<1x192xf32>, vector<1x192xf32> -> vector<2x192xf32>
    %51 = vector.extract_strided_slice %15 {offsets = [4, 0], sizes = [1, 192], strides = [1, 1]} : vector<8x192xf32> to vector<1x192xf32>
    %52 = vector.extract_strided_slice %16 {offsets = [3, 0], sizes = [1, 192], strides = [1, 1]} : vector<8x192xf32> to vector<1x192xf32>
    %53 = arith.addf %51, %52 : vector<1x192xf32>
    %54 = vector.extract_strided_slice %21 {offsets = [4, 0], sizes = [1, 192], strides = [1, 1]} : vector<8x192xf32> to vector<1x192xf32>
    %55 = vector.extract_strided_slice %22 {offsets = [3, 0], sizes = [1, 192], strides = [1, 1]} : vector<8x192xf32> to vector<1x192xf32>
    %56 = arith.addf %54, %55 : vector<1x192xf32>
    %57 = tpu.concatenate %53, %56 in 0 : vector<1x192xf32>, vector<1x192xf32> -> vector<2x192xf32>
    %58 = vector.extract_strided_slice %15 {offsets = [5, 0], sizes = [1, 192], strides = [1, 1]} : vector<8x192xf32> to vector<1x192xf32>
    %59 = vector.extract_strided_slice %16 {offsets = [2, 0], sizes = [1, 192], strides = [1, 1]} : vector<8x192xf32> to vector<1x192xf32>
    %60 = arith.addf %58, %59 : vector<1x192xf32>
    %61 = vector.extract_strided_slice %21 {offsets = [5, 0], sizes = [1, 192], strides = [1, 1]} : vector<8x192xf32> to vector<1x192xf32>
    %62 = vector.extract_strided_slice %22 {offsets = [2, 0], sizes = [1, 192], strides = [1, 1]} : vector<8x192xf32> to vector<1x192xf32>
    %63 = arith.addf %61, %62 : vector<1x192xf32>
    %64 = tpu.concatenate %60, %63 in 0 : vector<1x192xf32>, vector<1x192xf32> -> vector<2x192xf32>
    %65 = vector.extract_strided_slice %15 {offsets = [6, 0], sizes = [1, 192], strides = [1, 1]} : vector<8x192xf32> to vector<1x192xf32>
    %66 = vector.extract_strided_slice %16 {offsets = [1, 0], sizes = [1, 192], strides = [1, 1]} : vector<8x192xf32> to vector<1x192xf32>
    %67 = arith.addf %65, %66 : vector<1x192xf32>
    %68 = vector.extract_strided_slice %21 {offsets = [6, 0], sizes = [1, 192], strides = [1, 1]} : vector<8x192xf32> to vector<1x192xf32>
    %69 = vector.extract_strided_slice %22 {offsets = [1, 0], sizes = [1, 192], strides = [1, 1]} : vector<8x192xf32> to vector<1x192xf32>
    %70 = arith.addf %68, %69 : vector<1x192xf32>
    %71 = tpu.concatenate %67, %70 in 0 : vector<1x192xf32>, vector<1x192xf32> -> vector<2x192xf32>
    %72 = vector.extract_strided_slice %15 {offsets = [7, 0], sizes = [1, 192], strides = [1, 1]} : vector<8x192xf32> to vector<1x192xf32>
    %73 = vector.extract_strided_slice %16 {offsets = [0, 0], sizes = [1, 192], strides = [1, 1]} : vector<8x192xf32> to vector<1x192xf32>
    %74 = arith.addf %72, %73 : vector<1x192xf32>
    %75 = vector.extract_strided_slice %21 {offsets = [7, 0], sizes = [1, 192], strides = [1, 1]} : vector<8x192xf32> to vector<1x192xf32>
    %76 = vector.extract_strided_slice %22 {offsets = [0, 0], sizes = [1, 192], strides = [1, 1]} : vector<8x192xf32> to vector<1x192xf32>
    %77 = arith.addf %75, %76 : vector<1x192xf32>
    %78 = tpu.concatenate %74, %77 in 0 : vector<1x192xf32>, vector<1x192xf32> -> vector<2x192xf32>
    %79 = vector.extract_strided_slice %29 {offsets = [0, 0], sizes = [2, 128], strides = [1, 1]} : vector<2x192xf32> to vector<2x128xf32>
    %80 = arith.negf %79 : vector<2x128xf32>
    %81 = math.exp %80 : vector<2x128xf32>
    %cst_19 = arith.constant 1.000000e+00 : f32
    %82 = vector.broadcast %cst_19 : f32 to vector<2x128xf32>
    %83 = arith.addf %82, %81 : vector<2x128xf32>
    %84 = arith.divf %82, %83 : vector<2x128xf32>
    %85 = vector.extract_strided_slice %84 {offsets = [0, 0], sizes = [2, 64], strides = [1, 1]} : vector<2x128xf32> to vector<2x64xf32>
    %86 = vector.extract_strided_slice %84 {offsets = [0, 64], sizes = [2, 64], strides = [1, 1]} : vector<2x128xf32> to vector<2x64xf32>
    %87 = vector.extract_strided_slice %29 {offsets = [0, 128], sizes = [2, 64], strides = [1, 1]} : vector<2x192xf32> to vector<2x64xf32>
    %88 = vector.broadcast %7 : vector<1x64xf32> to vector<2x64xf32>
    %89 = arith.mulf %85, %88 : vector<2x64xf32>
    %90 = arith.addf %87, %89 : vector<2x64xf32>
    %91 = math.tanh %90 : vector<2x64xf32>
    %cst_20 = arith.constant 1.000000e+00 : f32
    %92 = vector.broadcast %cst_20 : f32 to vector<2x64xf32>
    %93 = arith.subf %92, %86 : vector<2x64xf32>
    %94 = arith.mulf %93, %91 : vector<2x64xf32>
    %cst_21 = arith.constant dense<0.000000e+00> : vector<2x192xf32>
    %95 = tpu.matmul %94, %2, %cst_21 {dimension_numbers = #tpu.dot_dimension_numbers<[1], [0], [0], [1], [0, 0, 1, 1], [], []>} : vector<2x64xf32>, vector<64x192xf32>, vector<2x192xf32> -> vector<2x192xf32>
    %96 = vector.extract_strided_slice %36 {offsets = [0, 0], sizes = [2, 128], strides = [1, 1]} : vector<2x192xf32> to vector<2x128xf32>
    %97 = vector.extract_strided_slice %95 {offsets = [0, 0], sizes = [2, 128], strides = [1, 1]} : vector<2x192xf32> to vector<2x128xf32>
    %98 = arith.addf %96, %97 : vector<2x128xf32>
    %99 = arith.negf %98 : vector<2x128xf32>
    %100 = math.exp %99 : vector<2x128xf32>
    %cst_22 = arith.constant 1.000000e+00 : f32
    %101 = vector.broadcast %cst_22 : f32 to vector<2x128xf32>
    %102 = arith.addf %101, %100 : vector<2x128xf32>
    %103 = arith.divf %101, %102 : vector<2x128xf32>
    %104 = vector.extract_strided_slice %103 {offsets = [0, 0], sizes = [2, 64], strides = [1, 1]} : vector<2x128xf32> to vector<2x64xf32>
    %105 = vector.extract_strided_slice %103 {offsets = [0, 64], sizes = [2, 64], strides = [1, 1]} : vector<2x128xf32> to vector<2x64xf32>
    %106 = vector.extract_strided_slice %36 {offsets = [0, 128], sizes = [2, 64], strides = [1, 1]} : vector<2x192xf32> to vector<2x64xf32>
    %107 = vector.extract_strided_slice %95 {offsets = [0, 128], sizes = [2, 64], strides = [1, 1]} : vector<2x192xf32> to vector<2x64xf32>
    %108 = vector.broadcast %7 : vector<1x64xf32> to vector<2x64xf32>
    %109 = arith.addf %107, %108 : vector<2x64xf32>
    %110 = arith.mulf %104, %109 : vector<2x64xf32>
    %111 = arith.addf %106, %110 : vector<2x64xf32>
    %112 = math.tanh %111 : vector<2x64xf32>
    %cst_23 = arith.constant 1.000000e+00 : f32
    %113 = vector.broadcast %cst_23 : f32 to vector<2x64xf32>
    %114 = arith.subf %113, %105 : vector<2x64xf32>
    %115 = arith.mulf %114, %112 : vector<2x64xf32>
    %116 = arith.mulf %105, %94 : vector<2x64xf32>
    %117 = arith.addf %115, %116 : vector<2x64xf32>
    %cst_24 = arith.constant dense<0.000000e+00> : vector<2x192xf32>
    %118 = tpu.matmul %117, %2, %cst_24 {dimension_numbers = #tpu.dot_dimension_numbers<[1], [0], [0], [1], [0, 0, 1, 1], [], []>} : vector<2x64xf32>, vector<64x192xf32>, vector<2x192xf32> -> vector<2x192xf32>
    %119 = vector.extract_strided_slice %43 {offsets = [0, 0], sizes = [2, 128], strides = [1, 1]} : vector<2x192xf32> to vector<2x128xf32>
    %120 = vector.extract_strided_slice %118 {offsets = [0, 0], sizes = [2, 128], strides = [1, 1]} : vector<2x192xf32> to vector<2x128xf32>
    %121 = arith.addf %119, %120 : vector<2x128xf32>
    %122 = arith.negf %121 : vector<2x128xf32>
    %123 = math.exp %122 : vector<2x128xf32>
    %cst_25 = arith.constant 1.000000e+00 : f32
    %124 = vector.broadcast %cst_25 : f32 to vector<2x128xf32>
    %125 = arith.addf %124, %123 : vector<2x128xf32>
    %126 = arith.divf %124, %125 : vector<2x128xf32>
    %127 = vector.extract_strided_slice %126 {offsets = [0, 0], sizes = [2, 64], strides = [1, 1]} : vector<2x128xf32> to vector<2x64xf32>
    %128 = vector.extract_strided_slice %126 {offsets = [0, 64], sizes = [2, 64], strides = [1, 1]} : vector<2x128xf32> to vector<2x64xf32>
    %129 = vector.extract_strided_slice %43 {offsets = [0, 128], sizes = [2, 64], strides = [1, 1]} : vector<2x192xf32> to vector<2x64xf32>
    %130 = vector.extract_strided_slice %118 {offsets = [0, 128], sizes = [2, 64], strides = [1, 1]} : vector<2x192xf32> to vector<2x64xf32>
    %131 = vector.broadcast %7 : vector<1x64xf32> to vector<2x64xf32>
    %132 = arith.addf %130, %131 : vector<2x64xf32>
    %133 = arith.mulf %127, %132 : vector<2x64xf32>
    %134 = arith.addf %129, %133 : vector<2x64xf32>
    %135 = math.tanh %134 : vector<2x64xf32>
    %cst_26 = arith.constant 1.000000e+00 : f32
    %136 = vector.broadcast %cst_26 : f32 to vector<2x64xf32>
    %137 = arith.subf %136, %128 : vector<2x64xf32>
    %138 = arith.mulf %137, %135 : vector<2x64xf32>
    %139 = arith.mulf %128, %117 : vector<2x64xf32>
    %140 = arith.addf %138, %139 : vector<2x64xf32>
    %cst_27 = arith.constant dense<0.000000e+00> : vector<2x192xf32>
    %141 = tpu.matmul %140, %2, %cst_27 {dimension_numbers = #tpu.dot_dimension_numbers<[1], [0], [0], [1], [0, 0, 1, 1], [], []>} : vector<2x64xf32>, vector<64x192xf32>, vector<2x192xf32> -> vector<2x192xf32>
    %142 = vector.extract_strided_slice %50 {offsets = [0, 0], sizes = [2, 128], strides = [1, 1]} : vector<2x192xf32> to vector<2x128xf32>
    %143 = vector.extract_strided_slice %141 {offsets = [0, 0], sizes = [2, 128], strides = [1, 1]} : vector<2x192xf32> to vector<2x128xf32>
    %144 = arith.addf %142, %143 : vector<2x128xf32>
    %145 = arith.negf %144 : vector<2x128xf32>
    %146 = math.exp %145 : vector<2x128xf32>
    %cst_28 = arith.constant 1.000000e+00 : f32
    %147 = vector.broadcast %cst_28 : f32 to vector<2x128xf32>
    %148 = arith.addf %147, %146 : vector<2x128xf32>
    %149 = arith.divf %147, %148 : vector<2x128xf32>
    %150 = vector.extract_strided_slice %149 {offsets = [0, 0], sizes = [2, 64], strides = [1, 1]} : vector<2x128xf32> to vector<2x64xf32>
    %151 = vector.extract_strided_slice %149 {offsets = [0, 64], sizes = [2, 64], strides = [1, 1]} : vector<2x128xf32> to vector<2x64xf32>
    %152 = vector.extract_strided_slice %50 {offsets = [0, 128], sizes = [2, 64], strides = [1, 1]} : vector<2x192xf32> to vector<2x64xf32>
    %153 = vector.extract_strided_slice %141 {offsets = [0, 128], sizes = [2, 64], strides = [1, 1]} : vector<2x192xf32> to vector<2x64xf32>
    %154 = vector.broadcast %7 : vector<1x64xf32> to vector<2x64xf32>
    %155 = arith.addf %153, %154 : vector<2x64xf32>
    %156 = arith.mulf %150, %155 : vector<2x64xf32>
    %157 = arith.addf %152, %156 : vector<2x64xf32>
    %158 = math.tanh %157 : vector<2x64xf32>
    %cst_29 = arith.constant 1.000000e+00 : f32
    %159 = vector.broadcast %cst_29 : f32 to vector<2x64xf32>
    %160 = arith.subf %159, %151 : vector<2x64xf32>
    %161 = arith.mulf %160, %158 : vector<2x64xf32>
    %162 = arith.mulf %151, %140 : vector<2x64xf32>
    %163 = arith.addf %161, %162 : vector<2x64xf32>
    %cst_30 = arith.constant dense<0.000000e+00> : vector<2x192xf32>
    %164 = tpu.matmul %163, %2, %cst_30 {dimension_numbers = #tpu.dot_dimension_numbers<[1], [0], [0], [1], [0, 0, 1, 1], [], []>} : vector<2x64xf32>, vector<64x192xf32>, vector<2x192xf32> -> vector<2x192xf32>
    %165 = vector.extract_strided_slice %57 {offsets = [0, 0], sizes = [2, 128], strides = [1, 1]} : vector<2x192xf32> to vector<2x128xf32>
    %166 = vector.extract_strided_slice %164 {offsets = [0, 0], sizes = [2, 128], strides = [1, 1]} : vector<2x192xf32> to vector<2x128xf32>
    %167 = arith.addf %165, %166 : vector<2x128xf32>
    %168 = arith.negf %167 : vector<2x128xf32>
    %169 = math.exp %168 : vector<2x128xf32>
    %cst_31 = arith.constant 1.000000e+00 : f32
    %170 = vector.broadcast %cst_31 : f32 to vector<2x128xf32>
    %171 = arith.addf %170, %169 : vector<2x128xf32>
    %172 = arith.divf %170, %171 : vector<2x128xf32>
    %173 = vector.extract_strided_slice %172 {offsets = [0, 0], sizes = [2, 64], strides = [1, 1]} : vector<2x128xf32> to vector<2x64xf32>
    %174 = vector.extract_strided_slice %172 {offsets = [0, 64], sizes = [2, 64], strides = [1, 1]} : vector<2x128xf32> to vector<2x64xf32>
    %175 = vector.extract_strided_slice %57 {offsets = [0, 128], sizes = [2, 64], strides = [1, 1]} : vector<2x192xf32> to vector<2x64xf32>
    %176 = vector.extract_strided_slice %164 {offsets = [0, 128], sizes = [2, 64], strides = [1, 1]} : vector<2x192xf32> to vector<2x64xf32>
    %177 = vector.broadcast %7 : vector<1x64xf32> to vector<2x64xf32>
    %178 = arith.addf %176, %177 : vector<2x64xf32>
    %179 = arith.mulf %173, %178 : vector<2x64xf32>
    %180 = arith.addf %175, %179 : vector<2x64xf32>
    %181 = math.tanh %180 : vector<2x64xf32>
    %cst_32 = arith.constant 1.000000e+00 : f32
    %182 = vector.broadcast %cst_32 : f32 to vector<2x64xf32>
    %183 = arith.subf %182, %174 : vector<2x64xf32>
    %184 = arith.mulf %183, %181 : vector<2x64xf32>
    %185 = arith.mulf %174, %163 : vector<2x64xf32>
    %186 = arith.addf %184, %185 : vector<2x64xf32>
    %cst_33 = arith.constant dense<0.000000e+00> : vector<2x192xf32>
    %187 = tpu.matmul %186, %2, %cst_33 {dimension_numbers = #tpu.dot_dimension_numbers<[1], [0], [0], [1], [0, 0, 1, 1], [], []>} : vector<2x64xf32>, vector<64x192xf32>, vector<2x192xf32> -> vector<2x192xf32>
    %188 = vector.extract_strided_slice %64 {offsets = [0, 0], sizes = [2, 128], strides = [1, 1]} : vector<2x192xf32> to vector<2x128xf32>
    %189 = vector.extract_strided_slice %187 {offsets = [0, 0], sizes = [2, 128], strides = [1, 1]} : vector<2x192xf32> to vector<2x128xf32>
    %190 = arith.addf %188, %189 : vector<2x128xf32>
    %191 = arith.negf %190 : vector<2x128xf32>
    %192 = math.exp %191 : vector<2x128xf32>
    %cst_34 = arith.constant 1.000000e+00 : f32
    %193 = vector.broadcast %cst_34 : f32 to vector<2x128xf32>
    %194 = arith.addf %193, %192 : vector<2x128xf32>
    %195 = arith.divf %193, %194 : vector<2x128xf32>
    %196 = vector.extract_strided_slice %195 {offsets = [0, 0], sizes = [2, 64], strides = [1, 1]} : vector<2x128xf32> to vector<2x64xf32>
    %197 = vector.extract_strided_slice %195 {offsets = [0, 64], sizes = [2, 64], strides = [1, 1]} : vector<2x128xf32> to vector<2x64xf32>
    %198 = vector.extract_strided_slice %64 {offsets = [0, 128], sizes = [2, 64], strides = [1, 1]} : vector<2x192xf32> to vector<2x64xf32>
    %199 = vector.extract_strided_slice %187 {offsets = [0, 128], sizes = [2, 64], strides = [1, 1]} : vector<2x192xf32> to vector<2x64xf32>
    %200 = vector.broadcast %7 : vector<1x64xf32> to vector<2x64xf32>
    %201 = arith.addf %199, %200 : vector<2x64xf32>
    %202 = arith.mulf %196, %201 : vector<2x64xf32>
    %203 = arith.addf %198, %202 : vector<2x64xf32>
    %204 = math.tanh %203 : vector<2x64xf32>
    %cst_35 = arith.constant 1.000000e+00 : f32
    %205 = vector.broadcast %cst_35 : f32 to vector<2x64xf32>
    %206 = arith.subf %205, %197 : vector<2x64xf32>
    %207 = arith.mulf %206, %204 : vector<2x64xf32>
    %208 = arith.mulf %197, %186 : vector<2x64xf32>
    %209 = arith.addf %207, %208 : vector<2x64xf32>
    %cst_36 = arith.constant dense<0.000000e+00> : vector<2x192xf32>
    %210 = tpu.matmul %209, %2, %cst_36 {dimension_numbers = #tpu.dot_dimension_numbers<[1], [0], [0], [1], [0, 0, 1, 1], [], []>} : vector<2x64xf32>, vector<64x192xf32>, vector<2x192xf32> -> vector<2x192xf32>
    %211 = vector.extract_strided_slice %71 {offsets = [0, 0], sizes = [2, 128], strides = [1, 1]} : vector<2x192xf32> to vector<2x128xf32>
    %212 = vector.extract_strided_slice %210 {offsets = [0, 0], sizes = [2, 128], strides = [1, 1]} : vector<2x192xf32> to vector<2x128xf32>
    %213 = arith.addf %211, %212 : vector<2x128xf32>
    %214 = arith.negf %213 : vector<2x128xf32>
    %215 = math.exp %214 : vector<2x128xf32>
    %cst_37 = arith.constant 1.000000e+00 : f32
    %216 = vector.broadcast %cst_37 : f32 to vector<2x128xf32>
    %217 = arith.addf %216, %215 : vector<2x128xf32>
    %218 = arith.divf %216, %217 : vector<2x128xf32>
    %219 = vector.extract_strided_slice %218 {offsets = [0, 0], sizes = [2, 64], strides = [1, 1]} : vector<2x128xf32> to vector<2x64xf32>
    %220 = vector.extract_strided_slice %218 {offsets = [0, 64], sizes = [2, 64], strides = [1, 1]} : vector<2x128xf32> to vector<2x64xf32>
    %221 = vector.extract_strided_slice %71 {offsets = [0, 128], sizes = [2, 64], strides = [1, 1]} : vector<2x192xf32> to vector<2x64xf32>
    %222 = vector.extract_strided_slice %210 {offsets = [0, 128], sizes = [2, 64], strides = [1, 1]} : vector<2x192xf32> to vector<2x64xf32>
    %223 = vector.broadcast %7 : vector<1x64xf32> to vector<2x64xf32>
    %224 = arith.addf %222, %223 : vector<2x64xf32>
    %225 = arith.mulf %219, %224 : vector<2x64xf32>
    %226 = arith.addf %221, %225 : vector<2x64xf32>
    %227 = math.tanh %226 : vector<2x64xf32>
    %cst_38 = arith.constant 1.000000e+00 : f32
    %228 = vector.broadcast %cst_38 : f32 to vector<2x64xf32>
    %229 = arith.subf %228, %220 : vector<2x64xf32>
    %230 = arith.mulf %229, %227 : vector<2x64xf32>
    %231 = arith.mulf %220, %209 : vector<2x64xf32>
    %232 = arith.addf %230, %231 : vector<2x64xf32>
    %cst_39 = arith.constant dense<0.000000e+00> : vector<2x192xf32>
    %233 = tpu.matmul %232, %2, %cst_39 {dimension_numbers = #tpu.dot_dimension_numbers<[1], [0], [0], [1], [0, 0, 1, 1], [], []>} : vector<2x64xf32>, vector<64x192xf32>, vector<2x192xf32> -> vector<2x192xf32>
    %234 = vector.extract_strided_slice %78 {offsets = [0, 0], sizes = [2, 128], strides = [1, 1]} : vector<2x192xf32> to vector<2x128xf32>
    %235 = vector.extract_strided_slice %233 {offsets = [0, 0], sizes = [2, 128], strides = [1, 1]} : vector<2x192xf32> to vector<2x128xf32>
    %236 = arith.addf %234, %235 : vector<2x128xf32>
    %237 = arith.negf %236 : vector<2x128xf32>
    %238 = math.exp %237 : vector<2x128xf32>
    %cst_40 = arith.constant 1.000000e+00 : f32
    %239 = vector.broadcast %cst_40 : f32 to vector<2x128xf32>
    %240 = arith.addf %239, %238 : vector<2x128xf32>
    %241 = arith.divf %239, %240 : vector<2x128xf32>
    %242 = vector.extract_strided_slice %241 {offsets = [0, 0], sizes = [2, 64], strides = [1, 1]} : vector<2x128xf32> to vector<2x64xf32>
    %243 = vector.extract_strided_slice %241 {offsets = [0, 64], sizes = [2, 64], strides = [1, 1]} : vector<2x128xf32> to vector<2x64xf32>
    %244 = vector.extract_strided_slice %78 {offsets = [0, 128], sizes = [2, 64], strides = [1, 1]} : vector<2x192xf32> to vector<2x64xf32>
    %245 = vector.extract_strided_slice %233 {offsets = [0, 128], sizes = [2, 64], strides = [1, 1]} : vector<2x192xf32> to vector<2x64xf32>
    %246 = vector.broadcast %7 : vector<1x64xf32> to vector<2x64xf32>
    %247 = arith.addf %245, %246 : vector<2x64xf32>
    %248 = arith.mulf %242, %247 : vector<2x64xf32>
    %249 = arith.addf %244, %248 : vector<2x64xf32>
    %250 = math.tanh %249 : vector<2x64xf32>
    %cst_41 = arith.constant 1.000000e+00 : f32
    %251 = vector.broadcast %cst_41 : f32 to vector<2x64xf32>
    %252 = arith.subf %251, %243 : vector<2x64xf32>
    %253 = arith.mulf %252, %250 : vector<2x64xf32>
    %254 = arith.mulf %243, %232 : vector<2x64xf32>
    %255 = arith.addf %253, %254 : vector<2x64xf32>
    %256 = tpu.concatenate %94, %255 in 1 : vector<2x64xf32>, vector<2x64xf32> -> vector<2x128xf32>
    %cst_42 = arith.constant dense<0.000000e+00> : vector<2x192xf32>
    %257 = tpu.matmul %256, %3, %cst_42 {dimension_numbers = #tpu.dot_dimension_numbers<[1], [0], [0], [1], [0, 0, 1, 1], [], []>} : vector<2x128xf32>, vector<128x192xf32>, vector<2x192xf32> -> vector<2x192xf32>
    %258 = vector.broadcast %8 : vector<1x192xf32> to vector<2x192xf32>
    %259 = arith.addf %257, %258 : vector<2x192xf32>
    %260 = tpu.concatenate %117, %232 in 1 : vector<2x64xf32>, vector<2x64xf32> -> vector<2x128xf32>
    %cst_43 = arith.constant dense<0.000000e+00> : vector<2x192xf32>
    %261 = tpu.matmul %260, %3, %cst_43 {dimension_numbers = #tpu.dot_dimension_numbers<[1], [0], [0], [1], [0, 0, 1, 1], [], []>} : vector<2x128xf32>, vector<128x192xf32>, vector<2x192xf32> -> vector<2x192xf32>
    %262 = vector.broadcast %8 : vector<1x192xf32> to vector<2x192xf32>
    %263 = arith.addf %261, %262 : vector<2x192xf32>
    %264 = tpu.concatenate %140, %209 in 1 : vector<2x64xf32>, vector<2x64xf32> -> vector<2x128xf32>
    %cst_44 = arith.constant dense<0.000000e+00> : vector<2x192xf32>
    %265 = tpu.matmul %264, %3, %cst_44 {dimension_numbers = #tpu.dot_dimension_numbers<[1], [0], [0], [1], [0, 0, 1, 1], [], []>} : vector<2x128xf32>, vector<128x192xf32>, vector<2x192xf32> -> vector<2x192xf32>
    %266 = vector.broadcast %8 : vector<1x192xf32> to vector<2x192xf32>
    %267 = arith.addf %265, %266 : vector<2x192xf32>
    %268 = tpu.concatenate %163, %186 in 1 : vector<2x64xf32>, vector<2x64xf32> -> vector<2x128xf32>
    %cst_45 = arith.constant dense<0.000000e+00> : vector<2x192xf32>
    %269 = tpu.matmul %268, %3, %cst_45 {dimension_numbers = #tpu.dot_dimension_numbers<[1], [0], [0], [1], [0, 0, 1, 1], [], []>} : vector<2x128xf32>, vector<128x192xf32>, vector<2x192xf32> -> vector<2x192xf32>
    %270 = vector.broadcast %8 : vector<1x192xf32> to vector<2x192xf32>
    %271 = arith.addf %269, %270 : vector<2x192xf32>
    %272 = tpu.concatenate %186, %163 in 1 : vector<2x64xf32>, vector<2x64xf32> -> vector<2x128xf32>
    %cst_46 = arith.constant dense<0.000000e+00> : vector<2x192xf32>
    %273 = tpu.matmul %272, %3, %cst_46 {dimension_numbers = #tpu.dot_dimension_numbers<[1], [0], [0], [1], [0, 0, 1, 1], [], []>} : vector<2x128xf32>, vector<128x192xf32>, vector<2x192xf32> -> vector<2x192xf32>
    %274 = vector.broadcast %8 : vector<1x192xf32> to vector<2x192xf32>
    %275 = arith.addf %273, %274 : vector<2x192xf32>
    %276 = tpu.concatenate %209, %140 in 1 : vector<2x64xf32>, vector<2x64xf32> -> vector<2x128xf32>
    %cst_47 = arith.constant dense<0.000000e+00> : vector<2x192xf32>
    %277 = tpu.matmul %276, %3, %cst_47 {dimension_numbers = #tpu.dot_dimension_numbers<[1], [0], [0], [1], [0, 0, 1, 1], [], []>} : vector<2x128xf32>, vector<128x192xf32>, vector<2x192xf32> -> vector<2x192xf32>
    %278 = vector.broadcast %8 : vector<1x192xf32> to vector<2x192xf32>
    %279 = arith.addf %277, %278 : vector<2x192xf32>
    %280 = tpu.concatenate %232, %117 in 1 : vector<2x64xf32>, vector<2x64xf32> -> vector<2x128xf32>
    %cst_48 = arith.constant dense<0.000000e+00> : vector<2x192xf32>
    %281 = tpu.matmul %280, %3, %cst_48 {dimension_numbers = #tpu.dot_dimension_numbers<[1], [0], [0], [1], [0, 0, 1, 1], [], []>} : vector<2x128xf32>, vector<128x192xf32>, vector<2x192xf32> -> vector<2x192xf32>
    %282 = vector.broadcast %8 : vector<1x192xf32> to vector<2x192xf32>
    %283 = arith.addf %281, %282 : vector<2x192xf32>
    %284 = tpu.concatenate %255, %94 in 1 : vector<2x64xf32>, vector<2x64xf32> -> vector<2x128xf32>
    %cst_49 = arith.constant dense<0.000000e+00> : vector<2x192xf32>
    %285 = tpu.matmul %284, %3, %cst_49 {dimension_numbers = #tpu.dot_dimension_numbers<[1], [0], [0], [1], [0, 0, 1, 1], [], []>} : vector<2x128xf32>, vector<128x192xf32>, vector<2x192xf32> -> vector<2x192xf32>
    %286 = vector.broadcast %8 : vector<1x192xf32> to vector<2x192xf32>
    %287 = arith.addf %285, %286 : vector<2x192xf32>
    %288 = vector.extract_strided_slice %259 {offsets = [0, 0], sizes = [2, 128], strides = [1, 1]} : vector<2x192xf32> to vector<2x128xf32>
    %289 = arith.negf %288 : vector<2x128xf32>
    %290 = math.exp %289 : vector<2x128xf32>
    %cst_50 = arith.constant 1.000000e+00 : f32
    %291 = vector.broadcast %cst_50 : f32 to vector<2x128xf32>
    %292 = arith.addf %291, %290 : vector<2x128xf32>
    %293 = arith.divf %291, %292 : vector<2x128xf32>
    %294 = vector.extract_strided_slice %293 {offsets = [0, 0], sizes = [2, 64], strides = [1, 1]} : vector<2x128xf32> to vector<2x64xf32>
    %295 = vector.extract_strided_slice %293 {offsets = [0, 64], sizes = [2, 64], strides = [1, 1]} : vector<2x128xf32> to vector<2x64xf32>
    %296 = vector.extract_strided_slice %259 {offsets = [0, 128], sizes = [2, 64], strides = [1, 1]} : vector<2x192xf32> to vector<2x64xf32>
    %297 = vector.broadcast %9 : vector<1x64xf32> to vector<2x64xf32>
    %298 = arith.mulf %294, %297 : vector<2x64xf32>
    %299 = arith.addf %296, %298 : vector<2x64xf32>
    %300 = math.tanh %299 : vector<2x64xf32>
    %cst_51 = arith.constant 1.000000e+00 : f32
    %301 = vector.broadcast %cst_51 : f32 to vector<2x64xf32>
    %302 = arith.subf %301, %295 : vector<2x64xf32>
    %303 = arith.mulf %302, %300 : vector<2x64xf32>
    %cst_52 = arith.constant dense<0.000000e+00> : vector<2x192xf32>
    %304 = tpu.matmul %303, %4, %cst_52 {dimension_numbers = #tpu.dot_dimension_numbers<[1], [0], [0], [1], [0, 0, 1, 1], [], []>} : vector<2x64xf32>, vector<64x192xf32>, vector<2x192xf32> -> vector<2x192xf32>
    %305 = vector.extract_strided_slice %263 {offsets = [0, 0], sizes = [2, 128], strides = [1, 1]} : vector<2x192xf32> to vector<2x128xf32>
    %306 = vector.extract_strided_slice %304 {offsets = [0, 0], sizes = [2, 128], strides = [1, 1]} : vector<2x192xf32> to vector<2x128xf32>
    %307 = arith.addf %305, %306 : vector<2x128xf32>
    %308 = arith.negf %307 : vector<2x128xf32>
    %309 = math.exp %308 : vector<2x128xf32>
    %cst_53 = arith.constant 1.000000e+00 : f32
    %310 = vector.broadcast %cst_53 : f32 to vector<2x128xf32>
    %311 = arith.addf %310, %309 : vector<2x128xf32>
    %312 = arith.divf %310, %311 : vector<2x128xf32>
    %313 = vector.extract_strided_slice %312 {offsets = [0, 0], sizes = [2, 64], strides = [1, 1]} : vector<2x128xf32> to vector<2x64xf32>
    %314 = vector.extract_strided_slice %312 {offsets = [0, 64], sizes = [2, 64], strides = [1, 1]} : vector<2x128xf32> to vector<2x64xf32>
    %315 = vector.extract_strided_slice %263 {offsets = [0, 128], sizes = [2, 64], strides = [1, 1]} : vector<2x192xf32> to vector<2x64xf32>
    %316 = vector.extract_strided_slice %304 {offsets = [0, 128], sizes = [2, 64], strides = [1, 1]} : vector<2x192xf32> to vector<2x64xf32>
    %317 = vector.broadcast %9 : vector<1x64xf32> to vector<2x64xf32>
    %318 = arith.addf %316, %317 : vector<2x64xf32>
    %319 = arith.mulf %313, %318 : vector<2x64xf32>
    %320 = arith.addf %315, %319 : vector<2x64xf32>
    %321 = math.tanh %320 : vector<2x64xf32>
    %cst_54 = arith.constant 1.000000e+00 : f32
    %322 = vector.broadcast %cst_54 : f32 to vector<2x64xf32>
    %323 = arith.subf %322, %314 : vector<2x64xf32>
    %324 = arith.mulf %323, %321 : vector<2x64xf32>
    %325 = arith.mulf %314, %303 : vector<2x64xf32>
    %326 = arith.addf %324, %325 : vector<2x64xf32>
    %cst_55 = arith.constant dense<0.000000e+00> : vector<2x192xf32>
    %327 = tpu.matmul %326, %4, %cst_55 {dimension_numbers = #tpu.dot_dimension_numbers<[1], [0], [0], [1], [0, 0, 1, 1], [], []>} : vector<2x64xf32>, vector<64x192xf32>, vector<2x192xf32> -> vector<2x192xf32>
    %328 = vector.extract_strided_slice %267 {offsets = [0, 0], sizes = [2, 128], strides = [1, 1]} : vector<2x192xf32> to vector<2x128xf32>
    %329 = vector.extract_strided_slice %327 {offsets = [0, 0], sizes = [2, 128], strides = [1, 1]} : vector<2x192xf32> to vector<2x128xf32>
    %330 = arith.addf %328, %329 : vector<2x128xf32>
    %331 = arith.negf %330 : vector<2x128xf32>
    %332 = math.exp %331 : vector<2x128xf32>
    %cst_56 = arith.constant 1.000000e+00 : f32
    %333 = vector.broadcast %cst_56 : f32 to vector<2x128xf32>
    %334 = arith.addf %333, %332 : vector<2x128xf32>
    %335 = arith.divf %333, %334 : vector<2x128xf32>
    %336 = vector.extract_strided_slice %335 {offsets = [0, 0], sizes = [2, 64], strides = [1, 1]} : vector<2x128xf32> to vector<2x64xf32>
    %337 = vector.extract_strided_slice %335 {offsets = [0, 64], sizes = [2, 64], strides = [1, 1]} : vector<2x128xf32> to vector<2x64xf32>
    %338 = vector.extract_strided_slice %267 {offsets = [0, 128], sizes = [2, 64], strides = [1, 1]} : vector<2x192xf32> to vector<2x64xf32>
    %339 = vector.extract_strided_slice %327 {offsets = [0, 128], sizes = [2, 64], strides = [1, 1]} : vector<2x192xf32> to vector<2x64xf32>
    %340 = vector.broadcast %9 : vector<1x64xf32> to vector<2x64xf32>
    %341 = arith.addf %339, %340 : vector<2x64xf32>
    %342 = arith.mulf %336, %341 : vector<2x64xf32>
    %343 = arith.addf %338, %342 : vector<2x64xf32>
    %344 = math.tanh %343 : vector<2x64xf32>
    %cst_57 = arith.constant 1.000000e+00 : f32
    %345 = vector.broadcast %cst_57 : f32 to vector<2x64xf32>
    %346 = arith.subf %345, %337 : vector<2x64xf32>
    %347 = arith.mulf %346, %344 : vector<2x64xf32>
    %348 = arith.mulf %337, %326 : vector<2x64xf32>
    %349 = arith.addf %347, %348 : vector<2x64xf32>
    %cst_58 = arith.constant dense<0.000000e+00> : vector<2x192xf32>
    %350 = tpu.matmul %349, %4, %cst_58 {dimension_numbers = #tpu.dot_dimension_numbers<[1], [0], [0], [1], [0, 0, 1, 1], [], []>} : vector<2x64xf32>, vector<64x192xf32>, vector<2x192xf32> -> vector<2x192xf32>
    %351 = vector.extract_strided_slice %271 {offsets = [0, 0], sizes = [2, 128], strides = [1, 1]} : vector<2x192xf32> to vector<2x128xf32>
    %352 = vector.extract_strided_slice %350 {offsets = [0, 0], sizes = [2, 128], strides = [1, 1]} : vector<2x192xf32> to vector<2x128xf32>
    %353 = arith.addf %351, %352 : vector<2x128xf32>
    %354 = arith.negf %353 : vector<2x128xf32>
    %355 = math.exp %354 : vector<2x128xf32>
    %cst_59 = arith.constant 1.000000e+00 : f32
    %356 = vector.broadcast %cst_59 : f32 to vector<2x128xf32>
    %357 = arith.addf %356, %355 : vector<2x128xf32>
    %358 = arith.divf %356, %357 : vector<2x128xf32>
    %359 = vector.extract_strided_slice %358 {offsets = [0, 0], sizes = [2, 64], strides = [1, 1]} : vector<2x128xf32> to vector<2x64xf32>
    %360 = vector.extract_strided_slice %358 {offsets = [0, 64], sizes = [2, 64], strides = [1, 1]} : vector<2x128xf32> to vector<2x64xf32>
    %361 = vector.extract_strided_slice %271 {offsets = [0, 128], sizes = [2, 64], strides = [1, 1]} : vector<2x192xf32> to vector<2x64xf32>
    %362 = vector.extract_strided_slice %350 {offsets = [0, 128], sizes = [2, 64], strides = [1, 1]} : vector<2x192xf32> to vector<2x64xf32>
    %363 = vector.broadcast %9 : vector<1x64xf32> to vector<2x64xf32>
    %364 = arith.addf %362, %363 : vector<2x64xf32>
    %365 = arith.mulf %359, %364 : vector<2x64xf32>
    %366 = arith.addf %361, %365 : vector<2x64xf32>
    %367 = math.tanh %366 : vector<2x64xf32>
    %cst_60 = arith.constant 1.000000e+00 : f32
    %368 = vector.broadcast %cst_60 : f32 to vector<2x64xf32>
    %369 = arith.subf %368, %360 : vector<2x64xf32>
    %370 = arith.mulf %369, %367 : vector<2x64xf32>
    %371 = arith.mulf %360, %349 : vector<2x64xf32>
    %372 = arith.addf %370, %371 : vector<2x64xf32>
    %cst_61 = arith.constant dense<0.000000e+00> : vector<2x192xf32>
    %373 = tpu.matmul %372, %4, %cst_61 {dimension_numbers = #tpu.dot_dimension_numbers<[1], [0], [0], [1], [0, 0, 1, 1], [], []>} : vector<2x64xf32>, vector<64x192xf32>, vector<2x192xf32> -> vector<2x192xf32>
    %374 = vector.extract_strided_slice %275 {offsets = [0, 0], sizes = [2, 128], strides = [1, 1]} : vector<2x192xf32> to vector<2x128xf32>
    %375 = vector.extract_strided_slice %373 {offsets = [0, 0], sizes = [2, 128], strides = [1, 1]} : vector<2x192xf32> to vector<2x128xf32>
    %376 = arith.addf %374, %375 : vector<2x128xf32>
    %377 = arith.negf %376 : vector<2x128xf32>
    %378 = math.exp %377 : vector<2x128xf32>
    %cst_62 = arith.constant 1.000000e+00 : f32
    %379 = vector.broadcast %cst_62 : f32 to vector<2x128xf32>
    %380 = arith.addf %379, %378 : vector<2x128xf32>
    %381 = arith.divf %379, %380 : vector<2x128xf32>
    %382 = vector.extract_strided_slice %381 {offsets = [0, 0], sizes = [2, 64], strides = [1, 1]} : vector<2x128xf32> to vector<2x64xf32>
    %383 = vector.extract_strided_slice %381 {offsets = [0, 64], sizes = [2, 64], strides = [1, 1]} : vector<2x128xf32> to vector<2x64xf32>
    %384 = vector.extract_strided_slice %275 {offsets = [0, 128], sizes = [2, 64], strides = [1, 1]} : vector<2x192xf32> to vector<2x64xf32>
    %385 = vector.extract_strided_slice %373 {offsets = [0, 128], sizes = [2, 64], strides = [1, 1]} : vector<2x192xf32> to vector<2x64xf32>
    %386 = vector.broadcast %9 : vector<1x64xf32> to vector<2x64xf32>
    %387 = arith.addf %385, %386 : vector<2x64xf32>
    %388 = arith.mulf %382, %387 : vector<2x64xf32>
    %389 = arith.addf %384, %388 : vector<2x64xf32>
    %390 = math.tanh %389 : vector<2x64xf32>
    %cst_63 = arith.constant 1.000000e+00 : f32
    %391 = vector.broadcast %cst_63 : f32 to vector<2x64xf32>
    %392 = arith.subf %391, %383 : vector<2x64xf32>
    %393 = arith.mulf %392, %390 : vector<2x64xf32>
    %394 = arith.mulf %383, %372 : vector<2x64xf32>
    %395 = arith.addf %393, %394 : vector<2x64xf32>
    %cst_64 = arith.constant dense<0.000000e+00> : vector<2x192xf32>
    %396 = tpu.matmul %395, %4, %cst_64 {dimension_numbers = #tpu.dot_dimension_numbers<[1], [0], [0], [1], [0, 0, 1, 1], [], []>} : vector<2x64xf32>, vector<64x192xf32>, vector<2x192xf32> -> vector<2x192xf32>
    %397 = vector.extract_strided_slice %279 {offsets = [0, 0], sizes = [2, 128], strides = [1, 1]} : vector<2x192xf32> to vector<2x128xf32>
    %398 = vector.extract_strided_slice %396 {offsets = [0, 0], sizes = [2, 128], strides = [1, 1]} : vector<2x192xf32> to vector<2x128xf32>
    %399 = arith.addf %397, %398 : vector<2x128xf32>
    %400 = arith.negf %399 : vector<2x128xf32>
    %401 = math.exp %400 : vector<2x128xf32>
    %cst_65 = arith.constant 1.000000e+00 : f32
    %402 = vector.broadcast %cst_65 : f32 to vector<2x128xf32>
    %403 = arith.addf %402, %401 : vector<2x128xf32>
    %404 = arith.divf %402, %403 : vector<2x128xf32>
    %405 = vector.extract_strided_slice %404 {offsets = [0, 0], sizes = [2, 64], strides = [1, 1]} : vector<2x128xf32> to vector<2x64xf32>
    %406 = vector.extract_strided_slice %404 {offsets = [0, 64], sizes = [2, 64], strides = [1, 1]} : vector<2x128xf32> to vector<2x64xf32>
    %407 = vector.extract_strided_slice %279 {offsets = [0, 128], sizes = [2, 64], strides = [1, 1]} : vector<2x192xf32> to vector<2x64xf32>
    %408 = vector.extract_strided_slice %396 {offsets = [0, 128], sizes = [2, 64], strides = [1, 1]} : vector<2x192xf32> to vector<2x64xf32>
    %409 = vector.broadcast %9 : vector<1x64xf32> to vector<2x64xf32>
    %410 = arith.addf %408, %409 : vector<2x64xf32>
    %411 = arith.mulf %405, %410 : vector<2x64xf32>
    %412 = arith.addf %407, %411 : vector<2x64xf32>
    %413 = math.tanh %412 : vector<2x64xf32>
    %cst_66 = arith.constant 1.000000e+00 : f32
    %414 = vector.broadcast %cst_66 : f32 to vector<2x64xf32>
    %415 = arith.subf %414, %406 : vector<2x64xf32>
    %416 = arith.mulf %415, %413 : vector<2x64xf32>
    %417 = arith.mulf %406, %395 : vector<2x64xf32>
    %418 = arith.addf %416, %417 : vector<2x64xf32>
    %cst_67 = arith.constant dense<0.000000e+00> : vector<2x192xf32>
    %419 = tpu.matmul %418, %4, %cst_67 {dimension_numbers = #tpu.dot_dimension_numbers<[1], [0], [0], [1], [0, 0, 1, 1], [], []>} : vector<2x64xf32>, vector<64x192xf32>, vector<2x192xf32> -> vector<2x192xf32>
    %420 = vector.extract_strided_slice %283 {offsets = [0, 0], sizes = [2, 128], strides = [1, 1]} : vector<2x192xf32> to vector<2x128xf32>
    %421 = vector.extract_strided_slice %419 {offsets = [0, 0], sizes = [2, 128], strides = [1, 1]} : vector<2x192xf32> to vector<2x128xf32>
    %422 = arith.addf %420, %421 : vector<2x128xf32>
    %423 = arith.negf %422 : vector<2x128xf32>
    %424 = math.exp %423 : vector<2x128xf32>
    %cst_68 = arith.constant 1.000000e+00 : f32
    %425 = vector.broadcast %cst_68 : f32 to vector<2x128xf32>
    %426 = arith.addf %425, %424 : vector<2x128xf32>
    %427 = arith.divf %425, %426 : vector<2x128xf32>
    %428 = vector.extract_strided_slice %427 {offsets = [0, 0], sizes = [2, 64], strides = [1, 1]} : vector<2x128xf32> to vector<2x64xf32>
    %429 = vector.extract_strided_slice %427 {offsets = [0, 64], sizes = [2, 64], strides = [1, 1]} : vector<2x128xf32> to vector<2x64xf32>
    %430 = vector.extract_strided_slice %283 {offsets = [0, 128], sizes = [2, 64], strides = [1, 1]} : vector<2x192xf32> to vector<2x64xf32>
    %431 = vector.extract_strided_slice %419 {offsets = [0, 128], sizes = [2, 64], strides = [1, 1]} : vector<2x192xf32> to vector<2x64xf32>
    %432 = vector.broadcast %9 : vector<1x64xf32> to vector<2x64xf32>
    %433 = arith.addf %431, %432 : vector<2x64xf32>
    %434 = arith.mulf %428, %433 : vector<2x64xf32>
    %435 = arith.addf %430, %434 : vector<2x64xf32>
    %436 = math.tanh %435 : vector<2x64xf32>
    %cst_69 = arith.constant 1.000000e+00 : f32
    %437 = vector.broadcast %cst_69 : f32 to vector<2x64xf32>
    %438 = arith.subf %437, %429 : vector<2x64xf32>
    %439 = arith.mulf %438, %436 : vector<2x64xf32>
    %440 = arith.mulf %429, %418 : vector<2x64xf32>
    %441 = arith.addf %439, %440 : vector<2x64xf32>
    %cst_70 = arith.constant dense<0.000000e+00> : vector<2x192xf32>
    %442 = tpu.matmul %441, %4, %cst_70 {dimension_numbers = #tpu.dot_dimension_numbers<[1], [0], [0], [1], [0, 0, 1, 1], [], []>} : vector<2x64xf32>, vector<64x192xf32>, vector<2x192xf32> -> vector<2x192xf32>
    %443 = vector.extract_strided_slice %287 {offsets = [0, 0], sizes = [2, 128], strides = [1, 1]} : vector<2x192xf32> to vector<2x128xf32>
    %444 = vector.extract_strided_slice %442 {offsets = [0, 0], sizes = [2, 128], strides = [1, 1]} : vector<2x192xf32> to vector<2x128xf32>
    %445 = arith.addf %443, %444 : vector<2x128xf32>
    %446 = arith.negf %445 : vector<2x128xf32>
    %447 = math.exp %446 : vector<2x128xf32>
    %cst_71 = arith.constant 1.000000e+00 : f32
    %448 = vector.broadcast %cst_71 : f32 to vector<2x128xf32>
    %449 = arith.addf %448, %447 : vector<2x128xf32>
    %450 = arith.divf %448, %449 : vector<2x128xf32>
    %451 = vector.extract_strided_slice %450 {offsets = [0, 0], sizes = [2, 64], strides = [1, 1]} : vector<2x128xf32> to vector<2x64xf32>
    %452 = vector.extract_strided_slice %450 {offsets = [0, 64], sizes = [2, 64], strides = [1, 1]} : vector<2x128xf32> to vector<2x64xf32>
    %453 = vector.extract_strided_slice %287 {offsets = [0, 128], sizes = [2, 64], strides = [1, 1]} : vector<2x192xf32> to vector<2x64xf32>
    %454 = vector.extract_strided_slice %442 {offsets = [0, 128], sizes = [2, 64], strides = [1, 1]} : vector<2x192xf32> to vector<2x64xf32>
    %455 = vector.broadcast %9 : vector<1x64xf32> to vector<2x64xf32>
    %456 = arith.addf %454, %455 : vector<2x64xf32>
    %457 = arith.mulf %451, %456 : vector<2x64xf32>
    %458 = arith.addf %453, %457 : vector<2x64xf32>
    %459 = math.tanh %458 : vector<2x64xf32>
    %cst_72 = arith.constant 1.000000e+00 : f32
    %460 = vector.broadcast %cst_72 : f32 to vector<2x64xf32>
    %461 = arith.subf %460, %452 : vector<2x64xf32>
    %462 = arith.mulf %461, %459 : vector<2x64xf32>
    %463 = arith.mulf %452, %441 : vector<2x64xf32>
    %464 = arith.addf %462, %463 : vector<2x64xf32>
    %465 = vector.extract_strided_slice %464 {offsets = [0, 0], sizes = [2, 32], strides = [1, 1]} : vector<2x64xf32> to vector<2x32xf32>
    %466 = vector.extract_strided_slice %303 {offsets = [0, 32], sizes = [2, 32], strides = [1, 1]} : vector<2x64xf32> to vector<2x32xf32>
    %467 = tpu.concatenate %465, %466 in 1 : vector<2x32xf32>, vector<2x32xf32> -> vector<2x64xf32>
    %cst_73 = arith.constant dense<0.000000e+00> : vector<2x16xf32>
    %468 = tpu.matmul %467, %5, %cst_73 {dimension_numbers = #tpu.dot_dimension_numbers<[1], [0], [0], [1], [0, 0, 1, 1], [], []>} : vector<2x64xf32>, vector<64x16xf32>, vector<2x16xf32> -> vector<2x16xf32>
    %469 = vector.broadcast %10 : vector<1x16xf32> to vector<2x16xf32>
    %470 = arith.addf %468, %469 : vector<2x16xf32>
    %c0_74 = arith.constant 0 : index
    %c0_75 = arith.constant 0 : index
    %471 = vector.load %arg2[%c0_74, %c0_75] : memref<2x16xf32, #tpu.memory_space<vmem>>, vector<2x16xf32>
    tpu.vector_store %arg2[%c0_74, %c0_75], %470 {strides = array<i32>} : memref<2x16xf32, #tpu.memory_space<vmem>>, vector<2x16xf32>,
    return
  }
}

</mosaic_0001>

<llo_original>
// kernel: simple_midi_rnn_forward.1
$region0: #{simple_midi_rnn_forward.1}
  #allocation0 [shape = 'u32[]', space=smem, size = 0x4, offset = 0x4, fixed_abs, tag = 'smem constant byte address 0x4 - core index']
  #allocation1 [shape = 'u32[144,128]{1,0:T(1,128)}', space=vmem, size = 0x12000, scoped, tag = 'internal scratch']
  %s0 = inlined_call_operand.vmem [shape: f32[2,16,8], index: 0, kind: input, shape index: {}]
  %s1 = inlined_call_operand.vmem [shape: f32[360,192], index: 1, kind: input, shape index: {}]
  %s2 = inlined_call_operand.hbm [shape: f32[2,16], index: 2, kind: output, shape index: {}]
  %s3 = sld [smem:[#allocation0]]
  $region18: #{simple_midi_rnn_forward.1} parent=0
    _
  %s5 = ssub.s32 1, %s3
  %s6 = scalar_select 0, %s5, %s3
  $region1: #{simple_midi_rnn_forward.1} parent=0
    #allocation2 [shape = 'u8[1024]{0}', space=vmem, size = 0x400, scoped, tag = 'output window, operand 0, single buffered']
    #allocation3 [shape = 's32[1]{0}', space=sflag, size = 0x4, scoped, tag = 'scoped memory for simple_midi_rnn_forward.1']
    %7 = vsyncpa [#allocation3], 0
    // Predicated region
    $region2: #{simple_midi_rnn_forward.1} parent=1 // pred_check
      _
    $region3: #{simple_midi_rnn_forward.1} parent=1 // pred_check_branch
      %9 = sbr.rel (0) target = $region5
    $region4: #{simple_midi_rnn_forward.1} parent=1 // pred_region
      _
    $region5: #{simple_midi_rnn_forward.1} parent=1 // pred_fallthru
      _
    // Predicated region
    $region6: #{simple_midi_rnn_forward.1} parent=1 // pred_check
      _
    $region7: #{simple_midi_rnn_forward.1} parent=1 // pred_check_branch
      %11 = sbr.rel (0) target = $region9
    $region8: #{simple_midi_rnn_forward.1} parent=1 // pred_region
      _
    $region9: #{simple_midi_rnn_forward.1} parent=1 // pred_fallthru
      _
    %v12 = vld [vmem:[%s1] sm:$0xff]
    %v13 = vld [vmem:[%s1 + $0x8] sm:$0xff]
    %v14 = vld [vmem:[%s1 + $0x10] sm:$0xff]
    %v15 = vld [vmem:[%s1 + $0x18] sm:$0xff]
    %v16 = vld [vmem:[%s1 + $0x20] sm:$0xff]
    %v17 = vld [vmem:[%s1 + $0x28] sm:$0xff]
    %v18 = vld [vmem:[%s1 + $0x30] sm:$0xff]
    %v19 = vld [vmem:[%s1 + $0x38] sm:$0xff]
    %v20 = vld [vmem:[%s1 + $0x40] sm:$0xff]
    %v21 = vld [vmem:[%s1 + $0x48] sm:$0xff]
    %v22 = vld [vmem:[%s1 + $0x50] sm:$0xff]
    %v23 = vld [vmem:[%s1 + $0x58] sm:$0xff]
    %v24 = vld [vmem:[%s1 + $0x60] sm:$0xff]
    %v25 = vld [vmem:[%s1 + $0x68] sm:$0xff]
    %v26 = vld [vmem:[%s1 + $0x70] sm:$0xff]
    %v27 = vld [vmem:[%s1 + $0x78] sm:$0xff]
    %v28 = vld [vmem:[%s1 + $0x80] sm:$0xff]
    %v29 = vld [vmem:[%s1 + $0x88] sm:$0xff]
    %v30 = vld [vmem:[%s1 + $0x90] sm:$0xff]
    %v31 = vld [vmem:[%s1 + $0x98] sm:$0xff]
    %v32 = vld [vmem:[%s1 + $0xa0] sm:$0xff]
    %v33 = vld [vmem:[%s1 + $0xa8] sm:$0xff]
    %v34 = vld [vmem:[%s1 + $0xb0] sm:$0xff]
    %v35 = vld [vmem:[%s1 + $0xb8] sm:$0xff]
    %v36 = vld [vmem:[%s1 + $0xc0] sm:$0xff]
    %v37 = vld [vmem:[%s1 + $0xc8] sm:$0xff]
    %v38 = vld [vmem:[%s1 + $0xd0] sm:$0xff]
    %v39 = vld [vmem:[%s1 + $0xd8] sm:$0xff]
    %v40 = vld [vmem:[%s1 + $0xe0] sm:$0xff]
    %v41 = vld [vmem:[%s1 + $0xe8] sm:$0xff]
    %v42 = vld [vmem:[%s1 + $0xf0] sm:$0xff]
    %v43 = vld [vmem:[%s1 + $0xf8] sm:$0xff]
    %v44 = vld [vmem:[%s1 + $0x100] sm:$0xff]
    %v45 = vld [vmem:[%s1 + $0x108] sm:$0xff]
    %v46 = vld [vmem:[%s1 + $0x110] sm:$0xff]
    %v47 = vld [vmem:[%s1 + $0x118] sm:$0xff]
    %v48 = vld [vmem:[%s1 + $0x120] sm:$0xff]
    %v49 = vld [vmem:[%s1 + $0x128] sm:$0xff]
    %v50 = vld [vmem:[%s1 + $0x130] sm:$0xff]
    %v51 = vld [vmem:[%s1 + $0x138] sm:$0xff]
    %v52 = vld [vmem:[%s1 + $0x140] sm:$0xff]
    %v53 = vld [vmem:[%s1 + $0x148] sm:$0xff]
    %v54 = vld [vmem:[%s1 + $0x150] sm:$0xff]
    %v55 = vld [vmem:[%s1 + $0x158] sm:$0xff]
    %v56 = vld [vmem:[%s1 + $0x160] sm:$0xff]
    %v57 = vld [vmem:[%s1 + $0x168] sm:$0xff]
    %v58 = vld [vmem:[%s1 + $0x170] sm:$0xff]
    %v59 = vld [vmem:[%s1 + $0x178] sm:$0xff]
    %v60 = vld [vmem:[%s1 + $0x180] sm:$0xff]
    %v61 = vld [vmem:[%s1 + $0x188] sm:$0xff]
    %v62 = vld [vmem:[%s1 + $0x190] sm:$0xff]
    %v63 = vld [vmem:[%s1 + $0x198] sm:$0xff]
    %v64 = vld [vmem:[%s1 + $0x1a0] sm:$0xff]
    %v65 = vld [vmem:[%s1 + $0x1a8] sm:$0xff]
    %v66 = vld [vmem:[%s1 + $0x1b0] sm:$0xff]
    %v67 = vld [vmem:[%s1 + $0x1b8] sm:$0xff]
    %v68 = vld [vmem:[%s1 + $0x1c0] sm:$0xff]
    %v69 = vld [vmem:[%s1 + $0x1c8] sm:$0xff]
    %v70 = vld [vmem:[%s1 + $0x1d0] sm:$0xff]
    %v71 = vld [vmem:[%s1 + $0x1d8] sm:$0xff]
    %v72 = vld [vmem:[%s1 + $0x1e0] sm:$0xff]
    %v73 = vld [vmem:[%s1 + $0x1e8] sm:$0xff]
    %v74 = vld [vmem:[%s1 + $0x1f0] sm:$0xff]
    %v75 = vld [vmem:[%s1 + $0x1f8] sm:$0xff]
    %v76 = vld [vmem:[%s1 + $0x200] sm:$0xff]
    %v77 = vld [vmem:[%s1 + $0x208] sm:$0xff]
    %v78 = vld [vmem:[%s1 + $0x210] sm:$0xff]
    %v79 = vld [vmem:[%s1 + $0x218] sm:$0xff]
    %v80 = vld [vmem:[%s1 + $0x220] sm:$0xff]
    %v81 = vld [vmem:[%s1 + $0x228] sm:$0xff]
    %v82 = vld [vmem:[%s1 + $0x230] sm:$0xff]
    %v83 = vld [vmem:[%s1 + $0x238] sm:$0xff]
    %v84 = vld [vmem:[%s1 + $0x240] sm:$0xff]
    %v85 = vld [vmem:[%s1 + $0x250] sm:$0xff]
    %v86 = vld [vmem:[%s1 + $0x260] sm:$0xff]
    %v87 = vld [vmem:[%s1 + $0x270] sm:$0xff]
    %v88 = vld [vmem:[%s1 + $0x280] sm:$0xff]
    %v89 = vld [vmem:[%s1 + $0x290] sm:$0xff]
    %v90 = vld [vmem:[%s1 + $0x2a0] sm:$0xff]
    %v91 = vld [vmem:[%s1 + $0x2b0] sm:$0xff]
    %s92 = scalar_lea.vmem %s1, 704
    %v93 = vld [vmem:[%s92] ss:$8 sm:$0x3]
    %v94 = vld [vmem:[%s1 + $0x2c1] ss:$0 sm:$0xff]
    %s95 = scalar_lea.vmem %s1, 706
    %v96 = vld [vmem:[%s95] ss:$8 sm:$0x3]
    %v97 = vld [vmem:[%s1 + $0x2c3] ss:$0 sm:$0xff]
    %v98 = vld [vmem:[%s1 + $0x2c4] ss:$0 sm:$0xff]
    %v99 = vld [vmem:[%s0] sm:$0xff]
    %v100 = vld [vmem:[%s0 + $0x8] sm:$0xff]
    %v102 = vlaneseq
    %v103 = vshrl.u32 %v102, 7
    %v104 = vsub.s32 0, %v103
    %v105 = vrot.slane %v93, %v104
    %v106 = vlaneseq
    %v107 = vshrl.u32 %v106, 7
    %v108 = vsub.s32 1, %v107
    %v109 = vrot.slane %v93, %v108
    %112 = vxpose.xlu0.b32.start [1/16] %v99, 128
    %113 = vxpose.xlu0.b32.cont [2/16] %v100, 128
    %114 = vxpose.xlu0.b32.cont [3/16] 0.0, 128
    %115 = vxpose.xlu0.b32.cont [4/16] 0.0, 128
    %116 = vxpose.xlu0.b32.cont [5/16] 0.0, 128
    %117 = vxpose.xlu0.b32.cont [6/16] 0.0, 128
    %118 = vxpose.xlu0.b32.cont [7/16] 0.0, 128
    %119 = vxpose.xlu0.b32.cont [8/16] 0.0, 128
    %120 = vxpose.xlu0.b32.cont [9/16] 0.0, 128
    %121 = vxpose.xlu0.b32.cont [10/16] 0.0, 128
    %122 = vxpose.xlu0.b32.cont [11/16] 0.0, 128
    %123 = vxpose.xlu0.b32.cont [12/16] 0.0, 128
    %124 = vxpose.xlu0.b32.cont [13/16] 0.0, 128
    %125 = vxpose.xlu0.b32.cont [14/16] 0.0, 128
    %126 = vxpose.xlu0.b32.cont [15/16] 0.0, 128
    %127 = vxpose.xlu0.b32.end [16/16] 0.0, 128
    %v128 = vpop.trf.xlu0
    %v129 = vpop.trf.xlu0
    %v130 = vpop.trf.xlu0
    %v131 = vpop.trf.xlu0
    %v132 = vpop.trf.xlu0
    %v133 = vpop.trf.xlu0
    %v134 = vpop.trf.xlu0
    %v135 = vpop.trf.xlu0
    %v136 = vpop.trf.xlu0
    %v137 = vpop.trf.xlu0
    %v138 = vpop.trf.xlu0
    %v139 = vpop.trf.xlu0
    %v140 = vpop.trf.xlu0
    %v141 = vpop.trf.xlu0
    %v142 = vpop.trf.xlu0
    %v143 = vpop.trf.xlu0
    %vm144 = vcmask 130048
    %v146 = vsel %vm144, %v128, 0
    %148 = vmatprep.subr.mxu0 0.0
    %149 = vmatpush1.msra.mxu0 0.0
    %150 = vmatprep.subr.mxu0 0.0
    %151 = vmatpush1.msra.mxu0 0.0
    %152 = vmatprep.subr.mxu0 0.0
    %153 = vmatpush1.msra.mxu0 0.0
    %154 = vmatprep.subr.mxu0 0.0
    %155 = vmatpush1.msra.mxu0 0.0
    %156 = vmatprep.subr.mxu0 0.0
    %157 = vmatpush1.msra.mxu0 0.0
    %158 = vmatprep.subr.mxu0 0.0
    %159 = vmatpush1.msra.mxu0 0.0
    %160 = vmatprep.subr.mxu0 0.0
    %161 = vmatpush1.msra.mxu0 0.0
    %162 = vmatprep.subr.mxu0 0.0
    %163 = vmatpush1.msra.mxu0 0.0
    %164 = vmatprep.subr.mxu0 0.0
    %165 = vmatpush1.msra.mxu0 0.0
    %166 = vmatprep.subr.mxu0 0.0
    %167 = vmatpush1.msra.mxu0 0.0
    %168 = vmatprep.subr.mxu0 0.0
    %169 = vmatpush1.msra.mxu0 0.0
    %170 = vmatprep.subr.mxu0 0.0
    %171 = vmatpush1.msra.mxu0 0.0
    %172 = vmatprep.subr.mxu0 0.0
    %173 = vmatpush1.msra.mxu0 0.0
    %174 = vmatprep.subr.mxu0 0.0
    %175 = vmatpush1.msra.mxu0 0.0
    %176 = vmatprep.subr.mxu0 %v15
    %177 = vmatpush1.msra.mxu0 %v14
    %178 = vmatprep.subr.mxu0 %v13
    %179 = vmatpush1.msra.mxu0 %v12
    %180 = vmatprep.subr.mxu0 0.0
    %181 = vmatpush2.msra.mxu0 0.0
    %182 = vmatprep.subr.mxu0 0.0
    %183 = vmatpush2.msra.mxu0 0.0
    %184 = vmatprep.subr.mxu0 0.0
    %185 = vmatpush2.msra.mxu0 0.0
    %186 = vmatprep.subr.mxu0 0.0
    %187 = vmatpush2.msra.mxu0 0.0
    %188 = vmatprep.subr.mxu0 0.0
    %189 = vmatpush2.msra.mxu0 0.0
    %190 = vmatprep.subr.mxu0 0.0
    %191 = vmatpush2.msra.mxu0 0.0
    %192 = vmatprep.subr.mxu0 0.0
    %193 = vmatpush2.msra.mxu0 0.0
    %194 = vmatprep.subr.mxu0 0.0
    %195 = vmatpush2.msra.mxu0 0.0
    %196 = vmatprep.subr.mxu0 0.0
    %197 = vmatpush2.msra.mxu0 0.0
    %198 = vmatprep.subr.mxu0 0.0
    %199 = vmatpush2.msra.mxu0 0.0
    %200 = vmatprep.subr.mxu0 0.0
    %201 = vmatpush2.msra.mxu0 0.0
    %202 = vmatprep.subr.mxu0 0.0
    %203 = vmatpush2.msra.mxu0 0.0
    %204 = vmatprep.subr.mxu0 0.0
    %205 = vmatpush2.msra.mxu0 0.0
    %206 = vmatprep.subr.mxu0 0.0
    %207 = vmatpush2.msra.mxu0 0.0
    %208 = vmatprep.subr.mxu0 0.0
    %209 = vmatpush2.msra.mxu0 0.0
    %210 = vmatprep.subr.mxu0 0.0
    %211 = vmatpush2.msra.mxu0 0.0
    %212 = vmatprep.mubr.f32.mxu0 0.0
    %213 = vmatmul.mubr.f32.gmra.mxu0 %v146
    %v214 = vpop.f32.mrf.mxu0
    %v215 = vadd.f32 %v105, %v214
    %v216 = vpop.f32.mrf.mxu0
    %v217 = vadd.f32 %v109, %v216
    %218 = vdwg.mxu0
    %219 = vmatprep.subr.mxu0 0.0
    %220 = vmatpush1.msra.mxu0 0.0
    %221 = vmatprep.subr.mxu0 0.0
    %222 = vmatpush1.msra.mxu0 0.0
    %223 = vmatprep.subr.mxu0 0.0
    %224 = vmatpush1.msra.mxu0 0.0
    %225 = vmatprep.subr.mxu0 0.0
    %226 = vmatpush1.msra.mxu0 0.0
    %227 = vmatprep.subr.mxu0 0.0
    %228 = vmatpush1.msra.mxu0 0.0
    %229 = vmatprep.subr.mxu0 0.0
    %230 = vmatpush1.msra.mxu0 0.0
    %231 = vmatprep.subr.mxu0 0.0
    %232 = vmatpush1.msra.mxu0 0.0
    %233 = vmatprep.subr.mxu0 0.0
    %234 = vmatpush1.msra.mxu0 0.0
    %235 = vmatprep.subr.mxu0 0.0
    %236 = vmatpush1.msra.mxu0 0.0
    %237 = vmatprep.subr.mxu0 0.0
    %238 = vmatpush1.msra.mxu0 0.0
    %239 = vmatprep.subr.mxu0 0.0
    %240 = vmatpush1.msra.mxu0 0.0
    %241 = vmatprep.subr.mxu0 0.0
    %242 = vmatpush1.msra.mxu0 0.0
    %243 = vmatprep.subr.mxu0 0.0
    %244 = vmatpush1.msra.mxu0 0.0
    %245 = vmatprep.subr.mxu0 0.0
    %246 = vmatpush1.msra.mxu0 0.0
    %247 = vmatprep.subr.mxu0 %v19
    %248 = vmatpush1.msra.mxu0 %v18
    %249 = vmatprep.subr.mxu0 %v17
    %250 = vmatpush1.msra.mxu0 %v16
    %251 = vmatprep.subr.mxu0 0.0
    %252 = vmatpush2.msra.mxu0 0.0
    %253 = vmatprep.subr.mxu0 0.0
    %254 = vmatpush2.msra.mxu0 0.0
    %255 = vmatprep.subr.mxu0 0.0
    %256 = vmatpush2.msra.mxu0 0.0
    %257 = vmatprep.subr.mxu0 0.0
    %258 = vmatpush2.msra.mxu0 0.0
    %259 = vmatprep.subr.mxu0 0.0
    %260 = vmatpush2.msra.mxu0 0.0
    %261 = vmatprep.subr.mxu0 0.0
    %262 = vmatpush2.msra.mxu0 0.0
    %263 = vmatprep.subr.mxu0 0.0
    %264 = vmatpush2.msra.mxu0 0.0
    %265 = vmatprep.subr.mxu0 0.0
    %266 = vmatpush2.msra.mxu0 0.0
    %267 = vmatprep.subr.mxu0 0.0
    %268 = vmatpush2.msra.mxu0 0.0
    %269 = vmatprep.subr.mxu0 0.0
    %270 = vmatpush2.msra.mxu0 0.0
    %271 = vmatprep.subr.mxu0 0.0
    %272 = vmatpush2.msra.mxu0 0.0
    %273 = vmatprep.subr.mxu0 0.0
    %274 = vmatpush2.msra.mxu0 0.0
    %275 = vmatprep.subr.mxu0 0.0
    %276 = vmatpush2.msra.mxu0 0.0
    %277 = vmatprep.subr.mxu0 0.0
    %278 = vmatpush2.msra.mxu0 0.0
    %279 = vmatprep.subr.mxu0 0.0
    %280 = vmatpush2.msra.mxu0 0.0
    %281 = vmatprep.subr.mxu0 0.0
    %282 = vmatpush2.msra.mxu0 0.0
    %283 = vmatprep.mubr.f32.mxu0 0.0
    %284 = vmatmul.mubr.f32.gmra.mxu0 %v146
    %v285 = vpop.f32.mrf.mxu0
    %v286 = vadd.f32 0.0, %v285
    %v287 = vpop.f32.mrf.mxu0
    %v288 = vadd.f32 0.0, %v287
    %289 = vdwg.mxu0
    %s290 = scalar_lea.vmem %s0, 16
    %v291 = vld [vmem:[%s290] sm:$0xff]
    %v292 = vld [vmem:[%s290 + $0x8] sm:$0xff]
    %293 = vxpose.xlu0.b32.start [1/16] %v291, 128
    %294 = vxpose.xlu0.b32.cont [2/16] %v292, 128
    %295 = vxpose.xlu0.b32.cont [3/16] 0.0, 128
    %296 = vxpose.xlu0.b32.cont [4/16] 0.0, 128
    %297 = vxpose.xlu0.b32.cont [5/16] 0.0, 128
    %298 = vxpose.xlu0.b32.cont [6/16] 0.0, 128
    %299 = vxpose.xlu0.b32.cont [7/16] 0.0, 128
    %300 = vxpose.xlu0.b32.cont [8/16] 0.0, 128
    %301 = vxpose.xlu0.b32.cont [9/16] 0.0, 128
    %302 = vxpose.xlu0.b32.cont [10/16] 0.0, 128
    %303 = vxpose.xlu0.b32.cont [11/16] 0.0, 128
    %304 = vxpose.xlu0.b32.cont [12/16] 0.0, 128
    %305 = vxpose.xlu0.b32.cont [13/16] 0.0, 128
    %306 = vxpose.xlu0.b32.cont [14/16] 0.0, 128
    %307 = vxpose.xlu0.b32.cont [15/16] 0.0, 128
    %308 = vxpose.xlu0.b32.end [16/16] 0.0, 128
    %v309 = vpop.trf.xlu0
    %v310 = vpop.trf.xlu0
    %v311 = vpop.trf.xlu0
    %v312 = vpop.trf.xlu0
    %v313 = vpop.trf.xlu0
    %v314 = vpop.trf.xlu0
    %v315 = vpop.trf.xlu0
    %v316 = vpop.trf.xlu0
    %v317 = vpop.trf.xlu0
    %v318 = vpop.trf.xlu0
    %v319 = vpop.trf.xlu0
    %v320 = vpop.trf.xlu0
    %v321 = vpop.trf.xlu0
    %v322 = vpop.trf.xlu0
    %v323 = vpop.trf.xlu0
    %v324 = vpop.trf.xlu0
    %v326 = vsel %vm144, %v309, 0
    %328 = vmatprep.subr.mxu0 0.0
    %329 = vmatpush1.msra.mxu0 0.0
    %330 = vmatprep.subr.mxu0 0.0
    %331 = vmatpush1.msra.mxu0 0.0
    %332 = vmatprep.subr.mxu0 0.0
    %333 = vmatpush1.msra.mxu0 0.0
    %334 = vmatprep.subr.mxu0 0.0
    %335 = vmatpush1.msra.mxu0 0.0
    %336 = vmatprep.subr.mxu0 0.0
    %337 = vmatpush1.msra.mxu0 0.0
    %338 = vmatprep.subr.mxu0 0.0
    %339 = vmatpush1.msra.mxu0 0.0
    %340 = vmatprep.subr.mxu0 0.0
    %341 = vmatpush1.msra.mxu0 0.0
    %342 = vmatprep.subr.mxu0 0.0
    %343 = vmatpush1.msra.mxu0 0.0
    %344 = vmatprep.subr.mxu0 0.0
    %345 = vmatpush1.msra.mxu0 0.0
    %346 = vmatprep.subr.mxu0 0.0
    %347 = vmatpush1.msra.mxu0 0.0
    %348 = vmatprep.subr.mxu0 0.0
    %349 = vmatpush1.msra.mxu0 0.0
    %350 = vmatprep.subr.mxu0 0.0
    %351 = vmatpush1.msra.mxu0 0.0
    %352 = vmatprep.subr.mxu0 0.0
    %353 = vmatpush1.msra.mxu0 0.0
    %354 = vmatprep.subr.mxu0 0.0
    %355 = vmatpush1.msra.mxu0 0.0
    %356 = vmatprep.subr.mxu0 %v15
    %357 = vmatpush1.msra.mxu0 %v14
    %358 = vmatprep.subr.mxu0 %v13
    %359 = vmatpush1.msra.mxu0 %v12
    %360 = vmatprep.subr.mxu0 0.0
    %361 = vmatpush2.msra.mxu0 0.0
    %362 = vmatprep.subr.mxu0 0.0
    %363 = vmatpush2.msra.mxu0 0.0
    %364 = vmatprep.subr.mxu0 0.0
    %365 = vmatpush2.msra.mxu0 0.0
    %366 = vmatprep.subr.mxu0 0.0
    %367 = vmatpush2.msra.mxu0 0.0
    %368 = vmatprep.subr.mxu0 0.0
    %369 = vmatpush2.msra.mxu0 0.0
    %370 = vmatprep.subr.mxu0 0.0
    %371 = vmatpush2.msra.mxu0 0.0
    %372 = vmatprep.subr.mxu0 0.0
    %373 = vmatpush2.msra.mxu0 0.0
    %374 = vmatprep.subr.mxu0 0.0
    %375 = vmatpush2.msra.mxu0 0.0
    %376 = vmatprep.subr.mxu0 0.0
    %377 = vmatpush2.msra.mxu0 0.0
    %378 = vmatprep.subr.mxu0 0.0
    %379 = vmatpush2.msra.mxu0 0.0
    %380 = vmatprep.subr.mxu0 0.0
    %381 = vmatpush2.msra.mxu0 0.0
    %382 = vmatprep.subr.mxu0 0.0
    %383 = vmatpush2.msra.mxu0 0.0
    %384 = vmatprep.subr.mxu0 0.0
    %385 = vmatpush2.msra.mxu0 0.0
    %386 = vmatprep.subr.mxu0 0.0
    %387 = vmatpush2.msra.mxu0 0.0
    %388 = vmatprep.subr.mxu0 0.0
    %389 = vmatpush2.msra.mxu0 0.0
    %390 = vmatprep.subr.mxu0 0.0
    %391 = vmatpush2.msra.mxu0 0.0
    %392 = vmatprep.mubr.f32.mxu0 0.0
    %393 = vmatmul.mubr.f32.gmra.mxu0 %v326
    %v394 = vpop.f32.mrf.mxu0
    %v395 = vadd.f32 %v105, %v394
    %v396 = vpop.f32.mrf.mxu0
    %v397 = vadd.f32 %v109, %v396
    %398 = vdwg.mxu0
    %399 = vmatprep.subr.mxu0 0.0
    %400 = vmatpush1.msra.mxu0 0.0
    %401 = vmatprep.subr.mxu0 0.0
    %402 = vmatpush1.msra.mxu0 0.0
    %403 = vmatprep.subr.mxu0 0.0
    %404 = vmatpush1.msra.mxu0 0.0
    %405 = vmatprep.subr.mxu0 0.0
    %406 = vmatpush1.msra.mxu0 0.0
    %407 = vmatprep.subr.mxu0 0.0
    %408 = vmatpush1.msra.mxu0 0.0
    %409 = vmatprep.subr.mxu0 0.0
    %410 = vmatpush1.msra.mxu0 0.0
    %411 = vmatprep.subr.mxu0 0.0
    %412 = vmatpush1.msra.mxu0 0.0
    %413 = vmatprep.subr.mxu0 0.0
    %414 = vmatpush1.msra.mxu0 0.0
    %415 = vmatprep.subr.mxu0 0.0
    %416 = vmatpush1.msra.mxu0 0.0
    %417 = vmatprep.subr.mxu0 0.0
    %418 = vmatpush1.msra.mxu0 0.0
    %419 = vmatprep.subr.mxu0 0.0
    %420 = vmatpush1.msra.mxu0 0.0
    %421 = vmatprep.subr.mxu0 0.0
    %422 = vmatpush1.msra.mxu0 0.0
    %423 = vmatprep.subr.mxu0 0.0
    %424 = vmatpush1.msra.mxu0 0.0
    %425 = vmatprep.subr.mxu0 0.0
    %426 = vmatpush1.msra.mxu0 0.0
    %427 = vmatprep.subr.mxu0 %v19
    %428 = vmatpush1.msra.mxu0 %v18
    %429 = vmatprep.subr.mxu0 %v17
    %430 = vmatpush1.msra.mxu0 %v16
    %431 = vmatprep.subr.mxu0 0.0
    %432 = vmatpush2.msra.mxu0 0.0
    %433 = vmatprep.subr.mxu0 0.0
    %434 = vmatpush2.msra.mxu0 0.0
    %435 = vmatprep.subr.mxu0 0.0
    %436 = vmatpush2.msra.mxu0 0.0
    %437 = vmatprep.subr.mxu0 0.0
    %438 = vmatpush2.msra.mxu0 0.0
    %439 = vmatprep.subr.mxu0 0.0
    %440 = vmatpush2.msra.mxu0 0.0
    %441 = vmatprep.subr.mxu0 0.0
    %442 = vmatpush2.msra.mxu0 0.0
    %443 = vmatprep.subr.mxu0 0.0
    %444 = vmatpush2.msra.mxu0 0.0
    %445 = vmatprep.subr.mxu0 0.0
    %446 = vmatpush2.msra.mxu0 0.0
    %447 = vmatprep.subr.mxu0 0.0
    %448 = vmatpush2.msra.mxu0 0.0
    %449 = vmatprep.subr.mxu0 0.0
    %450 = vmatpush2.msra.mxu0 0.0
    %451 = vmatprep.subr.mxu0 0.0
    %452 = vmatpush2.msra.mxu0 0.0
    %453 = vmatprep.subr.mxu0 0.0
    %454 = vmatpush2.msra.mxu0 0.0
    %455 = vmatprep.subr.mxu0 0.0
    %456 = vmatpush2.msra.mxu0 0.0
    %457 = vmatprep.subr.mxu0 0.0
    %458 = vmatpush2.msra.mxu0 0.0
    %459 = vmatprep.subr.mxu0 0.0
    %460 = vmatpush2.msra.mxu0 0.0
    %461 = vmatprep.subr.mxu0 0.0
    %462 = vmatpush2.msra.mxu0 0.0
    %463 = vmatprep.mubr.f32.mxu0 0.0
    %464 = vmatmul.mubr.f32.gmra.mxu0 %v326
    %v465 = vpop.f32.mrf.mxu0
    %v466 = vadd.f32 0.0, %v465
    %v467 = vpop.f32.mrf.mxu0
    %v468 = vadd.f32 0.0, %v467
    %469 = vdwg.mxu0
    %v472 = vrot.slane %v286, 7
    %v473 = vrot.slane %v288, 7
    %v476 = vadd.f32 %v215, %v472
    %v477 = vadd.f32 %v217, %v473
    %v480 = vrot.slane %v466, 7
    %v481 = vrot.slane %v468, 7
    %v484 = vadd.f32 %v395, %v480
    %v485 = vadd.f32 %v397, %v481
    %v488 = vrot.slane %v484, 7
    %v489 = vrot.slane %v485, 7
    %vm492 = vcmask 1040384
    %v493 = vsel %vm492, %v476, %v488
    %v494 = vsel %vm492, %v477, %v489
    %v495 = vrot.slane %v286, 5
    %v496 = vrot.slane %v288, 5
    %v499 = vadd.f32 %v215, %v495
    %v500 = vadd.f32 %v217, %v496
    %v501 = vrot.slane %v466, 5
    %v502 = vrot.slane %v468, 5
    %v505 = vadd.f32 %v395, %v501
    %v506 = vadd.f32 %v397, %v502
    %v509 = vrot.slane %v499, 1
    %v510 = vrot.slane %v500, 1
    %v513 = vsel %vm492, %v509, %v505
    %v514 = vsel %vm492, %v510, %v506
    %v515 = vrot.slane %v286, 3
    %v516 = vrot.slane %v288, 3
    %v519 = vadd.f32 %v215, %v515
    %v520 = vadd.f32 %v217, %v516
    %v521 = vrot.slane %v466, 3
    %v522 = vrot.slane %v468, 3
    %v525 = vadd.f32 %v395, %v521
    %v526 = vadd.f32 %v397, %v522
    %v529 = vrot.slane %v519, 2
    %v530 = vrot.slane %v520, 2
    %v535 = vrot.slane %v525, 1
    %v536 = vrot.slane %v526, 1
    %v539 = vsel %vm492, %v529, %v535
    %v540 = vsel %vm492, %v530, %v536
    %v541 = vrot.slane %v286, 1
    %v542 = vrot.slane %v288, 1
    %v545 = vadd.f32 %v215, %v541
    %v546 = vadd.f32 %v217, %v542
    %v547 = vrot.slane %v466, 1
    %v548 = vrot.slane %v468, 1
    %v551 = vadd.f32 %v395, %v547
    %v552 = vadd.f32 %v397, %v548
    %v555 = vrot.slane %v545, 3
    %v556 = vrot.slane %v546, 3
    %v561 = vrot.slane %v551, 2
    %v562 = vrot.slane %v552, 2
    %v565 = vsel %vm492, %v555, %v561
    %v566 = vsel %vm492, %v556, %v562
    %v569 = vrot.slane %v476, 4
    %v570 = vrot.slane %v477, 4
    %v573 = vrot.slane %v484, 3
    %v574 = vrot.slane %v485, 3
    %v577 = vsel %vm492, %v569, %v573
    %v578 = vsel %vm492, %v570, %v574
    %v579 = vrot.slane %v499, 5
    %v580 = vrot.slane %v500, 5
    %v585 = vrot.slane %v505, 4
    %v586 = vrot.slane %v506, 4
    %v589 = vsel %vm492, %v579, %v585
    %v590 = vsel %vm492, %v580, %v586
    %v591 = vrot.slane %v519, 6
    %v592 = vrot.slane %v520, 6
    %v595 = vrot.slane %v525, 5
    %v596 = vrot.slane %v526, 5
    %v599 = vsel %vm492, %v591, %v595
    %v600 = vsel %vm492, %v592, %v596
    %v601 = vrot.slane %v545, 7
    %v602 = vrot.slane %v546, 7
    %v605 = vrot.slane %v551, 6
    %v606 = vrot.slane %v552, 6
    %v609 = vsel %vm492, %v601, %v605
    %v610 = vsel %vm492, %v602, %v606
    %v611 = vxor.u32 %v493, 2147483648
    %v612 = vmul.f32 %v611, 1.442695
    %v613 = vpow.pop %v612
    %v614 = vadd.f32 %v613, 1.0
    %v615 = vrcp.pop %v614
    %v616 = vmul.f32 1.0, %v615
    %v617 = vmul.f32 %v616, %v94
    %v618 = vadd.f32 %v494, %v617
    %v619 = vtanh.pop %v618
    %v620 = vsub.f32 1.0, %v616
    %622 = vrot.lane.b32.xlu0 %v619, 64
    %v623 = vpop.permute.xlu0 %622
    %v625 = vmul.f32 %v620, %v623
    %627 = vrot.lane.b32.xlu0 %v625, 64
    %v628 = vpop.permute.xlu0 %627
    %vm629 = vcmask 523264
    %v630 = vsel %vm629, %v628, 0
    %632 = vmatprep.subr.mxu0 0.0
    %633 = vmatpush1.msra.mxu0 0.0
    %634 = vmatprep.subr.mxu0 0.0
    %635 = vmatpush1.msra.mxu0 0.0
    %636 = vmatprep.subr.mxu0 0.0
    %637 = vmatpush1.msra.mxu0 0.0
    %638 = vmatprep.subr.mxu0 0.0
    %639 = vmatpush1.msra.mxu0 0.0
    %640 = vmatprep.subr.mxu0 0.0
    %641 = vmatpush1.msra.mxu0 0.0
    %642 = vmatprep.subr.mxu0 0.0
    %643 = vmatpush1.msra.mxu0 0.0
    %644 = vmatprep.subr.mxu0 0.0
    %645 = vmatpush1.msra.mxu0 0.0
    %646 = vmatprep.subr.mxu0 0.0
    %647 = vmatpush1.msra.mxu0 0.0
    %648 = vmatprep.subr.mxu0 %v35
    %649 = vmatpush1.msra.mxu0 %v34
    %650 = vmatprep.subr.mxu0 %v33
    %651 = vmatpush1.msra.mxu0 %v32
    %652 = vmatprep.subr.mxu0 %v31
    %653 = vmatpush1.msra.mxu0 %v30
    %654 = vmatprep.subr.mxu0 %v29
    %655 = vmatpush1.msra.mxu0 %v28
    %656 = vmatprep.subr.mxu0 %v27
    %657 = vmatpush1.msra.mxu0 %v26
    %658 = vmatprep.subr.mxu0 %v25
    %659 = vmatpush1.msra.mxu0 %v24
    %660 = vmatprep.subr.mxu0 %v23
    %661 = vmatpush1.msra.mxu0 %v22
    %662 = vmatprep.subr.mxu0 %v21
    %663 = vmatpush1.msra.mxu0 %v20
    %664 = vmatprep.subr.mxu0 0.0
    %665 = vmatpush2.msra.mxu0 0.0
    %666 = vmatprep.subr.mxu0 0.0
    %667 = vmatpush2.msra.mxu0 0.0
    %668 = vmatprep.subr.mxu0 0.0
    %669 = vmatpush2.msra.mxu0 0.0
    %670 = vmatprep.subr.mxu0 0.0
    %671 = vmatpush2.msra.mxu0 0.0
    %672 = vmatprep.subr.mxu0 0.0
    %673 = vmatpush2.msra.mxu0 0.0
    %674 = vmatprep.subr.mxu0 0.0
    %675 = vmatpush2.msra.mxu0 0.0
    %676 = vmatprep.subr.mxu0 0.0
    %677 = vmatpush2.msra.mxu0 0.0
    %678 = vmatprep.subr.mxu0 0.0
    %679 = vmatpush2.msra.mxu0 0.0
    %680 = vmatprep.subr.mxu0 0.0
    %681 = vmatpush2.msra.mxu0 0.0
    %682 = vmatprep.subr.mxu0 0.0
    %683 = vmatpush2.msra.mxu0 0.0
    %684 = vmatprep.subr.mxu0 0.0
    %685 = vmatpush2.msra.mxu0 0.0
    %686 = vmatprep.subr.mxu0 0.0
    %687 = vmatpush2.msra.mxu0 0.0
    %688 = vmatprep.subr.mxu0 0.0
    %689 = vmatpush2.msra.mxu0 0.0
    %690 = vmatprep.subr.mxu0 0.0
    %691 = vmatpush2.msra.mxu0 0.0
    %692 = vmatprep.subr.mxu0 0.0
    %693 = vmatpush2.msra.mxu0 0.0
    %694 = vmatprep.subr.mxu0 0.0
    %695 = vmatpush2.msra.mxu0 0.0
    %696 = vmatprep.mubr.f32.mxu0 0.0
    %697 = vmatmul.mubr.f32.gmra.mxu0 %v630
    %v698 = vpop.f32.mrf.mxu0
    %v699 = vadd.f32 0.0, %v698
    %v700 = vpop.f32.mrf.mxu0
    %v701 = vadd.f32 0.0, %v700
    %702 = vdwg.mxu0
    %v703 = vadd.f32 %v513, %v699
    %v704 = vxor.u32 %v703, 2147483648
    %v705 = vmul.f32 %v704, 1.442695
    %v706 = vpow.pop %v705
    %v707 = vadd.f32 %v706, 1.0
    %v708 = vrcp.pop %v707
    %v709 = vmul.f32 1.0, %v708
    %v710 = vadd.f32 %v701, %v94
    %v711 = vmul.f32 %v709, %v710
    %v712 = vadd.f32 %v514, %v711
    %v713 = vtanh.pop %v712
    %v714 = vsub.f32 1.0, %v709
    %716 = vrot.lane.b32.xlu0 %v713, 64
    %v717 = vpop.permute.xlu0 %716
    %v719 = vmul.f32 %v714, %v717
    %v720 = vmul.f32 %v709, %v625
    %v721 = vadd.f32 %v719, %v720
    %723 = vrot.lane.b32.xlu0 %v721, 64
    %v724 = vpop.permute.xlu0 %723
    %v725 = vsel %vm629, %v724, 0
    %727 = vmatprep.subr.mxu0 0.0
    %728 = vmatpush1.msra.mxu0 0.0
    %729 = vmatprep.subr.mxu0 0.0
    %730 = vmatpush1.msra.mxu0 0.0
    %731 = vmatprep.subr.mxu0 0.0
    %732 = vmatpush1.msra.mxu0 0.0
    %733 = vmatprep.subr.mxu0 0.0
    %734 = vmatpush1.msra.mxu0 0.0
    %735 = vmatprep.subr.mxu0 0.0
    %736 = vmatpush1.msra.mxu0 0.0
    %737 = vmatprep.subr.mxu0 0.0
    %738 = vmatpush1.msra.mxu0 0.0
    %739 = vmatprep.subr.mxu0 0.0
    %740 = vmatpush1.msra.mxu0 0.0
    %741 = vmatprep.subr.mxu0 0.0
    %742 = vmatpush1.msra.mxu0 0.0
    %743 = vmatprep.subr.mxu0 %v35
    %744 = vmatpush1.msra.mxu0 %v34
    %745 = vmatprep.subr.mxu0 %v33
    %746 = vmatpush1.msra.mxu0 %v32
    %747 = vmatprep.subr.mxu0 %v31
    %748 = vmatpush1.msra.mxu0 %v30
    %749 = vmatprep.subr.mxu0 %v29
    %750 = vmatpush1.msra.mxu0 %v28
    %751 = vmatprep.subr.mxu0 %v27
    %752 = vmatpush1.msra.mxu0 %v26
    %753 = vmatprep.subr.mxu0 %v25
    %754 = vmatpush1.msra.mxu0 %v24
    %755 = vmatprep.subr.mxu0 %v23
    %756 = vmatpush1.msra.mxu0 %v22
    %757 = vmatprep.subr.mxu0 %v21
    %758 = vmatpush1.msra.mxu0 %v20
    %759 = vmatprep.subr.mxu0 0.0
    %760 = vmatpush2.msra.mxu0 0.0
    %761 = vmatprep.subr.mxu0 0.0
    %762 = vmatpush2.msra.mxu0 0.0
    %763 = vmatprep.subr.mxu0 0.0
    %764 = vmatpush2.msra.mxu0 0.0
    %765 = vmatprep.subr.mxu0 0.0
    %766 = vmatpush2.msra.mxu0 0.0
    %767 = vmatprep.subr.mxu0 0.0
    %768 = vmatpush2.msra.mxu0 0.0
    %769 = vmatprep.subr.mxu0 0.0
    %770 = vmatpush2.msra.mxu0 0.0
    %771 = vmatprep.subr.mxu0 0.0
    %772 = vmatpush2.msra.mxu0 0.0
    %773 = vmatprep.subr.mxu0 0.0
    %774 = vmatpush2.msra.mxu0 0.0
    %775 = vmatprep.subr.mxu0 0.0
    %776 = vmatpush2.msra.mxu0 0.0
    %777 = vmatprep.subr.mxu0 0.0
    %778 = vmatpush2.msra.mxu0 0.0
    %779 = vmatprep.subr.mxu0 0.0
    %780 = vmatpush2.msra.mxu0 0.0
    %781 = vmatprep.subr.mxu0 0.0
    %782 = vmatpush2.msra.mxu0 0.0
    %783 = vmatprep.subr.mxu0 0.0
    %784 = vmatpush2.msra.mxu0 0.0
    %785 = vmatprep.subr.mxu0 0.0
    %786 = vmatpush2.msra.mxu0 0.0
    %787 = vmatprep.subr.mxu0 0.0
    %788 = vmatpush2.msra.mxu0 0.0
    %789 = vmatprep.subr.mxu0 0.0
    %790 = vmatpush2.msra.mxu0 0.0
    %791 = vmatprep.mubr.f32.mxu0 0.0
    %792 = vmatmul.mubr.f32.gmra.mxu0 %v725
    %v793 = vpop.f32.mrf.mxu0
    %v794 = vadd.f32 0.0, %v793
    %v795 = vpop.f32.mrf.mxu0
    %v796 = vadd.f32 0.0, %v795
    %797 = vdwg.mxu0
    %v798 = vadd.f32 %v539, %v794
    %v799 = vxor.u32 %v798, 2147483648
    %v800 = vmul.f32 %v799, 1.442695
    %v801 = vpow.pop %v800
    %v802 = vadd.f32 %v801, 1.0
    %v803 = vrcp.pop %v802
    %v804 = vmul.f32 1.0, %v803
    %v805 = vadd.f32 %v796, %v94
    %v806 = vmul.f32 %v804, %v805
    %v807 = vadd.f32 %v540, %v806
    %v808 = vtanh.pop %v807
    %v809 = vsub.f32 1.0, %v804
    %811 = vrot.lane.b32.xlu0 %v808, 64
    %v812 = vpop.permute.xlu0 %811
    %v814 = vmul.f32 %v809, %v812
    %v815 = vmul.f32 %v804, %v721
    %v816 = vadd.f32 %v814, %v815
    %818 = vrot.lane.b32.xlu0 %v816, 64
    %v819 = vpop.permute.xlu0 %818
    %v820 = vsel %vm629, %v819, 0
    %822 = vmatprep.subr.mxu0 0.0
    %823 = vmatpush1.msra.mxu0 0.0
    %824 = vmatprep.subr.mxu0 0.0
    %825 = vmatpush1.msra.mxu0 0.0
    %826 = vmatprep.subr.mxu0 0.0
    %827 = vmatpush1.msra.mxu0 0.0
    %828 = vmatprep.subr.mxu0 0.0
    %829 = vmatpush1.msra.mxu0 0.0
    %830 = vmatprep.subr.mxu0 0.0
    %831 = vmatpush1.msra.mxu0 0.0
    %832 = vmatprep.subr.mxu0 0.0
    %833 = vmatpush1.msra.mxu0 0.0
    %834 = vmatprep.subr.mxu0 0.0
    %835 = vmatpush1.msra.mxu0 0.0
    %836 = vmatprep.subr.mxu0 0.0
    %837 = vmatpush1.msra.mxu0 0.0
    %838 = vmatprep.subr.mxu0 %v35
    %839 = vmatpush1.msra.mxu0 %v34
    %840 = vmatprep.subr.mxu0 %v33
    %841 = vmatpush1.msra.mxu0 %v32
    %842 = vmatprep.subr.mxu0 %v31
    %843 = vmatpush1.msra.mxu0 %v30
    %844 = vmatprep.subr.mxu0 %v29
    %845 = vmatpush1.msra.mxu0 %v28
    %846 = vmatprep.subr.mxu0 %v27
    %847 = vmatpush1.msra.mxu0 %v26
    %848 = vmatprep.subr.mxu0 %v25
    %849 = vmatpush1.msra.mxu0 %v24
    %850 = vmatprep.subr.mxu0 %v23
    %851 = vmatpush1.msra.mxu0 %v22
    %852 = vmatprep.subr.mxu0 %v21
    %853 = vmatpush1.msra.mxu0 %v20
    %854 = vmatprep.subr.mxu0 0.0
    %855 = vmatpush2.msra.mxu0 0.0
    %856 = vmatprep.subr.mxu0 0.0
    %857 = vmatpush2.msra.mxu0 0.0
    %858 = vmatprep.subr.mxu0 0.0
    %859 = vmatpush2.msra.mxu0 0.0
    %860 = vmatprep.subr.mxu0 0.0
    %861 = vmatpush2.msra.mxu0 0.0
    %862 = vmatprep.subr.mxu0 0.0
    %863 = vmatpush2.msra.mxu0 0.0
    %864 = vmatprep.subr.mxu0 0.0
    %865 = vmatpush2.msra.mxu0 0.0
    %866 = vmatprep.subr.mxu0 0.0
    %867 = vmatpush2.msra.mxu0 0.0
    %868 = vmatprep.subr.mxu0 0.0
    %869 = vmatpush2.msra.mxu0 0.0
    %870 = vmatprep.subr.mxu0 0.0
    %871 = vmatpush2.msra.mxu0 0.0
    %872 = vmatprep.subr.mxu0 0.0
    %873 = vmatpush2.msra.mxu0 0.0
    %874 = vmatprep.subr.mxu0 0.0
    %875 = vmatpush2.msra.mxu0 0.0
    %876 = vmatprep.subr.mxu0 0.0
    %877 = vmatpush2.msra.mxu0 0.0
    %878 = vmatprep.subr.mxu0 0.0
    %879 = vmatpush2.msra.mxu0 0.0
    %880 = vmatprep.subr.mxu0 0.0
    %881 = vmatpush2.msra.mxu0 0.0
    %882 = vmatprep.subr.mxu0 0.0
    %883 = vmatpush2.msra.mxu0 0.0
    %884 = vmatprep.subr.mxu0 0.0
    %885 = vmatpush2.msra.mxu0 0.0
    %886 = vmatprep.mubr.f32.mxu0 0.0
    %887 = vmatmul.mubr.f32.gmra.mxu0 %v820
    %v888 = vpop.f32.mrf.mxu0
    %v889 = vadd.f32 0.0, %v888
    %v890 = vpop.f32.mrf.mxu0
    %v891 = vadd.f32 0.0, %v890
    %892 = vdwg.mxu0
    %v893 = vadd.f32 %v565, %v889
    %v894 = vxor.u32 %v893, 2147483648
    %v895 = vmul.f32 %v894, 1.442695
    %v896 = vpow.pop %v895
    %v897 = vadd.f32 %v896, 1.0
    %v898 = vrcp.pop %v897
    %v899 = vmul.f32 1.0, %v898
    %v900 = vadd.f32 %v891, %v94
    %v901 = vmul.f32 %v899, %v900
    %v902 = vadd.f32 %v566, %v901
    %v903 = vtanh.pop %v902
    %v904 = vsub.f32 1.0, %v899
    %906 = vrot.lane.b32.xlu0 %v903, 64
    %v907 = vpop.permute.xlu0 %906
    %v909 = vmul.f32 %v904, %v907
    %v910 = vmul.f32 %v899, %v816
    %v911 = vadd.f32 %v909, %v910
    %913 = vrot.lane.b32.xlu0 %v911, 64
    %v914 = vpop.permute.xlu0 %913
    %v915 = vsel %vm629, %v914, 0
    %917 = vmatprep.subr.mxu0 0.0
    %918 = vmatpush1.msra.mxu0 0.0
    %919 = vmatprep.subr.mxu0 0.0
    %920 = vmatpush1.msra.mxu0 0.0
    %921 = vmatprep.subr.mxu0 0.0
    %922 = vmatpush1.msra.mxu0 0.0
    %923 = vmatprep.subr.mxu0 0.0
    %924 = vmatpush1.msra.mxu0 0.0
    %925 = vmatprep.subr.mxu0 0.0
    %926 = vmatpush1.msra.mxu0 0.0
    %927 = vmatprep.subr.mxu0 0.0
    %928 = vmatpush1.msra.mxu0 0.0
    %929 = vmatprep.subr.mxu0 0.0
    %930 = vmatpush1.msra.mxu0 0.0
    %931 = vmatprep.subr.mxu0 0.0
    %932 = vmatpush1.msra.mxu0 0.0
    %933 = vmatprep.subr.mxu0 %v35
    %934 = vmatpush1.msra.mxu0 %v34
    %935 = vmatprep.subr.mxu0 %v33
    %936 = vmatpush1.msra.mxu0 %v32
    %937 = vmatprep.subr.mxu0 %v31
    %938 = vmatpush1.msra.mxu0 %v30
    %939 = vmatprep.subr.mxu0 %v29
    %940 = vmatpush1.msra.mxu0 %v28
    %941 = vmatprep.subr.mxu0 %v27
    %942 = vmatpush1.msra.mxu0 %v26
    %943 = vmatprep.subr.mxu0 %v25
    %944 = vmatpush1.msra.mxu0 %v24
    %945 = vmatprep.subr.mxu0 %v23
    %946 = vmatpush1.msra.mxu0 %v22
    %947 = vmatprep.subr.mxu0 %v21
    %948 = vmatpush1.msra.mxu0 %v20
    %949 = vmatprep.subr.mxu0 0.0
    %950 = vmatpush2.msra.mxu0 0.0
    %951 = vmatprep.subr.mxu0 0.0
    %952 = vmatpush2.msra.mxu0 0.0
    %953 = vmatprep.subr.mxu0 0.0
    %954 = vmatpush2.msra.mxu0 0.0
    %955 = vmatprep.subr.mxu0 0.0
    %956 = vmatpush2.msra.mxu0 0.0
    %957 = vmatprep.subr.mxu0 0.0
    %958 = vmatpush2.msra.mxu0 0.0
    %959 = vmatprep.subr.mxu0 0.0
    %960 = vmatpush2.msra.mxu0 0.0
    %961 = vmatprep.subr.mxu0 0.0
    %962 = vmatpush2.msra.mxu0 0.0
    %963 = vmatprep.subr.mxu0 0.0
    %964 = vmatpush2.msra.mxu0 0.0
    %965 = vmatprep.subr.mxu0 0.0
    %966 = vmatpush2.msra.mxu0 0.0
    %967 = vmatprep.subr.mxu0 0.0
    %968 = vmatpush2.msra.mxu0 0.0
    %969 = vmatprep.subr.mxu0 0.0
    %970 = vmatpush2.msra.mxu0 0.0
    %971 = vmatprep.subr.mxu0 0.0
    %972 = vmatpush2.msra.mxu0 0.0
    %973 = vmatprep.subr.mxu0 0.0
    %974 = vmatpush2.msra.mxu0 0.0
    %975 = vmatprep.subr.mxu0 0.0
    %976 = vmatpush2.msra.mxu0 0.0
    %977 = vmatprep.subr.mxu0 0.0
    %978 = vmatpush2.msra.mxu0 0.0
    %979 = vmatprep.subr.mxu0 0.0
    %980 = vmatpush2.msra.mxu0 0.0
    %981 = vmatprep.mubr.f32.mxu0 0.0
    %982 = vmatmul.mubr.f32.gmra.mxu0 %v915
    %v983 = vpop.f32.mrf.mxu0
    %v984 = vadd.f32 0.0, %v983
    %v985 = vpop.f32.mrf.mxu0
    %v986 = vadd.f32 0.0, %v985
    %987 = vdwg.mxu0
    %v988 = vadd.f32 %v577, %v984
    %v989 = vxor.u32 %v988, 2147483648
    %v990 = vmul.f32 %v989, 1.442695
    %v991 = vpow.pop %v990
    %v992 = vadd.f32 %v991, 1.0
    %v993 = vrcp.pop %v992
    %v994 = vmul.f32 1.0, %v993
    %v995 = vadd.f32 %v986, %v94
    %v996 = vmul.f32 %v994, %v995
    %v997 = vadd.f32 %v578, %v996
    %v998 = vtanh.pop %v997
    %v999 = vsub.f32 1.0, %v994
    %1001 = vrot.lane.b32.xlu0 %v998, 64
    %v1002 = vpop.permute.xlu0 %1001
    %v1004 = vmul.f32 %v999, %v1002
    %v1005 = vmul.f32 %v994, %v911
    %v1006 = vadd.f32 %v1004, %v1005
    %1008 = vrot.lane.b32.xlu0 %v1006, 64
    %v1009 = vpop.permute.xlu0 %1008
    %v1010 = vsel %vm629, %v1009, 0
    %1012 = vmatprep.subr.mxu0 0.0
    %1013 = vmatpush1.msra.mxu0 0.0
    %1014 = vmatprep.subr.mxu0 0.0
    %1015 = vmatpush1.msra.mxu0 0.0
    %1016 = vmatprep.subr.mxu0 0.0
    %1017 = vmatpush1.msra.mxu0 0.0
    %1018 = vmatprep.subr.mxu0 0.0
    %1019 = vmatpush1.msra.mxu0 0.0
    %1020 = vmatprep.subr.mxu0 0.0
    %1021 = vmatpush1.msra.mxu0 0.0
    %1022 = vmatprep.subr.mxu0 0.0
    %1023 = vmatpush1.msra.mxu0 0.0
    %1024 = vmatprep.subr.mxu0 0.0
    %1025 = vmatpush1.msra.mxu0 0.0
    %1026 = vmatprep.subr.mxu0 0.0
    %1027 = vmatpush1.msra.mxu0 0.0
    %1028 = vmatprep.subr.mxu0 %v35
    %1029 = vmatpush1.msra.mxu0 %v34
    %1030 = vmatprep.subr.mxu0 %v33
    %1031 = vmatpush1.msra.mxu0 %v32
    %1032 = vmatprep.subr.mxu0 %v31
    %1033 = vmatpush1.msra.mxu0 %v30
    %1034 = vmatprep.subr.mxu0 %v29
    %1035 = vmatpush1.msra.mxu0 %v28
    %1036 = vmatprep.subr.mxu0 %v27
    %1037 = vmatpush1.msra.mxu0 %v26
    %1038 = vmatprep.subr.mxu0 %v25
    %1039 = vmatpush1.msra.mxu0 %v24
    %1040 = vmatprep.subr.mxu0 %v23
    %1041 = vmatpush1.msra.mxu0 %v22
    %1042 = vmatprep.subr.mxu0 %v21
    %1043 = vmatpush1.msra.mxu0 %v20
    %1044 = vmatprep.subr.mxu0 0.0
    %1045 = vmatpush2.msra.mxu0 0.0
    %1046 = vmatprep.subr.mxu0 0.0
    %1047 = vmatpush2.msra.mxu0 0.0
    %1048 = vmatprep.subr.mxu0 0.0
    %1049 = vmatpush2.msra.mxu0 0.0
    %1050 = vmatprep.subr.mxu0 0.0
    %1051 = vmatpush2.msra.mxu0 0.0
    %1052 = vmatprep.subr.mxu0 0.0
    %1053 = vmatpush2.msra.mxu0 0.0
    %1054 = vmatprep.subr.mxu0 0.0
    %1055 = vmatpush2.msra.mxu0 0.0
    %1056 = vmatprep.subr.mxu0 0.0
    %1057 = vmatpush2.msra.mxu0 0.0
    %1058 = vmatprep.subr.mxu0 0.0
    %1059 = vmatpush2.msra.mxu0 0.0
    %1060 = vmatprep.subr.mxu0 0.0
    %1061 = vmatpush2.msra.mxu0 0.0
    %1062 = vmatprep.subr.mxu0 0.0
    %1063 = vmatpush2.msra.mxu0 0.0
    %1064 = vmatprep.subr.mxu0 0.0
    %1065 = vmatpush2.msra.mxu0 0.0
    %1066 = vmatprep.subr.mxu0 0.0
    %1067 = vmatpush2.msra.mxu0 0.0
    %1068 = vmatprep.subr.mxu0 0.0
    %1069 = vmatpush2.msra.mxu0 0.0
    %1070 = vmatprep.subr.mxu0 0.0
    %1071 = vmatpush2.msra.mxu0 0.0
    %1072 = vmatprep.subr.mxu0 0.0
    %1073 = vmatpush2.msra.mxu0 0.0
    %1074 = vmatprep.subr.mxu0 0.0
    %1075 = vmatpush2.msra.mxu0 0.0
    %1076 = vmatprep.mubr.f32.mxu0 0.0
    %1077 = vmatmul.mubr.f32.gmra.mxu0 %v1010
    %v1078 = vpop.f32.mrf.mxu0
    %v1079 = vadd.f32 0.0, %v1078
    %v1080 = vpop.f32.mrf.mxu0
    %v1081 = vadd.f32 0.0, %v1080
    %1082 = vdwg.mxu0
    %v1083 = vadd.f32 %v589, %v1079
    %v1084 = vxor.u32 %v1083, 2147483648
    %v1085 = vmul.f32 %v1084, 1.442695
    %v1086 = vpow.pop %v1085
    %v1087 = vadd.f32 %v1086, 1.0
    %v1088 = vrcp.pop %v1087
    %v1089 = vmul.f32 1.0, %v1088
    %v1090 = vadd.f32 %v1081, %v94
    %v1091 = vmul.f32 %v1089, %v1090
    %v1092 = vadd.f32 %v590, %v1091
    %v1093 = vtanh.pop %v1092
    %v1094 = vsub.f32 1.0, %v1089
    %1096 = vrot.lane.b32.xlu0 %v1093, 64
    %v1097 = vpop.permute.xlu0 %1096
    %v1099 = vmul.f32 %v1094, %v1097
    %v1100 = vmul.f32 %v1089, %v1006
    %v1101 = vadd.f32 %v1099, %v1100
    %1103 = vrot.lane.b32.xlu0 %v1101, 64
    %v1104 = vpop.permute.xlu0 %1103
    %v1105 = vsel %vm629, %v1104, 0
    %1107 = vmatprep.subr.mxu0 0.0
    %1108 = vmatpush1.msra.mxu0 0.0
    %1109 = vmatprep.subr.mxu0 0.0
    %1110 = vmatpush1.msra.mxu0 0.0
    %1111 = vmatprep.subr.mxu0 0.0
    %1112 = vmatpush1.msra.mxu0 0.0
    %1113 = vmatprep.subr.mxu0 0.0
    %1114 = vmatpush1.msra.mxu0 0.0
    %1115 = vmatprep.subr.mxu0 0.0
    %1116 = vmatpush1.msra.mxu0 0.0
    %1117 = vmatprep.subr.mxu0 0.0
    %1118 = vmatpush1.msra.mxu0 0.0
    %1119 = vmatprep.subr.mxu0 0.0
    %1120 = vmatpush1.msra.mxu0 0.0
    %1121 = vmatprep.subr.mxu0 0.0
    %1122 = vmatpush1.msra.mxu0 0.0
    %1123 = vmatprep.subr.mxu0 %v35
    %1124 = vmatpush1.msra.mxu0 %v34
    %1125 = vmatprep.subr.mxu0 %v33
    %1126 = vmatpush1.msra.mxu0 %v32
    %1127 = vmatprep.subr.mxu0 %v31
    %1128 = vmatpush1.msra.mxu0 %v30
    %1129 = vmatprep.subr.mxu0 %v29
    %1130 = vmatpush1.msra.mxu0 %v28
    %1131 = vmatprep.subr.mxu0 %v27
    %1132 = vmatpush1.msra.mxu0 %v26
    %1133 = vmatprep.subr.mxu0 %v25
    %1134 = vmatpush1.msra.mxu0 %v24
    %1135 = vmatprep.subr.mxu0 %v23
    %1136 = vmatpush1.msra.mxu0 %v22
    %1137 = vmatprep.subr.mxu0 %v21
    %1138 = vmatpush1.msra.mxu0 %v20
    %1139 = vmatprep.subr.mxu0 0.0
    %1140 = vmatpush2.msra.mxu0 0.0
    %1141 = vmatprep.subr.mxu0 0.0
    %1142 = vmatpush2.msra.mxu0 0.0
    %1143 = vmatprep.subr.mxu0 0.0
    %1144 = vmatpush2.msra.mxu0 0.0
    %1145 = vmatprep.subr.mxu0 0.0
    %1146 = vmatpush2.msra.mxu0 0.0
    %1147 = vmatprep.subr.mxu0 0.0
    %1148 = vmatpush2.msra.mxu0 0.0
    %1149 = vmatprep.subr.mxu0 0.0
    %1150 = vmatpush2.msra.mxu0 0.0
    %1151 = vmatprep.subr.mxu0 0.0
    %1152 = vmatpush2.msra.mxu0 0.0
    %1153 = vmatprep.subr.mxu0 0.0
    %1154 = vmatpush2.msra.mxu0 0.0
    %1155 = vmatprep.subr.mxu0 0.0
    %1156 = vmatpush2.msra.mxu0 0.0
    %1157 = vmatprep.subr.mxu0 0.0
    %1158 = vmatpush2.msra.mxu0 0.0
    %1159 = vmatprep.subr.mxu0 0.0
    %1160 = vmatpush2.msra.mxu0 0.0
    %1161 = vmatprep.subr.mxu0 0.0
    %1162 = vmatpush2.msra.mxu0 0.0
    %1163 = vmatprep.subr.mxu0 0.0
    %1164 = vmatpush2.msra.mxu0 0.0
    %1165 = vmatprep.subr.mxu0 0.0
    %1166 = vmatpush2.msra.mxu0 0.0
    %1167 = vmatprep.subr.mxu0 0.0
    %1168 = vmatpush2.msra.mxu0 0.0
    %1169 = vmatprep.subr.mxu0 0.0
    %1170 = vmatpush2.msra.mxu0 0.0
    %1171 = vmatprep.mubr.f32.mxu0 0.0
    %1172 = vmatmul.mubr.f32.gmra.mxu0 %v1105
    %v1173 = vpop.f32.mrf.mxu0
    %v1174 = vadd.f32 0.0, %v1173
    %v1175 = vpop.f32.mrf.mxu0
    %v1176 = vadd.f32 0.0, %v1175
    %1177 = vdwg.mxu0
    %v1178 = vadd.f32 %v599, %v1174
    %v1179 = vxor.u32 %v1178, 2147483648
    %v1180 = vmul.f32 %v1179, 1.442695
    %v1181 = vpow.pop %v1180
    %v1182 = vadd.f32 %v1181, 1.0
    %v1183 = vrcp.pop %v1182
    %v1184 = vmul.f32 1.0, %v1183
    %v1185 = vadd.f32 %v1176, %v94
    %v1186 = vmul.f32 %v1184, %v1185
    %v1187 = vadd.f32 %v600, %v1186
    %v1188 = vtanh.pop %v1187
    %v1189 = vsub.f32 1.0, %v1184
    %1191 = vrot.lane.b32.xlu0 %v1188, 64
    %v1192 = vpop.permute.xlu0 %1191
    %v1194 = vmul.f32 %v1189, %v1192
    %v1195 = vmul.f32 %v1184, %v1101
    %v1196 = vadd.f32 %v1194, %v1195
    %1198 = vrot.lane.b32.xlu0 %v1196, 64
    %v1199 = vpop.permute.xlu0 %1198
    %v1200 = vsel %vm629, %v1199, 0
    %1202 = vmatprep.subr.mxu0 0.0
    %1203 = vmatpush1.msra.mxu0 0.0
    %1204 = vmatprep.subr.mxu0 0.0
    %1205 = vmatpush1.msra.mxu0 0.0
    %1206 = vmatprep.subr.mxu0 0.0
    %1207 = vmatpush1.msra.mxu0 0.0
    %1208 = vmatprep.subr.mxu0 0.0
    %1209 = vmatpush1.msra.mxu0 0.0
    %1210 = vmatprep.subr.mxu0 0.0
    %1211 = vmatpush1.msra.mxu0 0.0
    %1212 = vmatprep.subr.mxu0 0.0
    %1213 = vmatpush1.msra.mxu0 0.0
    %1214 = vmatprep.subr.mxu0 0.0
    %1215 = vmatpush1.msra.mxu0 0.0
    %1216 = vmatprep.subr.mxu0 0.0
    %1217 = vmatpush1.msra.mxu0 0.0
    %1218 = vmatprep.subr.mxu0 %v35
    %1219 = vmatpush1.msra.mxu0 %v34
    %1220 = vmatprep.subr.mxu0 %v33
    %1221 = vmatpush1.msra.mxu0 %v32
    %1222 = vmatprep.subr.mxu0 %v31
    %1223 = vmatpush1.msra.mxu0 %v30
    %1224 = vmatprep.subr.mxu0 %v29
    %1225 = vmatpush1.msra.mxu0 %v28
    %1226 = vmatprep.subr.mxu0 %v27
    %1227 = vmatpush1.msra.mxu0 %v26
    %1228 = vmatprep.subr.mxu0 %v25
    %1229 = vmatpush1.msra.mxu0 %v24
    %1230 = vmatprep.subr.mxu0 %v23
    %1231 = vmatpush1.msra.mxu0 %v22
    %1232 = vmatprep.subr.mxu0 %v21
    %1233 = vmatpush1.msra.mxu0 %v20
    %1234 = vmatprep.subr.mxu0 0.0
    %1235 = vmatpush2.msra.mxu0 0.0
    %1236 = vmatprep.subr.mxu0 0.0
    %1237 = vmatpush2.msra.mxu0 0.0
    %1238 = vmatprep.subr.mxu0 0.0
    %1239 = vmatpush2.msra.mxu0 0.0
    %1240 = vmatprep.subr.mxu0 0.0
    %1241 = vmatpush2.msra.mxu0 0.0
    %1242 = vmatprep.subr.mxu0 0.0
    %1243 = vmatpush2.msra.mxu0 0.0
    %1244 = vmatprep.subr.mxu0 0.0
    %1245 = vmatpush2.msra.mxu0 0.0
    %1246 = vmatprep.subr.mxu0 0.0
    %1247 = vmatpush2.msra.mxu0 0.0
    %1248 = vmatprep.subr.mxu0 0.0
    %1249 = vmatpush2.msra.mxu0 0.0
    %1250 = vmatprep.subr.mxu0 0.0
    %1251 = vmatpush2.msra.mxu0 0.0
    %1252 = vmatprep.subr.mxu0 0.0
    %1253 = vmatpush2.msra.mxu0 0.0
    %1254 = vmatprep.subr.mxu0 0.0
    %1255 = vmatpush2.msra.mxu0 0.0
    %1256 = vmatprep.subr.mxu0 0.0
    %1257 = vmatpush2.msra.mxu0 0.0
    %1258 = vmatprep.subr.mxu0 0.0
    %1259 = vmatpush2.msra.mxu0 0.0
    %1260 = vmatprep.subr.mxu0 0.0
    %1261 = vmatpush2.msra.mxu0 0.0
    %1262 = vmatprep.subr.mxu0 0.0
    %1263 = vmatpush2.msra.mxu0 0.0
    %1264 = vmatprep.subr.mxu0 0.0
    %1265 = vmatpush2.msra.mxu0 0.0
    %1266 = vmatprep.mubr.f32.mxu0 0.0
    %1267 = vmatmul.mubr.f32.gmra.mxu0 %v1200
    %v1268 = vpop.f32.mrf.mxu0
    %v1269 = vadd.f32 0.0, %v1268
    %v1270 = vpop.f32.mrf.mxu0
    %v1271 = vadd.f32 0.0, %v1270
    %1272 = vdwg.mxu0
    %v1273 = vadd.f32 %v609, %v1269
    %v1274 = vxor.u32 %v1273, 2147483648
    %v1275 = vmul.f32 %v1274, 1.442695
    %v1276 = vpow.pop %v1275
    %v1277 = vadd.f32 %v1276, 1.0
    %v1278 = vrcp.pop %v1277
    %v1279 = vmul.f32 1.0, %v1278
    %v1280 = vadd.f32 %v1271, %v94
    %v1281 = vmul.f32 %v1279, %v1280
    %v1282 = vadd.f32 %v610, %v1281
    %v1283 = vtanh.pop %v1282
    %v1284 = vsub.f32 1.0, %v1279
    %1286 = vrot.lane.b32.xlu0 %v1283, 64
    %v1287 = vpop.permute.xlu0 %1286
    %v1289 = vmul.f32 %v1284, %v1287
    %v1290 = vmul.f32 %v1279, %v1196
    %v1291 = vadd.f32 %v1289, %v1290
    %v1293 = vsel %vm629, %v628, %v1291
    %v1295 = vlaneseq
    %v1296 = vshrl.u32 %v1295, 7
    %v1297 = vsub.s32 0, %v1296
    %v1298 = vrot.slane %v96, %v1297
    %v1299 = vlaneseq
    %v1300 = vshrl.u32 %v1299, 7
    %v1301 = vsub.s32 1, %v1300
    %v1302 = vrot.slane %v96, %v1301
    %1305 = vmatprep.subr.mxu0 %v67
    %1306 = vmatpush1.msra.mxu0 %v66
    %1307 = vmatprep.subr.mxu0 %v65
    %1308 = vmatpush1.msra.mxu0 %v64
    %1309 = vmatprep.subr.mxu0 %v63
    %1310 = vmatpush1.msra.mxu0 %v62
    %1311 = vmatprep.subr.mxu0 %v61
    %1312 = vmatpush1.msra.mxu0 %v60
    %1313 = vmatprep.subr.mxu0 %v59
    %1314 = vmatpush1.msra.mxu0 %v58
    %1315 = vmatprep.subr.mxu0 %v57
    %1316 = vmatpush1.msra.mxu0 %v56
    %1317 = vmatprep.subr.mxu0 %v55
    %1318 = vmatpush1.msra.mxu0 %v54
    %1319 = vmatprep.subr.mxu0 %v53
    %1320 = vmatpush1.msra.mxu0 %v52
    %1321 = vmatprep.subr.mxu0 %v51
    %1322 = vmatpush1.msra.mxu0 %v50
    %1323 = vmatprep.subr.mxu0 %v49
    %1324 = vmatpush1.msra.mxu0 %v48
    %1325 = vmatprep.subr.mxu0 %v47
    %1326 = vmatpush1.msra.mxu0 %v46
    %1327 = vmatprep.subr.mxu0 %v45
    %1328 = vmatpush1.msra.mxu0 %v44
    %1329 = vmatprep.subr.mxu0 %v43
    %1330 = vmatpush1.msra.mxu0 %v42
    %1331 = vmatprep.subr.mxu0 %v41
    %1332 = vmatpush1.msra.mxu0 %v40
    %1333 = vmatprep.subr.mxu0 %v39
    %1334 = vmatpush1.msra.mxu0 %v38
    %1335 = vmatprep.subr.mxu0 %v37
    %1336 = vmatpush1.msra.mxu0 %v36
    %1337 = vmatprep.subr.mxu0 0.0
    %1338 = vmatpush2.msra.mxu0 0.0
    %1339 = vmatprep.subr.mxu0 0.0
    %1340 = vmatpush2.msra.mxu0 0.0
    %1341 = vmatprep.subr.mxu0 0.0
    %1342 = vmatpush2.msra.mxu0 0.0
    %1343 = vmatprep.subr.mxu0 0.0
    %1344 = vmatpush2.msra.mxu0 0.0
    %1345 = vmatprep.subr.mxu0 0.0
    %1346 = vmatpush2.msra.mxu0 0.0
    %1347 = vmatprep.subr.mxu0 0.0
    %1348 = vmatpush2.msra.mxu0 0.0
    %1349 = vmatprep.subr.mxu0 0.0
    %1350 = vmatpush2.msra.mxu0 0.0
    %1351 = vmatprep.subr.mxu0 0.0
    %1352 = vmatpush2.msra.mxu0 0.0
    %1353 = vmatprep.subr.mxu0 0.0
    %1354 = vmatpush2.msra.mxu0 0.0
    %1355 = vmatprep.subr.mxu0 0.0
    %1356 = vmatpush2.msra.mxu0 0.0
    %1357 = vmatprep.subr.mxu0 0.0
    %1358 = vmatpush2.msra.mxu0 0.0
    %1359 = vmatprep.subr.mxu0 0.0
    %1360 = vmatpush2.msra.mxu0 0.0
    %1361 = vmatprep.subr.mxu0 0.0
    %1362 = vmatpush2.msra.mxu0 0.0
    %1363 = vmatprep.subr.mxu0 0.0
    %1364 = vmatpush2.msra.mxu0 0.0
    %1365 = vmatprep.subr.mxu0 0.0
    %1366 = vmatpush2.msra.mxu0 0.0
    %1367 = vmatprep.subr.mxu0 0.0
    %1368 = vmatpush2.msra.mxu0 0.0
    %1369 = vmatprep.mubr.f32.mxu0 0.0
    %1370 = vmatmul.mubr.f32.gmra.mxu0 %v1293
    %v1371 = vpop.f32.mrf.mxu0
    %v1372 = vadd.f32 %v1298, %v1371
    %v1373 = vpop.f32.mrf.mxu0
    %v1374 = vadd.f32 %v1302, %v1373
    %1375 = vdwg.mxu0
    %v1377 = vsel %vm629, %v724, %v1196
    %1378 = vmatprep.subr.mxu0 %v67
    %1379 = vmatpush1.msra.mxu0 %v66
    %1380 = vmatprep.subr.mxu0 %v65
    %1381 = vmatpush1.msra.mxu0 %v64
    %1382 = vmatprep.subr.mxu0 %v63
    %1383 = vmatpush1.msra.mxu0 %v62
    %1384 = vmatprep.subr.mxu0 %v61
    %1385 = vmatpush1.msra.mxu0 %v60
    %1386 = vmatprep.subr.mxu0 %v59
    %1387 = vmatpush1.msra.mxu0 %v58
    %1388 = vmatprep.subr.mxu0 %v57
    %1389 = vmatpush1.msra.mxu0 %v56
    %1390 = vmatprep.subr.mxu0 %v55
    %1391 = vmatpush1.msra.mxu0 %v54
    %1392 = vmatprep.subr.mxu0 %v53
    %1393 = vmatpush1.msra.mxu0 %v52
    %1394 = vmatprep.subr.mxu0 %v51
    %1395 = vmatpush1.msra.mxu0 %v50
    %1396 = vmatprep.subr.mxu0 %v49
    %1397 = vmatpush1.msra.mxu0 %v48
    %1398 = vmatprep.subr.mxu0 %v47
    %1399 = vmatpush1.msra.mxu0 %v46
    %1400 = vmatprep.subr.mxu0 %v45
    %1401 = vmatpush1.msra.mxu0 %v44
    %1402 = vmatprep.subr.mxu0 %v43
    %1403 = vmatpush1.msra.mxu0 %v42
    %1404 = vmatprep.subr.mxu0 %v41
    %1405 = vmatpush1.msra.mxu0 %v40
    %1406 = vmatprep.subr.mxu0 %v39
    %1407 = vmatpush1.msra.mxu0 %v38
    %1408 = vmatprep.subr.mxu0 %v37
    %1409 = vmatpush1.msra.mxu0 %v36
    %1410 = vmatprep.subr.mxu0 0.0
    %1411 = vmatpush2.msra.mxu0 0.0
    %1412 = vmatprep.subr.mxu0 0.0
    %1413 = vmatpush2.msra.mxu0 0.0
    %1414 = vmatprep.subr.mxu0 0.0
    %1415 = vmatpush2.msra.mxu0 0.0
    %1416 = vmatprep.subr.mxu0 0.0
    %1417 = vmatpush2.msra.mxu0 0.0
    %1418 = vmatprep.subr.mxu0 0.0
    %1419 = vmatpush2.msra.mxu0 0.0
    %1420 = vmatprep.subr.mxu0 0.0
    %1421 = vmatpush2.msra.mxu0 0.0
    %1422 = vmatprep.subr.mxu0 0.0
    %1423 = vmatpush2.msra.mxu0 0.0
    %1424 = vmatprep.subr.mxu0 0.0
    %1425 = vmatpush2.msra.mxu0 0.0
    %1426 = vmatprep.subr.mxu0 0.0
    %1427 = vmatpush2.msra.mxu0 0.0
    %1428 = vmatprep.subr.mxu0 0.0
    %1429 = vmatpush2.msra.mxu0 0.0
    %1430 = vmatprep.subr.mxu0 0.0
    %1431 = vmatpush2.msra.mxu0 0.0
    %1432 = vmatprep.subr.mxu0 0.0
    %1433 = vmatpush2.msra.mxu0 0.0
    %1434 = vmatprep.subr.mxu0 0.0
    %1435 = vmatpush2.msra.mxu0 0.0
    %1436 = vmatprep.subr.mxu0 0.0
    %1437 = vmatpush2.msra.mxu0 0.0
    %1438 = vmatprep.subr.mxu0 0.0
    %1439 = vmatpush2.msra.mxu0 0.0
    %1440 = vmatprep.subr.mxu0 0.0
    %1441 = vmatpush2.msra.mxu0 0.0
    %1442 = vmatprep.mubr.f32.mxu0 0.0
    %1443 = vmatmul.mubr.f32.gmra.mxu0 %v1377
    %v1444 = vpop.f32.mrf.mxu0
    %v1445 = vadd.f32 %v1298, %v1444
    %v1446 = vpop.f32.mrf.mxu0
    %v1447 = vadd.f32 %v1302, %v1446
    %1448 = vdwg.mxu0
    %v1450 = vsel %vm629, %v819, %v1101
    %1451 = vmatprep.subr.mxu0 %v67
    %1452 = vmatpush1.msra.mxu0 %v66
    %1453 = vmatprep.subr.mxu0 %v65
    %1454 = vmatpush1.msra.mxu0 %v64
    %1455 = vmatprep.subr.mxu0 %v63
    %1456 = vmatpush1.msra.mxu0 %v62
    %1457 = vmatprep.subr.mxu0 %v61
    %1458 = vmatpush1.msra.mxu0 %v60
    %1459 = vmatprep.subr.mxu0 %v59
    %1460 = vmatpush1.msra.mxu0 %v58
    %1461 = vmatprep.subr.mxu0 %v57
    %1462 = vmatpush1.msra.mxu0 %v56
    %1463 = vmatprep.subr.mxu0 %v55
    %1464 = vmatpush1.msra.mxu0 %v54
    %1465 = vmatprep.subr.mxu0 %v53
    %1466 = vmatpush1.msra.mxu0 %v52
    %1467 = vmatprep.subr.mxu0 %v51
    %1468 = vmatpush1.msra.mxu0 %v50
    %1469 = vmatprep.subr.mxu0 %v49
    %1470 = vmatpush1.msra.mxu0 %v48
    %1471 = vmatprep.subr.mxu0 %v47
    %1472 = vmatpush1.msra.mxu0 %v46
    %1473 = vmatprep.subr.mxu0 %v45
    %1474 = vmatpush1.msra.mxu0 %v44
    %1475 = vmatprep.subr.mxu0 %v43
    %1476 = vmatpush1.msra.mxu0 %v42
    %1477 = vmatprep.subr.mxu0 %v41
    %1478 = vmatpush1.msra.mxu0 %v40
    %1479 = vmatprep.subr.mxu0 %v39
    %1480 = vmatpush1.msra.mxu0 %v38
    %1481 = vmatprep.subr.mxu0 %v37
    %1482 = vmatpush1.msra.mxu0 %v36
    %1483 = vmatprep.subr.mxu0 0.0
    %1484 = vmatpush2.msra.mxu0 0.0
    %1485 = vmatprep.subr.mxu0 0.0
    %1486 = vmatpush2.msra.mxu0 0.0
    %1487 = vmatprep.subr.mxu0 0.0
    %1488 = vmatpush2.msra.mxu0 0.0
    %1489 = vmatprep.subr.mxu0 0.0
    %1490 = vmatpush2.msra.mxu0 0.0
    %1491 = vmatprep.subr.mxu0 0.0
    %1492 = vmatpush2.msra.mxu0 0.0
    %1493 = vmatprep.subr.mxu0 0.0
    %1494 = vmatpush2.msra.mxu0 0.0
    %1495 = vmatprep.subr.mxu0 0.0
    %1496 = vmatpush2.msra.mxu0 0.0
    %1497 = vmatprep.subr.mxu0 0.0
    %1498 = vmatpush2.msra.mxu0 0.0
    %1499 = vmatprep.subr.mxu0 0.0
    %1500 = vmatpush2.msra.mxu0 0.0
    %1501 = vmatprep.subr.mxu0 0.0
    %1502 = vmatpush2.msra.mxu0 0.0
    %1503 = vmatprep.subr.mxu0 0.0
    %1504 = vmatpush2.msra.mxu0 0.0
    %1505 = vmatprep.subr.mxu0 0.0
    %1506 = vmatpush2.msra.mxu0 0.0
    %1507 = vmatprep.subr.mxu0 0.0
    %1508 = vmatpush2.msra.mxu0 0.0
    %1509 = vmatprep.subr.mxu0 0.0
    %1510 = vmatpush2.msra.mxu0 0.0
    %1511 = vmatprep.subr.mxu0 0.0
    %1512 = vmatpush2.msra.mxu0 0.0
    %1513 = vmatprep.subr.mxu0 0.0
    %1514 = vmatpush2.msra.mxu0 0.0
    %1515 = vmatprep.mubr.f32.mxu0 0.0
    %1516 = vmatmul.mubr.f32.gmra.mxu0 %v1450
    %v1517 = vpop.f32.mrf.mxu0
    %v1518 = vadd.f32 %v1298, %v1517
    %v1519 = vpop.f32.mrf.mxu0
    %v1520 = vadd.f32 %v1302, %v1519
    %1521 = vdwg.mxu0
    %v1523 = vsel %vm629, %v914, %v1006
    %1524 = vmatprep.subr.mxu0 %v67
    %1525 = vmatpush1.msra.mxu0 %v66
    %1526 = vmatprep.subr.mxu0 %v65
    %1527 = vmatpush1.msra.mxu0 %v64
    %1528 = vmatprep.subr.mxu0 %v63
    %1529 = vmatpush1.msra.mxu0 %v62
    %1530 = vmatprep.subr.mxu0 %v61
    %1531 = vmatpush1.msra.mxu0 %v60
    %1532 = vmatprep.subr.mxu0 %v59
    %1533 = vmatpush1.msra.mxu0 %v58
    %1534 = vmatprep.subr.mxu0 %v57
    %1535 = vmatpush1.msra.mxu0 %v56
    %1536 = vmatprep.subr.mxu0 %v55
    %1537 = vmatpush1.msra.mxu0 %v54
    %1538 = vmatprep.subr.mxu0 %v53
    %1539 = vmatpush1.msra.mxu0 %v52
    %1540 = vmatprep.subr.mxu0 %v51
    %1541 = vmatpush1.msra.mxu0 %v50
    %1542 = vmatprep.subr.mxu0 %v49
    %1543 = vmatpush1.msra.mxu0 %v48
    %1544 = vmatprep.subr.mxu0 %v47
    %1545 = vmatpush1.msra.mxu0 %v46
    %1546 = vmatprep.subr.mxu0 %v45
    %1547 = vmatpush1.msra.mxu0 %v44
    %1548 = vmatprep.subr.mxu0 %v43
    %1549 = vmatpush1.msra.mxu0 %v42
    %1550 = vmatprep.subr.mxu0 %v41
    %1551 = vmatpush1.msra.mxu0 %v40
    %1552 = vmatprep.subr.mxu0 %v39
    %1553 = vmatpush1.msra.mxu0 %v38
    %1554 = vmatprep.subr.mxu0 %v37
    %1555 = vmatpush1.msra.mxu0 %v36
    %1556 = vmatprep.subr.mxu0 0.0
    %1557 = vmatpush2.msra.mxu0 0.0
    %1558 = vmatprep.subr.mxu0 0.0
    %1559 = vmatpush2.msra.mxu0 0.0
    %1560 = vmatprep.subr.mxu0 0.0
    %1561 = vmatpush2.msra.mxu0 0.0
    %1562 = vmatprep.subr.mxu0 0.0
    %1563 = vmatpush2.msra.mxu0 0.0
    %1564 = vmatprep.subr.mxu0 0.0
    %1565 = vmatpush2.msra.mxu0 0.0
    %1566 = vmatprep.subr.mxu0 0.0
    %1567 = vmatpush2.msra.mxu0 0.0
    %1568 = vmatprep.subr.mxu0 0.0
    %1569 = vmatpush2.msra.mxu0 0.0
    %1570 = vmatprep.subr.mxu0 0.0
    %1571 = vmatpush2.msra.mxu0 0.0
    %1572 = vmatprep.subr.mxu0 0.0
    %1573 = vmatpush2.msra.mxu0 0.0
    %1574 = vmatprep.subr.mxu0 0.0
    %1575 = vmatpush2.msra.mxu0 0.0
    %1576 = vmatprep.subr.mxu0 0.0
    %1577 = vmatpush2.msra.mxu0 0.0
    %1578 = vmatprep.subr.mxu0 0.0
    %1579 = vmatpush2.msra.mxu0 0.0
    %1580 = vmatprep.subr.mxu0 0.0
    %1581 = vmatpush2.msra.mxu0 0.0
    %1582 = vmatprep.subr.mxu0 0.0
    %1583 = vmatpush2.msra.mxu0 0.0
    %1584 = vmatprep.subr.mxu0 0.0
    %1585 = vmatpush2.msra.mxu0 0.0
    %1586 = vmatprep.subr.mxu0 0.0
    %1587 = vmatpush2.msra.mxu0 0.0
    %1588 = vmatprep.mubr.f32.mxu0 0.0
    %1589 = vmatmul.mubr.f32.gmra.mxu0 %v1523
    %v1590 = vpop.f32.mrf.mxu0
    %v1591 = vadd.f32 %v1298, %v1590
    %v1592 = vpop.f32.mrf.mxu0
    %v1593 = vadd.f32 %v1302, %v1592
    %1594 = vdwg.mxu0
    %v1596 = vsel %vm629, %v1009, %v911
    %1597 = vmatprep.subr.mxu0 %v67
    %1598 = vmatpush1.msra.mxu0 %v66
    %1599 = vmatprep.subr.mxu0 %v65
    %1600 = vmatpush1.msra.mxu0 %v64
    %1601 = vmatprep.subr.mxu0 %v63
    %1602 = vmatpush1.msra.mxu0 %v62
    %1603 = vmatprep.subr.mxu0 %v61
    %1604 = vmatpush1.msra.mxu0 %v60
    %1605 = vmatprep.subr.mxu0 %v59
    %1606 = vmatpush1.msra.mxu0 %v58
    %1607 = vmatprep.subr.mxu0 %v57
    %1608 = vmatpush1.msra.mxu0 %v56
    %1609 = vmatprep.subr.mxu0 %v55
    %1610 = vmatpush1.msra.mxu0 %v54
    %1611 = vmatprep.subr.mxu0 %v53
    %1612 = vmatpush1.msra.mxu0 %v52
    %1613 = vmatprep.subr.mxu0 %v51
    %1614 = vmatpush1.msra.mxu0 %v50
    %1615 = vmatprep.subr.mxu0 %v49
    %1616 = vmatpush1.msra.mxu0 %v48
    %1617 = vmatprep.subr.mxu0 %v47
    %1618 = vmatpush1.msra.mxu0 %v46
    %1619 = vmatprep.subr.mxu0 %v45
    %1620 = vmatpush1.msra.mxu0 %v44
    %1621 = vmatprep.subr.mxu0 %v43
    %1622 = vmatpush1.msra.mxu0 %v42
    %1623 = vmatprep.subr.mxu0 %v41
    %1624 = vmatpush1.msra.mxu0 %v40
    %1625 = vmatprep.subr.mxu0 %v39
    %1626 = vmatpush1.msra.mxu0 %v38
    %1627 = vmatprep.subr.mxu0 %v37
    %1628 = vmatpush1.msra.mxu0 %v36
    %1629 = vmatprep.subr.mxu0 0.0
    %1630 = vmatpush2.msra.mxu0 0.0
    %1631 = vmatprep.subr.mxu0 0.0
    %1632 = vmatpush2.msra.mxu0 0.0
    %1633 = vmatprep.subr.mxu0 0.0
    %1634 = vmatpush2.msra.mxu0 0.0
    %1635 = vmatprep.subr.mxu0 0.0
    %1636 = vmatpush2.msra.mxu0 0.0
    %1637 = vmatprep.subr.mxu0 0.0
    %1638 = vmatpush2.msra.mxu0 0.0
    %1639 = vmatprep.subr.mxu0 0.0
    %1640 = vmatpush2.msra.mxu0 0.0
    %1641 = vmatprep.subr.mxu0 0.0
    %1642 = vmatpush2.msra.mxu0 0.0
    %1643 = vmatprep.subr.mxu0 0.0
    %1644 = vmatpush2.msra.mxu0 0.0
    %1645 = vmatprep.subr.mxu0 0.0
    %1646 = vmatpush2.msra.mxu0 0.0
    %1647 = vmatprep.subr.mxu0 0.0
    %1648 = vmatpush2.msra.mxu0 0.0
    %1649 = vmatprep.subr.mxu0 0.0
    %1650 = vmatpush2.msra.mxu0 0.0
    %1651 = vmatprep.subr.mxu0 0.0
    %1652 = vmatpush2.msra.mxu0 0.0
    %1653 = vmatprep.subr.mxu0 0.0
    %1654 = vmatpush2.msra.mxu0 0.0
    %1655 = vmatprep.subr.mxu0 0.0
    %1656 = vmatpush2.msra.mxu0 0.0
    %1657 = vmatprep.subr.mxu0 0.0
    %1658 = vmatpush2.msra.mxu0 0.0
    %1659 = vmatprep.subr.mxu0 0.0
    %1660 = vmatpush2.msra.mxu0 0.0
    %1661 = vmatprep.mubr.f32.mxu0 0.0
    %1662 = vmatmul.mubr.f32.gmra.mxu0 %v1596
    %v1663 = vpop.f32.mrf.mxu0
    %v1664 = vadd.f32 %v1298, %v1663
    %v1665 = vpop.f32.mrf.mxu0
    %v1666 = vadd.f32 %v1302, %v1665
    %1667 = vdwg.mxu0
    %v1669 = vsel %vm629, %v1104, %v816
    %1670 = vmatprep.subr.mxu0 %v67
    %1671 = vmatpush1.msra.mxu0 %v66
    %1672 = vmatprep.subr.mxu0 %v65
    %1673 = vmatpush1.msra.mxu0 %v64
    %1674 = vmatprep.subr.mxu0 %v63
    %1675 = vmatpush1.msra.mxu0 %v62
    %1676 = vmatprep.subr.mxu0 %v61
    %1677 = vmatpush1.msra.mxu0 %v60
    %1678 = vmatprep.subr.mxu0 %v59
    %1679 = vmatpush1.msra.mxu0 %v58
    %1680 = vmatprep.subr.mxu0 %v57
    %1681 = vmatpush1.msra.mxu0 %v56
    %1682 = vmatprep.subr.mxu0 %v55
    %1683 = vmatpush1.msra.mxu0 %v54
    %1684 = vmatprep.subr.mxu0 %v53
    %1685 = vmatpush1.msra.mxu0 %v52
    %1686 = vmatprep.subr.mxu0 %v51
    %1687 = vmatpush1.msra.mxu0 %v50
    %1688 = vmatprep.subr.mxu0 %v49
    %1689 = vmatpush1.msra.mxu0 %v48
    %1690 = vmatprep.subr.mxu0 %v47
    %1691 = vmatpush1.msra.mxu0 %v46
    %1692 = vmatprep.subr.mxu0 %v45
    %1693 = vmatpush1.msra.mxu0 %v44
    %1694 = vmatprep.subr.mxu0 %v43
    %1695 = vmatpush1.msra.mxu0 %v42
    %1696 = vmatprep.subr.mxu0 %v41
    %1697 = vmatpush1.msra.mxu0 %v40
    %1698 = vmatprep.subr.mxu0 %v39
    %1699 = vmatpush1.msra.mxu0 %v38
    %1700 = vmatprep.subr.mxu0 %v37
    %1701 = vmatpush1.msra.mxu0 %v36
    %1702 = vmatprep.subr.mxu0 0.0
    %1703 = vmatpush2.msra.mxu0 0.0
    %1704 = vmatprep.subr.mxu0 0.0
    %1705 = vmatpush2.msra.mxu0 0.0
    %1706 = vmatprep.subr.mxu0 0.0
    %1707 = vmatpush2.msra.mxu0 0.0
    %1708 = vmatprep.subr.mxu0 0.0
    %1709 = vmatpush2.msra.mxu0 0.0
    %1710 = vmatprep.subr.mxu0 0.0
    %1711 = vmatpush2.msra.mxu0 0.0
    %1712 = vmatprep.subr.mxu0 0.0
    %1713 = vmatpush2.msra.mxu0 0.0
    %1714 = vmatprep.subr.mxu0 0.0
    %1715 = vmatpush2.msra.mxu0 0.0
    %1716 = vmatprep.subr.mxu0 0.0
    %1717 = vmatpush2.msra.mxu0 0.0
    %1718 = vmatprep.subr.mxu0 0.0
    %1719 = vmatpush2.msra.mxu0 0.0
    %1720 = vmatprep.subr.mxu0 0.0
    %1721 = vmatpush2.msra.mxu0 0.0
    %1722 = vmatprep.subr.mxu0 0.0
    %1723 = vmatpush2.msra.mxu0 0.0
    %1724 = vmatprep.subr.mxu0 0.0
    %1725 = vmatpush2.msra.mxu0 0.0
    %1726 = vmatprep.subr.mxu0 0.0
    %1727 = vmatpush2.msra.mxu0 0.0
    %1728 = vmatprep.subr.mxu0 0.0
    %1729 = vmatpush2.msra.mxu0 0.0
    %1730 = vmatprep.subr.mxu0 0.0
    %1731 = vmatpush2.msra.mxu0 0.0
    %1732 = vmatprep.subr.mxu0 0.0
    %1733 = vmatpush2.msra.mxu0 0.0
    %1734 = vmatprep.mubr.f32.mxu0 0.0
    %1735 = vmatmul.mubr.f32.gmra.mxu0 %v1669
    %v1736 = vpop.f32.mrf.mxu0
    %v1737 = vadd.f32 %v1298, %v1736
    %v1738 = vpop.f32.mrf.mxu0
    %v1739 = vadd.f32 %v1302, %v1738
    %1740 = vdwg.mxu0
    %v1742 = vsel %vm629, %v1199, %v721
    %1743 = vmatprep.subr.mxu0 %v67
    %1744 = vmatpush1.msra.mxu0 %v66
    %1745 = vmatprep.subr.mxu0 %v65
    %1746 = vmatpush1.msra.mxu0 %v64
    %1747 = vmatprep.subr.mxu0 %v63
    %1748 = vmatpush1.msra.mxu0 %v62
    %1749 = vmatprep.subr.mxu0 %v61
    %1750 = vmatpush1.msra.mxu0 %v60
    %1751 = vmatprep.subr.mxu0 %v59
    %1752 = vmatpush1.msra.mxu0 %v58
    %1753 = vmatprep.subr.mxu0 %v57
    %1754 = vmatpush1.msra.mxu0 %v56
    %1755 = vmatprep.subr.mxu0 %v55
    %1756 = vmatpush1.msra.mxu0 %v54
    %1757 = vmatprep.subr.mxu0 %v53
    %1758 = vmatpush1.msra.mxu0 %v52
    %1759 = vmatprep.subr.mxu0 %v51
    %1760 = vmatpush1.msra.mxu0 %v50
    %1761 = vmatprep.subr.mxu0 %v49
    %1762 = vmatpush1.msra.mxu0 %v48
    %1763 = vmatprep.subr.mxu0 %v47
    %1764 = vmatpush1.msra.mxu0 %v46
    %1765 = vmatprep.subr.mxu0 %v45
    %1766 = vmatpush1.msra.mxu0 %v44
    %1767 = vmatprep.subr.mxu0 %v43
    %1768 = vmatpush1.msra.mxu0 %v42
    %1769 = vmatprep.subr.mxu0 %v41
    %1770 = vmatpush1.msra.mxu0 %v40
    %1771 = vmatprep.subr.mxu0 %v39
    %1772 = vmatpush1.msra.mxu0 %v38
    %1773 = vmatprep.subr.mxu0 %v37
    %1774 = vmatpush1.msra.mxu0 %v36
    %1775 = vmatprep.subr.mxu0 0.0
    %1776 = vmatpush2.msra.mxu0 0.0
    %1777 = vmatprep.subr.mxu0 0.0
    %1778 = vmatpush2.msra.mxu0 0.0
    %1779 = vmatprep.subr.mxu0 0.0
    %1780 = vmatpush2.msra.mxu0 0.0
    %1781 = vmatprep.subr.mxu0 0.0
    %1782 = vmatpush2.msra.mxu0 0.0
    %1783 = vmatprep.subr.mxu0 0.0
    %1784 = vmatpush2.msra.mxu0 0.0
    %1785 = vmatprep.subr.mxu0 0.0
    %1786 = vmatpush2.msra.mxu0 0.0
    %1787 = vmatprep.subr.mxu0 0.0
    %1788 = vmatpush2.msra.mxu0 0.0
    %1789 = vmatprep.subr.mxu0 0.0
    %1790 = vmatpush2.msra.mxu0 0.0
    %1791 = vmatprep.subr.mxu0 0.0
    %1792 = vmatpush2.msra.mxu0 0.0
    %1793 = vmatprep.subr.mxu0 0.0
    %1794 = vmatpush2.msra.mxu0 0.0
    %1795 = vmatprep.subr.mxu0 0.0
    %1796 = vmatpush2.msra.mxu0 0.0
    %1797 = vmatprep.subr.mxu0 0.0
    %1798 = vmatpush2.msra.mxu0 0.0
    %1799 = vmatprep.subr.mxu0 0.0
    %1800 = vmatpush2.msra.mxu0 0.0
    %1801 = vmatprep.subr.mxu0 0.0
    %1802 = vmatpush2.msra.mxu0 0.0
    %1803 = vmatprep.subr.mxu0 0.0
    %1804 = vmatpush2.msra.mxu0 0.0
    %1805 = vmatprep.subr.mxu0 0.0
    %1806 = vmatpush2.msra.mxu0 0.0
    %1807 = vmatprep.mubr.f32.mxu0 0.0
    %1808 = vmatmul.mubr.f32.gmra.mxu0 %v1742
    %v1809 = vpop.f32.mrf.mxu0
    %v1810 = vadd.f32 %v1298, %v1809
    %v1811 = vpop.f32.mrf.mxu0
    %v1812 = vadd.f32 %v1302, %v1811
    %1813 = vdwg.mxu0
    %1815 = vrot.lane.b32.xlu0 %v1291, 64
    %v1816 = vpop.permute.xlu0 %1815
    %v1818 = vsel %vm629, %v1816, %v625
    %1819 = vmatprep.subr.mxu0 %v67
    %1820 = vmatpush1.msra.mxu0 %v66
    %1821 = vmatprep.subr.mxu0 %v65
    %1822 = vmatpush1.msra.mxu0 %v64
    %1823 = vmatprep.subr.mxu0 %v63
    %1824 = vmatpush1.msra.mxu0 %v62
    %1825 = vmatprep.subr.mxu0 %v61
    %1826 = vmatpush1.msra.mxu0 %v60
    %1827 = vmatprep.subr.mxu0 %v59
    %1828 = vmatpush1.msra.mxu0 %v58
    %1829 = vmatprep.subr.mxu0 %v57
    %1830 = vmatpush1.msra.mxu0 %v56
    %1831 = vmatprep.subr.mxu0 %v55
    %1832 = vmatpush1.msra.mxu0 %v54
    %1833 = vmatprep.subr.mxu0 %v53
    %1834 = vmatpush1.msra.mxu0 %v52
    %1835 = vmatprep.subr.mxu0 %v51
    %1836 = vmatpush1.msra.mxu0 %v50
    %1837 = vmatprep.subr.mxu0 %v49
    %1838 = vmatpush1.msra.mxu0 %v48
    %1839 = vmatprep.subr.mxu0 %v47
    %1840 = vmatpush1.msra.mxu0 %v46
    %1841 = vmatprep.subr.mxu0 %v45
    %1842 = vmatpush1.msra.mxu0 %v44
    %1843 = vmatprep.subr.mxu0 %v43
    %1844 = vmatpush1.msra.mxu0 %v42
    %1845 = vmatprep.subr.mxu0 %v41
    %1846 = vmatpush1.msra.mxu0 %v40
    %1847 = vmatprep.subr.mxu0 %v39
    %1848 = vmatpush1.msra.mxu0 %v38
    %1849 = vmatprep.subr.mxu0 %v37
    %1850 = vmatpush1.msra.mxu0 %v36
    %1851 = vmatprep.subr.mxu0 0.0
    %1852 = vmatpush2.msra.mxu0 0.0
    %1853 = vmatprep.subr.mxu0 0.0
    %1854 = vmatpush2.msra.mxu0 0.0
    %1855 = vmatprep.subr.mxu0 0.0
    %1856 = vmatpush2.msra.mxu0 0.0
    %1857 = vmatprep.subr.mxu0 0.0
    %1858 = vmatpush2.msra.mxu0 0.0
    %1859 = vmatprep.subr.mxu0 0.0
    %1860 = vmatpush2.msra.mxu0 0.0
    %1861 = vmatprep.subr.mxu0 0.0
    %1862 = vmatpush2.msra.mxu0 0.0
    %1863 = vmatprep.subr.mxu0 0.0
    %1864 = vmatpush2.msra.mxu0 0.0
    %1865 = vmatprep.subr.mxu0 0.0
    %1866 = vmatpush2.msra.mxu0 0.0
    %1867 = vmatprep.subr.mxu0 0.0
    %1868 = vmatpush2.msra.mxu0 0.0
    %1869 = vmatprep.subr.mxu0 0.0
    %1870 = vmatpush2.msra.mxu0 0.0
    %1871 = vmatprep.subr.mxu0 0.0
    %1872 = vmatpush2.msra.mxu0 0.0
    %1873 = vmatprep.subr.mxu0 0.0
    %1874 = vmatpush2.msra.mxu0 0.0
    %1875 = vmatprep.subr.mxu0 0.0
    %1876 = vmatpush2.msra.mxu0 0.0
    %1877 = vmatprep.subr.mxu0 0.0
    %1878 = vmatpush2.msra.mxu0 0.0
    %1879 = vmatprep.subr.mxu0 0.0
    %1880 = vmatpush2.msra.mxu0 0.0
    %1881 = vmatprep.subr.mxu0 0.0
    %1882 = vmatpush2.msra.mxu0 0.0
    %1883 = vmatprep.mubr.f32.mxu0 0.0
    %1884 = vmatmul.mubr.f32.gmra.mxu0 %v1818
    %v1885 = vpop.f32.mrf.mxu0
    %v1886 = vadd.f32 %v1298, %v1885
    %v1887 = vpop.f32.mrf.mxu0
    %v1888 = vadd.f32 %v1302, %v1887
    %1889 = vdwg.mxu0
    %v1890 = vxor.u32 %v1372, 2147483648
    %v1891 = vmul.f32 %v1890, 1.442695
    %v1892 = vpow.pop %v1891
    %v1893 = vadd.f32 %v1892, 1.0
    %v1894 = vrcp.pop %v1893
    %v1895 = vmul.f32 1.0, %v1894
    %v1896 = vmul.f32 %v1895, %v97
    %v1897 = vadd.f32 %v1374, %v1896
    %v1898 = vtanh.pop %v1897
    %v1899 = vsub.f32 1.0, %v1895
    %1901 = vrot.lane.b32.xlu0 %v1898, 64
    %v1902 = vpop.permute.xlu0 %1901
    %v1904 = vmul.f32 %v1899, %v1902
    %1906 = vrot.lane.b32.xlu0 %v1904, 64
    %v1907 = vpop.permute.xlu0 %1906
    %v1908 = vsel %vm629, %v1907, 0
    %1910 = vmatprep.subr.mxu0 0.0
    %1911 = vmatpush1.msra.mxu0 0.0
    %1912 = vmatprep.subr.mxu0 0.0
    %1913 = vmatpush1.msra.mxu0 0.0
    %1914 = vmatprep.subr.mxu0 0.0
    %1915 = vmatpush1.msra.mxu0 0.0
    %1916 = vmatprep.subr.mxu0 0.0
    %1917 = vmatpush1.msra.mxu0 0.0
    %1918 = vmatprep.subr.mxu0 0.0
    %1919 = vmatpush1.msra.mxu0 0.0
    %1920 = vmatprep.subr.mxu0 0.0
    %1921 = vmatpush1.msra.mxu0 0.0
    %1922 = vmatprep.subr.mxu0 0.0
    %1923 = vmatpush1.msra.mxu0 0.0
    %1924 = vmatprep.subr.mxu0 0.0
    %1925 = vmatpush1.msra.mxu0 0.0
    %1926 = vmatprep.subr.mxu0 %v83
    %1927 = vmatpush1.msra.mxu0 %v82
    %1928 = vmatprep.subr.mxu0 %v81
    %1929 = vmatpush1.msra.mxu0 %v80
    %1930 = vmatprep.subr.mxu0 %v79
    %1931 = vmatpush1.msra.mxu0 %v78
    %1932 = vmatprep.subr.mxu0 %v77
    %1933 = vmatpush1.msra.mxu0 %v76
    %1934 = vmatprep.subr.mxu0 %v75
    %1935 = vmatpush1.msra.mxu0 %v74
    %1936 = vmatprep.subr.mxu0 %v73
    %1937 = vmatpush1.msra.mxu0 %v72
    %1938 = vmatprep.subr.mxu0 %v71
    %1939 = vmatpush1.msra.mxu0 %v70
    %1940 = vmatprep.subr.mxu0 %v69
    %1941 = vmatpush1.msra.mxu0 %v68
    %1942 = vmatprep.subr.mxu0 0.0
    %1943 = vmatpush2.msra.mxu0 0.0
    %1944 = vmatprep.subr.mxu0 0.0
    %1945 = vmatpush2.msra.mxu0 0.0
    %1946 = vmatprep.subr.mxu0 0.0
    %1947 = vmatpush2.msra.mxu0 0.0
    %1948 = vmatprep.subr.mxu0 0.0
    %1949 = vmatpush2.msra.mxu0 0.0
    %1950 = vmatprep.subr.mxu0 0.0
    %1951 = vmatpush2.msra.mxu0 0.0
    %1952 = vmatprep.subr.mxu0 0.0
    %1953 = vmatpush2.msra.mxu0 0.0
    %1954 = vmatprep.subr.mxu0 0.0
    %1955 = vmatpush2.msra.mxu0 0.0
    %1956 = vmatprep.subr.mxu0 0.0
    %1957 = vmatpush2.msra.mxu0 0.0
    %1958 = vmatprep.subr.mxu0 0.0
    %1959 = vmatpush2.msra.mxu0 0.0
    %1960 = vmatprep.subr.mxu0 0.0
    %1961 = vmatpush2.msra.mxu0 0.0
    %1962 = vmatprep.subr.mxu0 0.0
    %1963 = vmatpush2.msra.mxu0 0.0
    %1964 = vmatprep.subr.mxu0 0.0
    %1965 = vmatpush2.msra.mxu0 0.0
    %1966 = vmatprep.subr.mxu0 0.0
    %1967 = vmatpush2.msra.mxu0 0.0
    %1968 = vmatprep.subr.mxu0 0.0
    %1969 = vmatpush2.msra.mxu0 0.0
    %1970 = vmatprep.subr.mxu0 0.0
    %1971 = vmatpush2.msra.mxu0 0.0
    %1972 = vmatprep.subr.mxu0 0.0
    %1973 = vmatpush2.msra.mxu0 0.0
    %1974 = vmatprep.mubr.f32.mxu0 0.0
    %1975 = vmatmul.mubr.f32.gmra.mxu0 %v1908
    %v1976 = vpop.f32.mrf.mxu0
    %v1977 = vadd.f32 0.0, %v1976
    %v1978 = vpop.f32.mrf.mxu0
    %v1979 = vadd.f32 0.0, %v1978
    %1980 = vdwg.mxu0
    %v1981 = vadd.f32 %v1445, %v1977
    %v1982 = vxor.u32 %v1981, 2147483648
    %v1983 = vmul.f32 %v1982, 1.442695
    %v1984 = vpow.pop %v1983
    %v1985 = vadd.f32 %v1984, 1.0
    %v1986 = vrcp.pop %v1985
    %v1987 = vmul.f32 1.0, %v1986
    %v1988 = vadd.f32 %v1979, %v97
    %v1989 = vmul.f32 %v1987, %v1988
    %v1990 = vadd.f32 %v1447, %v1989
    %v1991 = vtanh.pop %v1990
    %v1992 = vsub.f32 1.0, %v1987
    %1994 = vrot.lane.b32.xlu0 %v1991, 64
    %v1995 = vpop.permute.xlu0 %1994
    %v1997 = vmul.f32 %v1992, %v1995
    %v1998 = vmul.f32 %v1987, %v1904
    %v1999 = vadd.f32 %v1997, %v1998
    %2001 = vrot.lane.b32.xlu0 %v1999, 64
    %v2002 = vpop.permute.xlu0 %2001
    %v2003 = vsel %vm629, %v2002, 0
    %2005 = vmatprep.subr.mxu0 0.0
    %2006 = vmatpush1.msra.mxu0 0.0
    %2007 = vmatprep.subr.mxu0 0.0
    %2008 = vmatpush1.msra.mxu0 0.0
    %2009 = vmatprep.subr.mxu0 0.0
    %2010 = vmatpush1.msra.mxu0 0.0
    %2011 = vmatprep.subr.mxu0 0.0
    %2012 = vmatpush1.msra.mxu0 0.0
    %2013 = vmatprep.subr.mxu0 0.0
    %2014 = vmatpush1.msra.mxu0 0.0
    %2015 = vmatprep.subr.mxu0 0.0
    %2016 = vmatpush1.msra.mxu0 0.0
    %2017 = vmatprep.subr.mxu0 0.0
    %2018 = vmatpush1.msra.mxu0 0.0
    %2019 = vmatprep.subr.mxu0 0.0
    %2020 = vmatpush1.msra.mxu0 0.0
    %2021 = vmatprep.subr.mxu0 %v83
    %2022 = vmatpush1.msra.mxu0 %v82
    %2023 = vmatprep.subr.mxu0 %v81
    %2024 = vmatpush1.msra.mxu0 %v80
    %2025 = vmatprep.subr.mxu0 %v79
    %2026 = vmatpush1.msra.mxu0 %v78
    %2027 = vmatprep.subr.mxu0 %v77
    %2028 = vmatpush1.msra.mxu0 %v76
    %2029 = vmatprep.subr.mxu0 %v75
    %2030 = vmatpush1.msra.mxu0 %v74
    %2031 = vmatprep.subr.mxu0 %v73
    %2032 = vmatpush1.msra.mxu0 %v72
    %2033 = vmatprep.subr.mxu0 %v71
    %2034 = vmatpush1.msra.mxu0 %v70
    %2035 = vmatprep.subr.mxu0 %v69
    %2036 = vmatpush1.msra.mxu0 %v68
    %2037 = vmatprep.subr.mxu0 0.0
    %2038 = vmatpush2.msra.mxu0 0.0
    %2039 = vmatprep.subr.mxu0 0.0
    %2040 = vmatpush2.msra.mxu0 0.0
    %2041 = vmatprep.subr.mxu0 0.0
    %2042 = vmatpush2.msra.mxu0 0.0
    %2043 = vmatprep.subr.mxu0 0.0
    %2044 = vmatpush2.msra.mxu0 0.0
    %2045 = vmatprep.subr.mxu0 0.0
    %2046 = vmatpush2.msra.mxu0 0.0
    %2047 = vmatprep.subr.mxu0 0.0
    %2048 = vmatpush2.msra.mxu0 0.0
    %2049 = vmatprep.subr.mxu0 0.0
    %2050 = vmatpush2.msra.mxu0 0.0
    %2051 = vmatprep.subr.mxu0 0.0
    %2052 = vmatpush2.msra.mxu0 0.0
    %2053 = vmatprep.subr.mxu0 0.0
    %2054 = vmatpush2.msra.mxu0 0.0
    %2055 = vmatprep.subr.mxu0 0.0
    %2056 = vmatpush2.msra.mxu0 0.0
    %2057 = vmatprep.subr.mxu0 0.0
    %2058 = vmatpush2.msra.mxu0 0.0
    %2059 = vmatprep.subr.mxu0 0.0
    %2060 = vmatpush2.msra.mxu0 0.0
    %2061 = vmatprep.subr.mxu0 0.0
    %2062 = vmatpush2.msra.mxu0 0.0
    %2063 = vmatprep.subr.mxu0 0.0
    %2064 = vmatpush2.msra.mxu0 0.0
    %2065 = vmatprep.subr.mxu0 0.0
    %2066 = vmatpush2.msra.mxu0 0.0
    %2067 = vmatprep.subr.mxu0 0.0
    %2068 = vmatpush2.msra.mxu0 0.0
    %2069 = vmatprep.mubr.f32.mxu0 0.0
    %2070 = vmatmul.mubr.f32.gmra.mxu0 %v2003
    %v2071 = vpop.f32.mrf.mxu0
    %v2072 = vadd.f32 0.0, %v2071
    %v2073 = vpop.f32.mrf.mxu0
    %v2074 = vadd.f32 0.0, %v2073
    %2075 = vdwg.mxu0
    %v2076 = vadd.f32 %v1518, %v2072
    %v2077 = vxor.u32 %v2076, 2147483648
    %v2078 = vmul.f32 %v2077, 1.442695
    %v2079 = vpow.pop %v2078
    %v2080 = vadd.f32 %v2079, 1.0
    %v2081 = vrcp.pop %v2080
    %v2082 = vmul.f32 1.0, %v2081
    %v2083 = vadd.f32 %v2074, %v97
    %v2084 = vmul.f32 %v2082, %v2083
    %v2085 = vadd.f32 %v1520, %v2084
    %v2086 = vtanh.pop %v2085
    %v2087 = vsub.f32 1.0, %v2082
    %2089 = vrot.lane.b32.xlu0 %v2086, 64
    %v2090 = vpop.permute.xlu0 %2089
    %v2092 = vmul.f32 %v2087, %v2090
    %v2093 = vmul.f32 %v2082, %v1999
    %v2094 = vadd.f32 %v2092, %v2093
    %2096 = vrot.lane.b32.xlu0 %v2094, 64
    %v2097 = vpop.permute.xlu0 %2096
    %v2098 = vsel %vm629, %v2097, 0
    %2100 = vmatprep.subr.mxu0 0.0
    %2101 = vmatpush1.msra.mxu0 0.0
    %2102 = vmatprep.subr.mxu0 0.0
    %2103 = vmatpush1.msra.mxu0 0.0
    %2104 = vmatprep.subr.mxu0 0.0
    %2105 = vmatpush1.msra.mxu0 0.0
    %2106 = vmatprep.subr.mxu0 0.0
    %2107 = vmatpush1.msra.mxu0 0.0
    %2108 = vmatprep.subr.mxu0 0.0
    %2109 = vmatpush1.msra.mxu0 0.0
    %2110 = vmatprep.subr.mxu0 0.0
    %2111 = vmatpush1.msra.mxu0 0.0
    %2112 = vmatprep.subr.mxu0 0.0
    %2113 = vmatpush1.msra.mxu0 0.0
    %2114 = vmatprep.subr.mxu0 0.0
    %2115 = vmatpush1.msra.mxu0 0.0
    %2116 = vmatprep.subr.mxu0 %v83
    %2117 = vmatpush1.msra.mxu0 %v82
    %2118 = vmatprep.subr.mxu0 %v81
    %2119 = vmatpush1.msra.mxu0 %v80
    %2120 = vmatprep.subr.mxu0 %v79
    %2121 = vmatpush1.msra.mxu0 %v78
    %2122 = vmatprep.subr.mxu0 %v77
    %2123 = vmatpush1.msra.mxu0 %v76
    %2124 = vmatprep.subr.mxu0 %v75
    %2125 = vmatpush1.msra.mxu0 %v74
    %2126 = vmatprep.subr.mxu0 %v73
    %2127 = vmatpush1.msra.mxu0 %v72
    %2128 = vmatprep.subr.mxu0 %v71
    %2129 = vmatpush1.msra.mxu0 %v70
    %2130 = vmatprep.subr.mxu0 %v69
    %2131 = vmatpush1.msra.mxu0 %v68
    %2132 = vmatprep.subr.mxu0 0.0
    %2133 = vmatpush2.msra.mxu0 0.0
    %2134 = vmatprep.subr.mxu0 0.0
    %2135 = vmatpush2.msra.mxu0 0.0
    %2136 = vmatprep.subr.mxu0 0.0
    %2137 = vmatpush2.msra.mxu0 0.0
    %2138 = vmatprep.subr.mxu0 0.0
    %2139 = vmatpush2.msra.mxu0 0.0
    %2140 = vmatprep.subr.mxu0 0.0
    %2141 = vmatpush2.msra.mxu0 0.0
    %2142 = vmatprep.subr.mxu0 0.0
    %2143 = vmatpush2.msra.mxu0 0.0
    %2144 = vmatprep.subr.mxu0 0.0
    %2145 = vmatpush2.msra.mxu0 0.0
    %2146 = vmatprep.subr.mxu0 0.0
    %2147 = vmatpush2.msra.mxu0 0.0
    %2148 = vmatprep.subr.mxu0 0.0
    %2149 = vmatpush2.msra.mxu0 0.0
    %2150 = vmatprep.subr.mxu0 0.0
    %2151 = vmatpush2.msra.mxu0 0.0
    %2152 = vmatprep.subr.mxu0 0.0
    %2153 = vmatpush2.msra.mxu0 0.0
    %2154 = vmatprep.subr.mxu0 0.0
    %2155 = vmatpush2.msra.mxu0 0.0
    %2156 = vmatprep.subr.mxu0 0.0
    %2157 = vmatpush2.msra.mxu0 0.0
    %2158 = vmatprep.subr.mxu0 0.0
    %2159 = vmatpush2.msra.mxu0 0.0
    %2160 = vmatprep.subr.mxu0 0.0
    %2161 = vmatpush2.msra.mxu0 0.0
    %2162 = vmatprep.subr.mxu0 0.0
    %2163 = vmatpush2.msra.mxu0 0.0
    %2164 = vmatprep.mubr.f32.mxu0 0.0
    %2165 = vmatmul.mubr.f32.gmra.mxu0 %v2098
    %v2166 = vpop.f32.mrf.mxu0
    %v2167 = vadd.f32 0.0, %v2166
    %v2168 = vpop.f32.mrf.mxu0
    %v2169 = vadd.f32 0.0, %v2168
    %2170 = vdwg.mxu0
    %v2171 = vadd.f32 %v1591, %v2167
    %v2172 = vxor.u32 %v2171, 2147483648
    %v2173 = vmul.f32 %v2172, 1.442695
    %v2174 = vpow.pop %v2173
    %v2175 = vadd.f32 %v2174, 1.0
    %v2176 = vrcp.pop %v2175
    %v2177 = vmul.f32 1.0, %v2176
    %v2178 = vadd.f32 %v2169, %v97
    %v2179 = vmul.f32 %v2177, %v2178
    %v2180 = vadd.f32 %v1593, %v2179
    %v2181 = vtanh.pop %v2180
    %v2182 = vsub.f32 1.0, %v2177
    %2184 = vrot.lane.b32.xlu0 %v2181, 64
    %v2185 = vpop.permute.xlu0 %2184
    %v2187 = vmul.f32 %v2182, %v2185
    %v2188 = vmul.f32 %v2177, %v2094
    %v2189 = vadd.f32 %v2187, %v2188
    %2191 = vrot.lane.b32.xlu0 %v2189, 64
    %v2192 = vpop.permute.xlu0 %2191
    %v2193 = vsel %vm629, %v2192, 0
    %2195 = vmatprep.subr.mxu0 0.0
    %2196 = vmatpush1.msra.mxu0 0.0
    %2197 = vmatprep.subr.mxu0 0.0
    %2198 = vmatpush1.msra.mxu0 0.0
    %2199 = vmatprep.subr.mxu0 0.0
    %2200 = vmatpush1.msra.mxu0 0.0
    %2201 = vmatprep.subr.mxu0 0.0
    %2202 = vmatpush1.msra.mxu0 0.0
    %2203 = vmatprep.subr.mxu0 0.0
    %2204 = vmatpush1.msra.mxu0 0.0
    %2205 = vmatprep.subr.mxu0 0.0
    %2206 = vmatpush1.msra.mxu0 0.0
    %2207 = vmatprep.subr.mxu0 0.0
    %2208 = vmatpush1.msra.mxu0 0.0
    %2209 = vmatprep.subr.mxu0 0.0
    %2210 = vmatpush1.msra.mxu0 0.0
    %2211 = vmatprep.subr.mxu0 %v83
    %2212 = vmatpush1.msra.mxu0 %v82
    %2213 = vmatprep.subr.mxu0 %v81
    %2214 = vmatpush1.msra.mxu0 %v80
    %2215 = vmatprep.subr.mxu0 %v79
    %2216 = vmatpush1.msra.mxu0 %v78
    %2217 = vmatprep.subr.mxu0 %v77
    %2218 = vmatpush1.msra.mxu0 %v76
    %2219 = vmatprep.subr.mxu0 %v75
    %2220 = vmatpush1.msra.mxu0 %v74
    %2221 = vmatprep.subr.mxu0 %v73
    %2222 = vmatpush1.msra.mxu0 %v72
    %2223 = vmatprep.subr.mxu0 %v71
    %2224 = vmatpush1.msra.mxu0 %v70
    %2225 = vmatprep.subr.mxu0 %v69
    %2226 = vmatpush1.msra.mxu0 %v68
    %2227 = vmatprep.subr.mxu0 0.0
    %2228 = vmatpush2.msra.mxu0 0.0
    %2229 = vmatprep.subr.mxu0 0.0
    %2230 = vmatpush2.msra.mxu0 0.0
    %2231 = vmatprep.subr.mxu0 0.0
    %2232 = vmatpush2.msra.mxu0 0.0
    %2233 = vmatprep.subr.mxu0 0.0
    %2234 = vmatpush2.msra.mxu0 0.0
    %2235 = vmatprep.subr.mxu0 0.0
    %2236 = vmatpush2.msra.mxu0 0.0
    %2237 = vmatprep.subr.mxu0 0.0
    %2238 = vmatpush2.msra.mxu0 0.0
    %2239 = vmatprep.subr.mxu0 0.0
    %2240 = vmatpush2.msra.mxu0 0.0
    %2241 = vmatprep.subr.mxu0 0.0
    %2242 = vmatpush2.msra.mxu0 0.0
    %2243 = vmatprep.subr.mxu0 0.0
    %2244 = vmatpush2.msra.mxu0 0.0
    %2245 = vmatprep.subr.mxu0 0.0
    %2246 = vmatpush2.msra.mxu0 0.0
    %2247 = vmatprep.subr.mxu0 0.0
    %2248 = vmatpush2.msra.mxu0 0.0
    %2249 = vmatprep.subr.mxu0 0.0
    %2250 = vmatpush2.msra.mxu0 0.0
    %2251 = vmatprep.subr.mxu0 0.0
    %2252 = vmatpush2.msra.mxu0 0.0
    %2253 = vmatprep.subr.mxu0 0.0
    %2254 = vmatpush2.msra.mxu0 0.0
    %2255 = vmatprep.subr.mxu0 0.0
    %2256 = vmatpush2.msra.mxu0 0.0
    %2257 = vmatprep.subr.mxu0 0.0
    %2258 = vmatpush2.msra.mxu0 0.0
    %2259 = vmatprep.mubr.f32.mxu0 0.0
    %2260 = vmatmul.mubr.f32.gmra.mxu0 %v2193
    %v2261 = vpop.f32.mrf.mxu0
    %v2262 = vadd.f32 0.0, %v2261
    %v2263 = vpop.f32.mrf.mxu0
    %v2264 = vadd.f32 0.0, %v2263
    %2265 = vdwg.mxu0
    %v2266 = vadd.f32 %v1664, %v2262
    %v2267 = vxor.u32 %v2266, 2147483648
    %v2268 = vmul.f32 %v2267, 1.442695
    %v2269 = vpow.pop %v2268
    %v2270 = vadd.f32 %v2269, 1.0
    %v2271 = vrcp.pop %v2270
    %v2272 = vmul.f32 1.0, %v2271
    %v2273 = vadd.f32 %v2264, %v97
    %v2274 = vmul.f32 %v2272, %v2273
    %v2275 = vadd.f32 %v1666, %v2274
    %v2276 = vtanh.pop %v2275
    %v2277 = vsub.f32 1.0, %v2272
    %2279 = vrot.lane.b32.xlu0 %v2276, 64
    %v2280 = vpop.permute.xlu0 %2279
    %v2282 = vmul.f32 %v2277, %v2280
    %v2283 = vmul.f32 %v2272, %v2189
    %v2284 = vadd.f32 %v2282, %v2283
    %2286 = vrot.lane.b32.xlu0 %v2284, 64
    %v2287 = vpop.permute.xlu0 %2286
    %v2288 = vsel %vm629, %v2287, 0
    %2290 = vmatprep.subr.mxu0 0.0
    %2291 = vmatpush1.msra.mxu0 0.0
    %2292 = vmatprep.subr.mxu0 0.0
    %2293 = vmatpush1.msra.mxu0 0.0
    %2294 = vmatprep.subr.mxu0 0.0
    %2295 = vmatpush1.msra.mxu0 0.0
    %2296 = vmatprep.subr.mxu0 0.0
    %2297 = vmatpush1.msra.mxu0 0.0
    %2298 = vmatprep.subr.mxu0 0.0
    %2299 = vmatpush1.msra.mxu0 0.0
    %2300 = vmatprep.subr.mxu0 0.0
    %2301 = vmatpush1.msra.mxu0 0.0
    %2302 = vmatprep.subr.mxu0 0.0
    %2303 = vmatpush1.msra.mxu0 0.0
    %2304 = vmatprep.subr.mxu0 0.0
    %2305 = vmatpush1.msra.mxu0 0.0
    %2306 = vmatprep.subr.mxu0 %v83
    %2307 = vmatpush1.msra.mxu0 %v82
    %2308 = vmatprep.subr.mxu0 %v81
    %2309 = vmatpush1.msra.mxu0 %v80
    %2310 = vmatprep.subr.mxu0 %v79
    %2311 = vmatpush1.msra.mxu0 %v78
    %2312 = vmatprep.subr.mxu0 %v77
    %2313 = vmatpush1.msra.mxu0 %v76
    %2314 = vmatprep.subr.mxu0 %v75
    %2315 = vmatpush1.msra.mxu0 %v74
    %2316 = vmatprep.subr.mxu0 %v73
    %2317 = vmatpush1.msra.mxu0 %v72
    %2318 = vmatprep.subr.mxu0 %v71
    %2319 = vmatpush1.msra.mxu0 %v70
    %2320 = vmatprep.subr.mxu0 %v69
    %2321 = vmatpush1.msra.mxu0 %v68
    %2322 = vmatprep.subr.mxu0 0.0
    %2323 = vmatpush2.msra.mxu0 0.0
    %2324 = vmatprep.subr.mxu0 0.0
    %2325 = vmatpush2.msra.mxu0 0.0
    %2326 = vmatprep.subr.mxu0 0.0
    %2327 = vmatpush2.msra.mxu0 0.0
    %2328 = vmatprep.subr.mxu0 0.0
    %2329 = vmatpush2.msra.mxu0 0.0
    %2330 = vmatprep.subr.mxu0 0.0
    %2331 = vmatpush2.msra.mxu0 0.0
    %2332 = vmatprep.subr.mxu0 0.0
    %2333 = vmatpush2.msra.mxu0 0.0
    %2334 = vmatprep.subr.mxu0 0.0
    %2335 = vmatpush2.msra.mxu0 0.0
    %2336 = vmatprep.subr.mxu0 0.0
    %2337 = vmatpush2.msra.mxu0 0.0
    %2338 = vmatprep.subr.mxu0 0.0
    %2339 = vmatpush2.msra.mxu0 0.0
    %2340 = vmatprep.subr.mxu0 0.0
    %2341 = vmatpush2.msra.mxu0 0.0
    %2342 = vmatprep.subr.mxu0 0.0
    %2343 = vmatpush2.msra.mxu0 0.0
    %2344 = vmatprep.subr.mxu0 0.0
    %2345 = vmatpush2.msra.mxu0 0.0
    %2346 = vmatprep.subr.mxu0 0.0
    %2347 = vmatpush2.msra.mxu0 0.0
    %2348 = vmatprep.subr.mxu0 0.0
    %2349 = vmatpush2.msra.mxu0 0.0
    %2350 = vmatprep.subr.mxu0 0.0
    %2351 = vmatpush2.msra.mxu0 0.0
    %2352 = vmatprep.subr.mxu0 0.0
    %2353 = vmatpush2.msra.mxu0 0.0
    %2354 = vmatprep.mubr.f32.mxu0 0.0
    %2355 = vmatmul.mubr.f32.gmra.mxu0 %v2288
    %v2356 = vpop.f32.mrf.mxu0
    %v2357 = vadd.f32 0.0, %v2356
    %v2358 = vpop.f32.mrf.mxu0
    %v2359 = vadd.f32 0.0, %v2358
    %2360 = vdwg.mxu0
    %v2361 = vadd.f32 %v1737, %v2357
    %v2362 = vxor.u32 %v2361, 2147483648
    %v2363 = vmul.f32 %v2362, 1.442695
    %v2364 = vpow.pop %v2363
    %v2365 = vadd.f32 %v2364, 1.0
    %v2366 = vrcp.pop %v2365
    %v2367 = vmul.f32 1.0, %v2366
    %v2368 = vadd.f32 %v2359, %v97
    %v2369 = vmul.f32 %v2367, %v2368
    %v2370 = vadd.f32 %v1739, %v2369
    %v2371 = vtanh.pop %v2370
    %v2372 = vsub.f32 1.0, %v2367
    %2374 = vrot.lane.b32.xlu0 %v2371, 64
    %v2375 = vpop.permute.xlu0 %2374
    %v2377 = vmul.f32 %v2372, %v2375
    %v2378 = vmul.f32 %v2367, %v2284
    %v2379 = vadd.f32 %v2377, %v2378
    %2381 = vrot.lane.b32.xlu0 %v2379, 64
    %v2382 = vpop.permute.xlu0 %2381
    %v2383 = vsel %vm629, %v2382, 0
    %2385 = vmatprep.subr.mxu0 0.0
    %2386 = vmatpush1.msra.mxu0 0.0
    %2387 = vmatprep.subr.mxu0 0.0
    %2388 = vmatpush1.msra.mxu0 0.0
    %2389 = vmatprep.subr.mxu0 0.0
    %2390 = vmatpush1.msra.mxu0 0.0
    %2391 = vmatprep.subr.mxu0 0.0
    %2392 = vmatpush1.msra.mxu0 0.0
    %2393 = vmatprep.subr.mxu0 0.0
    %2394 = vmatpush1.msra.mxu0 0.0
    %2395 = vmatprep.subr.mxu0 0.0
    %2396 = vmatpush1.msra.mxu0 0.0
    %2397 = vmatprep.subr.mxu0 0.0
    %2398 = vmatpush1.msra.mxu0 0.0
    %2399 = vmatprep.subr.mxu0 0.0
    %2400 = vmatpush1.msra.mxu0 0.0
    %2401 = vmatprep.subr.mxu0 %v83
    %2402 = vmatpush1.msra.mxu0 %v82
    %2403 = vmatprep.subr.mxu0 %v81
    %2404 = vmatpush1.msra.mxu0 %v80
    %2405 = vmatprep.subr.mxu0 %v79
    %2406 = vmatpush1.msra.mxu0 %v78
    %2407 = vmatprep.subr.mxu0 %v77
    %2408 = vmatpush1.msra.mxu0 %v76
    %2409 = vmatprep.subr.mxu0 %v75
    %2410 = vmatpush1.msra.mxu0 %v74
    %2411 = vmatprep.subr.mxu0 %v73
    %2412 = vmatpush1.msra.mxu0 %v72
    %2413 = vmatprep.subr.mxu0 %v71
    %2414 = vmatpush1.msra.mxu0 %v70
    %2415 = vmatprep.subr.mxu0 %v69
    %2416 = vmatpush1.msra.mxu0 %v68
    %2417 = vmatprep.subr.mxu0 0.0
    %2418 = vmatpush2.msra.mxu0 0.0
    %2419 = vmatprep.subr.mxu0 0.0
    %2420 = vmatpush2.msra.mxu0 0.0
    %2421 = vmatprep.subr.mxu0 0.0
    %2422 = vmatpush2.msra.mxu0 0.0
    %2423 = vmatprep.subr.mxu0 0.0
    %2424 = vmatpush2.msra.mxu0 0.0
    %2425 = vmatprep.subr.mxu0 0.0
    %2426 = vmatpush2.msra.mxu0 0.0
    %2427 = vmatprep.subr.mxu0 0.0
    %2428 = vmatpush2.msra.mxu0 0.0
    %2429 = vmatprep.subr.mxu0 0.0
    %2430 = vmatpush2.msra.mxu0 0.0
    %2431 = vmatprep.subr.mxu0 0.0
    %2432 = vmatpush2.msra.mxu0 0.0
    %2433 = vmatprep.subr.mxu0 0.0
    %2434 = vmatpush2.msra.mxu0 0.0
    %2435 = vmatprep.subr.mxu0 0.0
    %2436 = vmatpush2.msra.mxu0 0.0
    %2437 = vmatprep.subr.mxu0 0.0
    %2438 = vmatpush2.msra.mxu0 0.0
    %2439 = vmatprep.subr.mxu0 0.0
    %2440 = vmatpush2.msra.mxu0 0.0
    %2441 = vmatprep.subr.mxu0 0.0
    %2442 = vmatpush2.msra.mxu0 0.0
    %2443 = vmatprep.subr.mxu0 0.0
    %2444 = vmatpush2.msra.mxu0 0.0
    %2445 = vmatprep.subr.mxu0 0.0
    %2446 = vmatpush2.msra.mxu0 0.0
    %2447 = vmatprep.subr.mxu0 0.0
    %2448 = vmatpush2.msra.mxu0 0.0
    %2449 = vmatprep.mubr.f32.mxu0 0.0
    %2450 = vmatmul.mubr.f32.gmra.mxu0 %v2383
    %v2451 = vpop.f32.mrf.mxu0
    %v2452 = vadd.f32 0.0, %v2451
    %v2453 = vpop.f32.mrf.mxu0
    %v2454 = vadd.f32 0.0, %v2453
    %2455 = vdwg.mxu0
    %v2456 = vadd.f32 %v1810, %v2452
    %v2457 = vxor.u32 %v2456, 2147483648
    %v2458 = vmul.f32 %v2457, 1.442695
    %v2459 = vpow.pop %v2458
    %v2460 = vadd.f32 %v2459, 1.0
    %v2461 = vrcp.pop %v2460
    %v2462 = vmul.f32 1.0, %v2461
    %v2463 = vadd.f32 %v2454, %v97
    %v2464 = vmul.f32 %v2462, %v2463
    %v2465 = vadd.f32 %v1812, %v2464
    %v2466 = vtanh.pop %v2465
    %v2467 = vsub.f32 1.0, %v2462
    %2469 = vrot.lane.b32.xlu0 %v2466, 64
    %v2470 = vpop.permute.xlu0 %2469
    %v2472 = vmul.f32 %v2467, %v2470
    %v2473 = vmul.f32 %v2462, %v2379
    %v2474 = vadd.f32 %v2472, %v2473
    %2476 = vrot.lane.b32.xlu0 %v2474, 64
    %v2477 = vpop.permute.xlu0 %2476
    %v2478 = vsel %vm629, %v2477, 0
    %2480 = vmatprep.subr.mxu0 0.0
    %2481 = vmatpush1.msra.mxu0 0.0
    %2482 = vmatprep.subr.mxu0 0.0
    %2483 = vmatpush1.msra.mxu0 0.0
    %2484 = vmatprep.subr.mxu0 0.0
    %2485 = vmatpush1.msra.mxu0 0.0
    %2486 = vmatprep.subr.mxu0 0.0
    %2487 = vmatpush1.msra.mxu0 0.0
    %2488 = vmatprep.subr.mxu0 0.0
    %2489 = vmatpush1.msra.mxu0 0.0
    %2490 = vmatprep.subr.mxu0 0.0
    %2491 = vmatpush1.msra.mxu0 0.0
    %2492 = vmatprep.subr.mxu0 0.0
    %2493 = vmatpush1.msra.mxu0 0.0
    %2494 = vmatprep.subr.mxu0 0.0
    %2495 = vmatpush1.msra.mxu0 0.0
    %2496 = vmatprep.subr.mxu0 %v83
    %2497 = vmatpush1.msra.mxu0 %v82
    %2498 = vmatprep.subr.mxu0 %v81
    %2499 = vmatpush1.msra.mxu0 %v80
    %2500 = vmatprep.subr.mxu0 %v79
    %2501 = vmatpush1.msra.mxu0 %v78
    %2502 = vmatprep.subr.mxu0 %v77
    %2503 = vmatpush1.msra.mxu0 %v76
    %2504 = vmatprep.subr.mxu0 %v75
    %2505 = vmatpush1.msra.mxu0 %v74
    %2506 = vmatprep.subr.mxu0 %v73
    %2507 = vmatpush1.msra.mxu0 %v72
    %2508 = vmatprep.subr.mxu0 %v71
    %2509 = vmatpush1.msra.mxu0 %v70
    %2510 = vmatprep.subr.mxu0 %v69
    %2511 = vmatpush1.msra.mxu0 %v68
    %2512 = vmatprep.subr.mxu0 0.0
    %2513 = vmatpush2.msra.mxu0 0.0
    %2514 = vmatprep.subr.mxu0 0.0
    %2515 = vmatpush2.msra.mxu0 0.0
    %2516 = vmatprep.subr.mxu0 0.0
    %2517 = vmatpush2.msra.mxu0 0.0
    %2518 = vmatprep.subr.mxu0 0.0
    %2519 = vmatpush2.msra.mxu0 0.0
    %2520 = vmatprep.subr.mxu0 0.0
    %2521 = vmatpush2.msra.mxu0 0.0
    %2522 = vmatprep.subr.mxu0 0.0
    %2523 = vmatpush2.msra.mxu0 0.0
    %2524 = vmatprep.subr.mxu0 0.0
    %2525 = vmatpush2.msra.mxu0 0.0
    %2526 = vmatprep.subr.mxu0 0.0
    %2527 = vmatpush2.msra.mxu0 0.0
    %2528 = vmatprep.subr.mxu0 0.0
    %2529 = vmatpush2.msra.mxu0 0.0
    %2530 = vmatprep.subr.mxu0 0.0
    %2531 = vmatpush2.msra.mxu0 0.0
    %2532 = vmatprep.subr.mxu0 0.0
    %2533 = vmatpush2.msra.mxu0 0.0
    %2534 = vmatprep.subr.mxu0 0.0
    %2535 = vmatpush2.msra.mxu0 0.0
    %2536 = vmatprep.subr.mxu0 0.0
    %2537 = vmatpush2.msra.mxu0 0.0
    %2538 = vmatprep.subr.mxu0 0.0
    %2539 = vmatpush2.msra.mxu0 0.0
    %2540 = vmatprep.subr.mxu0 0.0
    %2541 = vmatpush2.msra.mxu0 0.0
    %2542 = vmatprep.subr.mxu0 0.0
    %2543 = vmatpush2.msra.mxu0 0.0
    %2544 = vmatprep.mubr.f32.mxu0 0.0
    %2545 = vmatmul.mubr.f32.gmra.mxu0 %v2478
    %v2546 = vpop.f32.mrf.mxu0
    %v2547 = vadd.f32 0.0, %v2546
    %v2548 = vpop.f32.mrf.mxu0
    %v2549 = vadd.f32 0.0, %v2548
    %2550 = vdwg.mxu0
    %v2551 = vadd.f32 %v1886, %v2547
    %v2552 = vxor.u32 %v2551, 2147483648
    %v2553 = vmul.f32 %v2552, 1.442695
    %v2554 = vpow.pop %v2553
    %v2555 = vadd.f32 %v2554, 1.0
    %v2556 = vrcp.pop %v2555
    %v2557 = vmul.f32 1.0, %v2556
    %v2558 = vadd.f32 %v2549, %v97
    %v2559 = vmul.f32 %v2557, %v2558
    %v2560 = vadd.f32 %v1888, %v2559
    %v2561 = vtanh.pop %v2560
    %v2562 = vsub.f32 1.0, %v2557
    %2564 = vrot.lane.b32.xlu0 %v2561, 64
    %v2565 = vpop.permute.xlu0 %2564
    %v2567 = vmul.f32 %v2562, %v2565
    %v2568 = vmul.f32 %v2557, %v2474
    %v2569 = vadd.f32 %v2567, %v2568
    %2571 = vrot.lane.b32.xlu0 %v2569, 64
    %v2572 = vpop.permute.xlu0 %2571
    %vm2575 = vcmask 261120
    %v2576 = vsel %vm2575, %v2572, %v1907
    %v2578 = vsel %vm629, %v2576, 0
    %2580 = vmatprep.subr.mxu0 0.0
    %2581 = vmatpush1.msra.mxu0 0.0
    %2582 = vmatprep.subr.mxu0 0.0
    %2583 = vmatpush1.msra.mxu0 0.0
    %2584 = vmatprep.subr.mxu0 0.0
    %2585 = vmatpush1.msra.mxu0 0.0
    %2586 = vmatprep.subr.mxu0 0.0
    %2587 = vmatpush1.msra.mxu0 0.0
    %2588 = vmatprep.subr.mxu0 0.0
    %2589 = vmatpush1.msra.mxu0 0.0
    %2590 = vmatprep.subr.mxu0 0.0
    %2591 = vmatpush1.msra.mxu0 0.0
    %2592 = vmatprep.subr.mxu0 0.0
    %2593 = vmatpush1.msra.mxu0 0.0
    %2594 = vmatprep.subr.mxu0 0.0
    %2595 = vmatpush1.msra.mxu0 0.0
    %2596 = vmatprep.subr.mxu0 0.0
    %2597 = vmatpush1.msra.mxu0 %v91
    %2598 = vmatprep.subr.mxu0 0.0
    %2599 = vmatpush1.msra.mxu0 %v90
    %2600 = vmatprep.subr.mxu0 0.0
    %2601 = vmatpush1.msra.mxu0 %v89
    %2602 = vmatprep.subr.mxu0 0.0
    %2603 = vmatpush1.msra.mxu0 %v88
    %2604 = vmatprep.subr.mxu0 0.0
    %2605 = vmatpush1.msra.mxu0 %v87
    %2606 = vmatprep.subr.mxu0 0.0
    %2607 = vmatpush1.msra.mxu0 %v86
    %2608 = vmatprep.subr.mxu0 0.0
    %2609 = vmatpush1.msra.mxu0 %v85
    %2610 = vmatprep.subr.mxu0 0.0
    %2611 = vmatpush1.msra.mxu0 %v84
    %2612 = vmatprep.subr.mxu0 0.0
    %2613 = vmatpush2.msra.mxu0 0.0
    %2614 = vmatprep.subr.mxu0 0.0
    %2615 = vmatpush2.msra.mxu0 0.0
    %2616 = vmatprep.subr.mxu0 0.0
    %2617 = vmatpush2.msra.mxu0 0.0
    %2618 = vmatprep.subr.mxu0 0.0
    %2619 = vmatpush2.msra.mxu0 0.0
    %2620 = vmatprep.subr.mxu0 0.0
    %2621 = vmatpush2.msra.mxu0 0.0
    %2622 = vmatprep.subr.mxu0 0.0
    %2623 = vmatpush2.msra.mxu0 0.0
    %2624 = vmatprep.subr.mxu0 0.0
    %2625 = vmatpush2.msra.mxu0 0.0
    %2626 = vmatprep.subr.mxu0 0.0
    %2627 = vmatpush2.msra.mxu0 0.0
    %2628 = vmatprep.subr.mxu0 0.0
    %2629 = vmatpush2.msra.mxu0 0.0
    %2630 = vmatprep.subr.mxu0 0.0
    %2631 = vmatpush2.msra.mxu0 0.0
    %2632 = vmatprep.subr.mxu0 0.0
    %2633 = vmatpush2.msra.mxu0 0.0
    %2634 = vmatprep.subr.mxu0 0.0
    %2635 = vmatpush2.msra.mxu0 0.0
    %2636 = vmatprep.subr.mxu0 0.0
    %2637 = vmatpush2.msra.mxu0 0.0
    %2638 = vmatprep.subr.mxu0 0.0
    %2639 = vmatpush2.msra.mxu0 0.0
    %2640 = vmatprep.subr.mxu0 0.0
    %2641 = vmatpush2.msra.mxu0 0.0
    %2642 = vmatprep.subr.mxu0 0.0
    %2643 = vmatpush2.msra.mxu0 0.0
    %2644 = vmatprep.mubr.f32.mxu0 0.0
    %2645 = vmatmul.mubr.f32.gmra.mxu0 %v2578
    %v2646 = vpop.f32.mrf.mxu0
    %v2647 = vadd.f32 %v98, %v2646
    %v2648 = vpop.f32.mrf.mxu0
    %2649 = vdwg.mxu0
    %vm2650 = vcmask 123904
    %2651 = vst.msk [vmem:[#allocation2] sm:$0x3] %vm2650, %v2647
    // Predicated region
    $region10: #{simple_midi_rnn_forward.1} parent=1 // pred_check
      _
    $region11: #{simple_midi_rnn_forward.1} parent=1 // pred_check_branch
      %2653 = sbr.rel (0) target = $region13
    $region12: #{simple_midi_rnn_forward.1} parent=1 // pred_region
      %s2655 = ssub.s32 32, 32
      %2656 = vsyncadd [#allocation3], %s2655
      %s2658 = sshll.u32 [#allocation2], 4
      %s2659 = int_to_ptr.vmem [resolvable:$true] %s2658
      %2661 = dma.vmem_to_hbm [thread:$0]  %s2659, 32, %s2, [#allocation3]
    $region13: #{simple_midi_rnn_forward.1} parent=1 // pred_fallthru
      _
    // Predicated region
    $region14: #{simple_midi_rnn_forward.1} parent=1 // pred_check
      _
    $region15: #{simple_midi_rnn_forward.1} parent=1 // pred_check_branch
      %2663 = sbr.rel (0) target = $region17
    $region16: #{simple_midi_rnn_forward.1} parent=1 // pred_region
      %2664 = dma.done [#allocation3], 32
    $region17: #{simple_midi_rnn_forward.1} parent=1 // pred_fallthru
      _
    %2665 = vsyncpa [#allocation3], 1

</llo_original>
